<compile_context>
chip_gen: v7x
topology: tpu7x:2x2x1
jax: 0.10.0
libtpu: 0.0.40
codegen_flags: <defaults>
</compile_context>

<pallas_src>
import jax
import jax.numpy as jnp
from jax.experimental import pallas as pl
from jax.experimental.pallas import tpu as pltpu


def _encoder_kernel(x_ref, w1_ref, b1_ref, w2_ref, b2_ref, w3_ref,
                    o_ref, acc_ref):
    """grid = (j over N2 tiles [parallel], k over K2 tiles [reduction])."""
    k = pl.program_id(1)

    @pl.when(k == 0)
    def _():
        acc_ref[...] = jnp.zeros_like(acc_ref)

    # Layer 1, k-slice: h1_k = relu(x @ W1[:, ks] + b1[ks])        (B, tk)
    h1 = jnp.dot(x_ref[...], w1_ref[...], preferred_element_type=jnp.float32)
    h1 = jnp.maximum(h1 + b1_ref[...], 0.0)

    # Layer 2 partial: acc_j += h1_k @ W2[ks, js]                  (B, tn2)
    acc_ref[...] += jnp.dot(h1.astype(jnp.bfloat16), w2_ref[...],
                            preferred_element_type=jnp.float32)

    @pl.when(k == pl.num_programs(1) - 1)
    def _():
        h2 = acc_ref[...] + b2_ref[...]
        h2 = h2 * jax.nn.sigmoid(h2)                       # SiLU
        # TODO(synk): nn.Dropout(p) is identity in eval/inference mode
        # (implemented here); training-mode dropout would use pltpu.prng_seed
        # + pltpu.prng_random_bits and 1/(1-p) scaling.
        # Layer 3 partial contraction over this j's half of the hidden dim:
        out_j = jnp.dot(h2.astype(jnp.bfloat16), w3_ref[...],
                        preferred_element_type=jnp.float32)
        o_ref[...] = out_j[None].astype(o_ref.dtype)       # (1, B, out_dim)


def encoder_forward(params, x, *, tk=2048, tn2=512):
    """Fused encoder forward. x: (B, in_dim) f32 -> (B, out_dim) f32."""
    (w1, b1), (w2, b2), (w3, b3) = params
    B, in_dim = x.shape
    K2 = w1.shape[1]            # 4096
    N2 = w2.shape[1]            # 1024
    out_dim = w3.shape[1]

    tk = min(tk, K2)
    tn2 = min(tn2, N2)
    assert K2 % tk == 0 and N2 % tn2 == 0, (K2, tk, N2, tn2)
    nj, nk = N2 // tn2, K2 // tk

    # Stream weights/activations in bf16 (f32 MXU accumulation in-kernel).
    xb = x.astype(jnp.bfloat16)
    w1b, w2b, w3b = (w.astype(jnp.bfloat16) for w in (w1, w2, w3))
    b1r = b1.reshape(1, K2).astype(jnp.float32)
    b2r = b2.reshape(1, N2).astype(jnp.float32)

    partials = pl.pallas_call(
        _encoder_kernel,
        out_shape=jax.ShapeDtypeStruct((nj, B, out_dim), jnp.float32),
        grid_spec=pltpu.PrefetchScalarGridSpec(
            num_scalar_prefetch=0,
            grid=(nj, nk),                                     # k (reduction) last
            in_specs=[
                pl.BlockSpec((B, in_dim), lambda j, k: (0, 0)),      # x (resident)
                pl.BlockSpec((in_dim, tk), lambda j, k: (0, k)),     # W1 k-slice
                pl.BlockSpec((1, tk), lambda j, k: (0, k)),          # b1 k-slice
                pl.BlockSpec((tk, tn2), lambda j, k: (k, j)),        # W2 tile
                pl.BlockSpec((1, tn2), lambda j, k: (0, j)),         # b2 j-slice
                pl.BlockSpec((tn2, out_dim), lambda j, k: (j, 0)),   # W3 j-slice
            ],
            out_specs=pl.BlockSpec((1, B, out_dim), lambda j, k: (j, 0, 0)),
            scratch_shapes=[pltpu.VMEM((B, tn2), jnp.float32)],
        ),
        compiler_params=pltpu.CompilerParams(
            dimension_semantics=("parallel", "arbitrary"),
        ),
    )(xb, w1b, b1r, w2b, b2r, w3b)

    # Combine the per-j layer-3 partial contractions and add the final bias.
    out = partials.sum(axis=0) + b3.reshape(1, out_dim).astype(jnp.float32)
    return out


def init_encoder_params(key, in_dim, out_dim):
    """Deterministic f32 master params mimicking PyTorch Linear default init."""
    dims = [(in_dim, 4096), (4096, 1024), (1024, out_dim)]
    params = []
    for fan_in, fan_out in dims:
        key, kw, kb = jax.random.split(key, 3)
        bound = 1.0 / jnp.sqrt(jnp.float32(fan_in))
        w = jax.random.uniform(kw, (fan_in, fan_out), jnp.float32, -bound, bound)
        b = jax.random.uniform(kb, (fan_out,), jnp.float32, -bound, bound)
        params.append((w, b))
    return params


def _reference(params, x):
    """Pure-JAX reference mirroring the kernel's bf16 streaming / f32 accum."""
    (w1, b1), (w2, b2), (w3, b3) = params
    xb = x.astype(jnp.bfloat16)
    w1b, w2b, w3b = (w.astype(jnp.bfloat16) for w in (w1, w2, w3))
    h1 = jnp.maximum(
        jnp.dot(xb, w1b, preferred_element_type=jnp.float32) + b1, 0.0)
    h2 = jnp.dot(h1.astype(jnp.bfloat16), w2b,
                 preferred_element_type=jnp.float32) + b2
    h2 = h2 * jax.nn.sigmoid(h2)
    return jnp.dot(h2.astype(jnp.bfloat16), w3b,
                   preferred_element_type=jnp.float32) + b3


if __name__ == "__main__":
    key = jax.random.PRNGKey(0)
    kp, kx = jax.random.split(key)

    in_dim, out_dim, p = 32, 16, 0.1   # dropout p unused (eval mode identity)
    batch = 8

    params = init_encoder_params(kp, in_dim, out_dim)
    x = jax.random.normal(kx, (batch, in_dim), dtype=jnp.float32)

    out = encoder_forward(params, x)
    jax.block_until_ready(out)
    assert out.shape == (batch, out_dim), out.shape
    assert out.dtype == jnp.float32

    ref = _reference(params, x)
    assert jnp.allclose(out, ref, rtol=1e-2, atol=1e-2), float(
        jnp.max(jnp.abs(out - ref)))

    print("KERNEL_OK")
</pallas_src>

<mosaic_0001>
module attributes {stable_mosaic.version = 11 : i64} {
  func.func @_encoder_kernel(%arg0: i32, %arg1: i32, %arg2: memref<8x32xbf16, #tpu.memory_space<vmem>>, %arg3: memref<32x2048xbf16, #tpu.memory_space<vmem>>, %arg4: memref<1x2048xf32, #tpu.memory_space<vmem>>, %arg5: memref<2048x512xbf16, #tpu.memory_space<vmem>>, %arg6: memref<1x512xf32, #tpu.memory_space<vmem>>, %arg7: memref<512x16xbf16, #tpu.memory_space<vmem>>, %arg8: memref<1x8x16xf32, #tpu.memory_space<vmem>>, %arg9: memref<8x512xf32, #tpu.memory_space<vmem>>) attributes {dimension_semantics = [#tpu.dimension_semantics<parallel>, #tpu.dimension_semantics<arbitrary>], iteration_bounds = array<i64: 2, 2>, scalar_prefetch = 0 : i64, scratch_operands = 1 : i64, tpu.core_type = #tpu.core_type<tc>, window_params = [{pipeline_mode = #tpu.pipeline_mode<synchronous>, transform_indices = @transform_0, window_bounds = array<i64: 8, 32>}, {transform_indices = @transform_1, window_bounds = array<i64: 32, 2048>}, {transform_indices = @transform_2, window_bounds = array<i64: 1, 2048>}, {transform_indices = @transform_3, window_bounds = array<i64: 2048, 512>}, {transform_indices = @transform_4, window_bounds = array<i64: 1, 512>}, {transform_indices = @transform_5, window_bounds = array<i64: 512, 16>}, {transform_indices = @transform_6, window_bounds = array<i64: 1, 8, 16>}]} {
    %c0_i32 = arith.constant 0 : i32
    %0 = arith.cmpi eq, %arg1, %c0_i32 : i32
    %1 = arith.extui %0 : i1 to i32
    %c0_i32_0 = arith.constant 0 : i32
    %2 = arith.cmpi ne, %1, %c0_i32_0 : i32
    scf.if %2 {
      %cst_15 = arith.constant 0.000000e+00 : f32
      %20 = vector.broadcast %cst_15 : f32 to vector<8x512xf32>
      %c0_16 = arith.constant 0 : index
      %c0_17 = arith.constant 0 : index
      %21 = vector.load %arg9[%c0_16, %c0_17] : memref<8x512xf32, #tpu.memory_space<vmem>>, vector<8x512xf32>
      tpu.vector_store %arg9[%c0_16, %c0_17], %20 {strides = array<i32>} : memref<8x512xf32, #tpu.memory_space<vmem>>, vector<8x512xf32>,
    } else {
    }
    %c0 = arith.constant 0 : index
    %c0_1 = arith.constant 0 : index
    %3 = vector.load %arg2[%c0, %c0_1] : memref<8x32xbf16, #tpu.memory_space<vmem>>, vector<8x32xbf16>
    %c0_2 = arith.constant 0 : index
    %c0_3 = arith.constant 0 : index
    %4 = vector.load %arg3[%c0_2, %c0_3] : memref<32x2048xbf16, #tpu.memory_space<vmem>>, vector<32x2048xbf16>
    %cst = arith.constant dense<0.000000e+00> : vector<8x2048xf32>
    %5 = tpu.matmul %3, %4, %cst {dimension_numbers = #tpu.dot_dimension_numbers<[1], [0], [0], [1], [0, 0, 1, 1], [], []>} : vector<8x32xbf16>, vector<32x2048xbf16>, vector<8x2048xf32> -> vector<8x2048xf32>
    %c0_4 = arith.constant 0 : index
    %c0_5 = arith.constant 0 : index
    %6 = vector.load %arg4[%c0_4, %c0_5] : memref<1x2048xf32, #tpu.memory_space<vmem>>, vector<1x2048xf32>
    %7 = vector.broadcast %6 : vector<1x2048xf32> to vector<8x2048xf32>
    %8 = arith.addf %5, %7 : vector<8x2048xf32>
    %cst_6 = arith.constant 0.000000e+00 : f32
    %9 = vector.broadcast %cst_6 : f32 to vector<8x2048xf32>
    %10 = arith.maximumf %8, %9 : vector<8x2048xf32>
    %c0_7 = arith.constant 0 : index
    %c0_8 = arith.constant 0 : index
    %11 = vector.load %arg9[%c0_7, %c0_8] : memref<8x512xf32, #tpu.memory_space<vmem>>, vector<8x512xf32>
    %12 = arith.truncf %10 : vector<8x2048xf32> to vector<8x2048xbf16>
    %c0_9 = arith.constant 0 : index
    %c0_10 = arith.constant 0 : index
    %13 = vector.load %arg5[%c0_9, %c0_10] : memref<2048x512xbf16, #tpu.memory_space<vmem>>, vector<2048x512xbf16>
    %cst_11 = arith.constant dense<0.000000e+00> : vector<8x512xf32>
    %14 = tpu.matmul %12, %13, %cst_11 {dimension_numbers = #tpu.dot_dimension_numbers<[1], [0], [0], [1], [0, 0, 1, 1], [], []>} : vector<8x2048xbf16>, vector<2048x512xbf16>, vector<8x512xf32> -> vector<8x512xf32>
    %15 = arith.addf %11, %14 : vector<8x512xf32>
    %c0_12 = arith.constant 0 : index
    %c0_13 = arith.constant 0 : index
    %16 = vector.load %arg9[%c0_12, %c0_13] : memref<8x512xf32, #tpu.memory_space<vmem>>, vector<8x512xf32>
    tpu.vector_store %arg9[%c0_12, %c0_13], %15 {strides = array<i32>} : memref<8x512xf32, #tpu.memory_space<vmem>>, vector<8x512xf32>,
    %c1_i32 = arith.constant 1 : i32
    %17 = arith.cmpi eq, %arg1, %c1_i32 : i32
    %18 = arith.extui %17 : i1 to i32
    %c0_i32_14 = arith.constant 0 : i32
    %19 = arith.cmpi ne, %18, %c0_i32_14 : i32
    scf.if %19 {
      %c0_15 = arith.constant 0 : index
      %c0_16 = arith.constant 0 : index
      %20 = vector.load %arg9[%c0_15, %c0_16] : memref<8x512xf32, #tpu.memory_space<vmem>>, vector<8x512xf32>
      %c0_17 = arith.constant 0 : index
      %c0_18 = arith.constant 0 : index
      %21 = vector.load %arg6[%c0_17, %c0_18] : memref<1x512xf32, #tpu.memory_space<vmem>>, vector<1x512xf32>
      %22 = vector.broadcast %21 : vector<1x512xf32> to vector<8x512xf32>
      %23 = arith.addf %20, %22 : vector<8x512xf32>
      %24 = arith.negf %23 : vector<8x512xf32>
      %25 = math.exp %24 : vector<8x512xf32>
      %cst_19 = arith.constant 1.000000e+00 : f32
      %26 = vector.broadcast %cst_19 : f32 to vector<8x512xf32>
      %27 = arith.addf %26, %25 : vector<8x512xf32>
      %28 = arith.divf %26, %27 : vector<8x512xf32>
      %29 = arith.mulf %23, %28 : vector<8x512xf32>
      %30 = arith.truncf %29 : vector<8x512xf32> to vector<8x512xbf16>
      %c0_20 = arith.constant 0 : index
      %c0_21 = arith.constant 0 : index
      %31 = vector.load %arg7[%c0_20, %c0_21] : memref<512x16xbf16, #tpu.memory_space<vmem>>, vector<512x16xbf16>
      %cst_22 = arith.constant dense<0.000000e+00> : vector<8x16xf32>
      %32 = tpu.matmul %30, %31, %cst_22 {dimension_numbers = #tpu.dot_dimension_numbers<[1], [0], [0], [1], [0, 0, 1, 1], [], []>} : vector<8x512xbf16>, vector<512x16xbf16>, vector<8x16xf32> -> vector<8x16xf32>
      %33 = vector.shape_cast %32 : vector<8x16xf32> to vector<1x8x16xf32>
      %c0_23 = arith.constant 0 : index
      %c0_24 = arith.constant 0 : index
      %c0_25 = arith.constant 0 : index
      %34 = vector.load %arg8[%c0_23, %c0_24, %c0_25] : memref<1x8x16xf32, #tpu.memory_space<vmem>>, vector<1x8x16xf32>
      tpu.vector_store %arg8[%c0_23, %c0_24, %c0_25], %33 {strides = array<i32>} : memref<1x8x16xf32, #tpu.memory_space<vmem>>, vector<1x8x16xf32>,
    } else {
    }
    return
  }
  func.func @transform_0(%arg0: i32, %arg1: i32) -> (i32, i32) {
    %c0_i32 = arith.constant 0 : i32
    %c0_i32_0 = arith.constant 0 : i32
    %c0_i32_1 = arith.constant 0 : i32
    return %c0_i32, %c0_i32_0 : i32, i32
  }
  func.func @transform_1(%arg0: i32, %arg1: i32) -> (i32, i32) {
    %c0_i32 = arith.constant 0 : i32
    %c0_i32_0 = arith.constant 0 : i32
    return %c0_i32, %arg1 : i32, i32
  }
  func.func @transform_2(%arg0: i32, %arg1: i32) -> (i32, i32) {
    %c0_i32 = arith.constant 0 : i32
    %c0_i32_0 = arith.constant 0 : i32
    return %c0_i32, %arg1 : i32, i32
  }
  func.func @transform_3(%arg0: i32, %arg1: i32) -> (i32, i32) {
    %c0_i32 = arith.constant 0 : i32
    return %arg1, %arg0 : i32, i32
  }
  func.func @transform_4(%arg0: i32, %arg1: i32) -> (i32, i32) {
    %c0_i32 = arith.constant 0 : i32
    %c0_i32_0 = arith.constant 0 : i32
    return %c0_i32, %arg0 : i32, i32
  }
  func.func @transform_5(%arg0: i32, %arg1: i32) -> (i32, i32) {
    %c0_i32 = arith.constant 0 : i32
    %c0_i32_0 = arith.constant 0 : i32
    return %arg0, %c0_i32 : i32, i32
  }
  func.func @transform_6(%arg0: i32, %arg1: i32) -> (i32, i32, i32) {
    %c0_i32 = arith.constant 0 : i32
    %c0_i32_0 = arith.constant 0 : i32
    %c0_i32_1 = arith.constant 0 : i32
    return %arg0, %c0_i32, %c0_i32_0 : i32, i32, i32
  }
}

</mosaic_0001>

<llo_original>
// kernel: tpu_custom_call.1
$region0: #{tpu_custom_call.1}
  #allocation0 [shape = 'u32[]', space=smem, size = 0x4, offset = 0x4, fixed_abs, tag = 'smem constant byte address 0x4 - core index']
  #allocation1 [shape = 'u32[144,128]{1,0:T(1,128)}', space=vmem, size = 0x12000, scoped, tag = 'internal scratch']
  #allocation2 [shape = 'f32[8,512]{1,0:T(8,128)}', space=vmem, size = 0x4000, scoped, tag = 'scratch operand']
  %s0 = inlined_call_operand.hbm [shape: bf16[8,32], index: 0, kind: input, shape index: {}]
  %s1 = inlined_call_operand.hbm [shape: bf16[32,4096], index: 1, kind: input, shape index: {}]
  %s2 = inlined_call_operand.hbm [shape: f32[1,4096], index: 2, kind: input, shape index: {}]
  %s3 = inlined_call_operand.hbm [shape: bf16[4096,1024], index: 3, kind: input, shape index: {}]
  %s4 = inlined_call_operand.hbm [shape: f32[1,1024], index: 4, kind: input, shape index: {}]
  %s5 = inlined_call_operand.vmem [shape: bf16[1024,16], index: 5, kind: input, shape index: {}]
  %s6 = inlined_call_operand.hbm [shape: f32[2,8,16], index: 6, kind: output, shape index: {}]
  %s7 = sld [smem:[#allocation0]]
  $region85: #{tpu_custom_call.1} parent=0
    _
  %s9 = ssub.s32 1, %s7
  %s10 = scalar_select 0, %s9, %s7
  $region1: #{tpu_custom_call.1} parent=0
    #allocation3 [shape = 'u8[2048]{0}', space=vmem, size = 0x800, scoped, tag = 'input window, operand 0, single buffered']
    #allocation4 [shape = 's32[2]{0}', space=sflag, size = 0x8, scoped, tag = 'scoped memory for tpu_custom_call.1']
    #allocation5 [shape = 's32[2]{0}', space=sflag, size = 0x8, scoped, tag = 'scoped memory for tpu_custom_call.1']
    #allocation6 [shape = 'u8[262144]{0}', space=vmem, size = 0x40000, scoped, tag = 'input window, operand 1']
    #allocation7 [shape = 's32[2]{0}', space=sflag, size = 0x8, scoped, tag = 'scoped memory for tpu_custom_call.1']
    #allocation8 [shape = 'u8[16384]{0}', space=vmem, size = 0x4000, scoped, tag = 'input window, operand 2']
    #allocation9 [shape = 'u8[4194304]{0}', space=vmem, size = 0x400000, scoped, tag = 'input window, operand 3']
    #allocation10 [shape = 's32[2]{0}', space=sflag, size = 0x8, scoped, tag = 'scoped memory for tpu_custom_call.1']
    #allocation11 [shape = 'u8[4096]{0}', space=vmem, size = 0x1000, scoped, tag = 'input window, operand 4']
    #allocation12 [shape = 'u8[8192]{0}', space=vmem, size = 0x2000, scoped, tag = 'output window, operand 0']
    %11 = vsyncpa [#allocation4], 0
    %12 = vsyncpa [#allocation7], 0
    %s13 = scalar_lea.sflag [#allocation7], 1
    %14 = vsyncpa %s13, 0
    %15 = vsyncpa [#allocation10], 0
    %s16 = scalar_lea.sflag [#allocation10], 1
    %17 = vsyncpa %s16, 0
    %18 = vsyncpa [#allocation5], 0
    %s19 = scalar_lea.sflag [#allocation5], 1
    %20 = vsyncpa %s19, 0
    loop: start=0, step=1, limit=6
    $region2: #{tpu_custom_call.1} parent=1 // loop_pre_header
      _
    $region3: #{tpu_custom_call.1} parent=1 // loop_header
      %s22 = sphi 0, %s26
      %p23 = scmp.ge.s32.totalorder %s22, 6
      %s29 = sphi 0, %s41
      %s30 = sphi 0, %s37
      %s31 = sphi 0, %s29
      %s32 = sphi 0, %s30
      %s33 = sphi 0, %s31
      %s34 = sphi 0, %s32
      %s42 = sphi 0, %s42
      %s44 = sphi 0, %s42
      %s45 = sphi 0, %s44
      %s59 = sphi 0, %s45
      %s65 = sphi 0, %s67
      %s68 = sphi 0, %s65
      %s69 = sphi 0, %s68
      %s85 = sphi 0, %s69
      %s91 = sphi 0, %s93
      %s94 = sphi 0, %s91
      %s95 = sphi 0, %s94
      %s111 = sphi 0, %s95
      %s119 = sphi 0, %s121
      %s122 = sphi 0, %s119
      %s123 = sphi 0, %s122
      %s139 = sphi 0, %s123
      %s145 = sphi 0, %s147
      %s148 = sphi 0, %s145
      %s149 = sphi 0, %s148
      %s165 = sphi 0, %s149
      %s171 = sphi 0, %s173
      %s174 = sphi 0, %s171
      %s175 = sphi 0, %s174
      %s191 = sphi 0, %s175
      %s197 = sphi 0, %s199
      %s200 = sphi 0, %s197
      %s201 = sphi 0, %s200
      %s217 = sphi 0, %s201
    $region4: #{tpu_custom_call.1} parent=1 // loop_header_branch
      %25 = sbr.rel (%p23) target = $region8
    $region5: #{tpu_custom_call.1} parent=1 // loop_body
      %s27 = ssub.s32 %s22, 1
      %s28 = ssub.s32 %s22, 2
      %s35 = sadd.s32 1, %s30
      %p36 = scmp.ge.s32.totalorder %s35, 2
      %s37 = scalar_select %p36, 0, %s35
      %s38 = sadd.s32 1, %s29
      %s39 = scalar_select %p36, %s38, %s29
      %p40 = scmp.ge.s32.totalorder %s39, 2
      %s41 = scalar_select %p40, 0, %s39
      %s43 = sadd.s32 %s42, 1
      %p46 = scmp.eq.s32.totalorder %s22, 3
      %p47 = scmp.ne.s32.totalorder %s42, %s44
      %p48 = scmp.eq.s32.totalorder %s22, 0
      %p49 = por %p47, %p48
      %p50 = scmp.ne.s32.totalorder %s42, %s44
      %p51 = scmp.eq.s32.totalorder %s27, 3
      %p52 = por %p50, %p51
      %p53 = scmp.ne.s32.totalorder %s44, %s45
      %p54 = scmp.eq.s32.totalorder %s27, 0
      %p55 = por %p53, %p54
      %p56 = scmp.ne.s32.totalorder %s44, %s45
      %p57 = scmp.eq.s32.totalorder %s28, 3
      %p58 = por %p56, %p57
      %p60 = scmp.ne.s32.totalorder %s45, %s59
      %p61 = scmp.eq.s32.totalorder %s28, 0
      %p62 = por %p60, %p61
      %s63 = ssub.s32 %s30, %s37
      %p64 = scmp.eq.s32.totalorder %s63, 0
      %s66 = sadd.s32 %s65, 1
      %s67 = scalar_select %p64, %s65, %s66
      %p70 = pneg %p64
      %p71 = scmp.eq.s32.totalorder %s22, 3
      %p72 = por %p70, %p71
      %p73 = scmp.ne.s32.totalorder %s65, %s68
      %p74 = scmp.eq.s32.totalorder %s22, 0
      %p75 = por %p73, %p74
      %p76 = scmp.ne.s32.totalorder %s65, %s68
      %p77 = scmp.eq.s32.totalorder %s27, 3
      %p78 = por %p76, %p77
      %p79 = scmp.ne.s32.totalorder %s68, %s69
      %p80 = scmp.eq.s32.totalorder %s27, 0
      %p81 = por %p79, %p80
      %p82 = scmp.ne.s32.totalorder %s68, %s69
      %p83 = scmp.eq.s32.totalorder %s28, 3
      %p84 = por %p82, %p83
      %p86 = scmp.ne.s32.totalorder %s69, %s85
      %p87 = scmp.eq.s32.totalorder %s28, 0
      %p88 = por %p86, %p87
      %s89 = ssub.s32 %s30, %s37
      %p90 = scmp.eq.s32.totalorder %s89, 0
      %s92 = sadd.s32 %s91, 1
      %s93 = scalar_select %p90, %s91, %s92
      %p96 = pneg %p90
      %p97 = scmp.eq.s32.totalorder %s22, 3
      %p98 = por %p96, %p97
      %p99 = scmp.ne.s32.totalorder %s91, %s94
      %p100 = scmp.eq.s32.totalorder %s22, 0
      %p101 = por %p99, %p100
      %p102 = scmp.ne.s32.totalorder %s91, %s94
      %p103 = scmp.eq.s32.totalorder %s27, 3
      %p104 = por %p102, %p103
      %p105 = scmp.ne.s32.totalorder %s94, %s95
      %p106 = scmp.eq.s32.totalorder %s27, 0
      %p107 = por %p105, %p106
      %p108 = scmp.ne.s32.totalorder %s94, %s95
      %p109 = scmp.eq.s32.totalorder %s28, 3
      %p110 = por %p108, %p109
      %p112 = scmp.ne.s32.totalorder %s95, %s111
      %p113 = scmp.eq.s32.totalorder %s28, 0
      %p114 = por %p112, %p113
      %s115 = ssub.s32 %s30, %s37
      %s116 = ssub.s32 %s29, %s41
      %s117 = sor.u32 %s115, %s116
      %p118 = scmp.eq.s32.totalorder %s117, 0
      %s120 = sadd.s32 %s119, 1
      %s121 = scalar_select %p118, %s119, %s120
      %p124 = pneg %p118
      %p125 = scmp.eq.s32.totalorder %s22, 3
      %p126 = por %p124, %p125
      %p127 = scmp.ne.s32.totalorder %s119, %s122
      %p128 = scmp.eq.s32.totalorder %s22, 0
      %p129 = por %p127, %p128
      %p130 = scmp.ne.s32.totalorder %s119, %s122
      %p131 = scmp.eq.s32.totalorder %s27, 3
      %p132 = por %p130, %p131
      %p133 = scmp.ne.s32.totalorder %s122, %s123
      %p134 = scmp.eq.s32.totalorder %s27, 0
      %p135 = por %p133, %p134
      %p136 = scmp.ne.s32.totalorder %s122, %s123
      %p137 = scmp.eq.s32.totalorder %s28, 3
      %p138 = por %p136, %p137
      %p140 = scmp.ne.s32.totalorder %s123, %s139
      %p141 = scmp.eq.s32.totalorder %s28, 0
      %p142 = por %p140, %p141
      %s143 = ssub.s32 %s29, %s41
      %p144 = scmp.eq.s32.totalorder %s143, 0
      %s146 = sadd.s32 %s145, 1
      %s147 = scalar_select %p144, %s145, %s146
      %p150 = pneg %p144
      %p151 = scmp.eq.s32.totalorder %s22, 3
      %p152 = por %p150, %p151
      %p153 = scmp.ne.s32.totalorder %s145, %s148
      %p154 = scmp.eq.s32.totalorder %s22, 0
      %p155 = por %p153, %p154
      %p156 = scmp.ne.s32.totalorder %s145, %s148
      %p157 = scmp.eq.s32.totalorder %s27, 3
      %p158 = por %p156, %p157
      %p159 = scmp.ne.s32.totalorder %s148, %s149
      %p160 = scmp.eq.s32.totalorder %s27, 0
      %p161 = por %p159, %p160
      %p162 = scmp.ne.s32.totalorder %s148, %s149
      %p163 = scmp.eq.s32.totalorder %s28, 3
      %p164 = por %p162, %p163
      %p166 = scmp.ne.s32.totalorder %s149, %s165
      %p167 = scmp.eq.s32.totalorder %s28, 0
      %p168 = por %p166, %p167
      %s169 = ssub.s32 %s29, %s41
      %p170 = scmp.eq.s32.totalorder %s169, 0
      %s172 = sadd.s32 %s171, 1
      %s173 = scalar_select %p170, %s171, %s172
      %p176 = pneg %p170
      %p177 = scmp.eq.s32.totalorder %s22, 3
      %p178 = por %p176, %p177
      %p179 = scmp.ne.s32.totalorder %s171, %s174
      %p180 = scmp.eq.s32.totalorder %s22, 0
      %p181 = por %p179, %p180
      %p182 = scmp.ne.s32.totalorder %s171, %s174
      %p183 = scmp.eq.s32.totalorder %s27, 3
      %p184 = por %p182, %p183
      %p185 = scmp.ne.s32.totalorder %s174, %s175
      %p186 = scmp.eq.s32.totalorder %s27, 0
      %p187 = por %p185, %p186
      %p188 = scmp.ne.s32.totalorder %s174, %s175
      %p189 = scmp.eq.s32.totalorder %s28, 3
      %p190 = por %p188, %p189
      %p192 = scmp.ne.s32.totalorder %s175, %s191
      %p193 = scmp.eq.s32.totalorder %s28, 0
      %p194 = por %p192, %p193
      %s195 = ssub.s32 %s29, %s41
      %p196 = scmp.eq.s32.totalorder %s195, 0
      %s198 = sadd.s32 %s197, 1
      %s199 = scalar_select %p196, %s197, %s198
      %p202 = pneg %p196
      %p203 = scmp.eq.s32.totalorder %s22, 3
      %p204 = por %p202, %p203
      %p205 = scmp.ne.s32.totalorder %s197, %s200
      %p206 = scmp.eq.s32.totalorder %s22, 0
      %p207 = por %p205, %p206
      %p208 = scmp.ne.s32.totalorder %s197, %s200
      %p209 = scmp.eq.s32.totalorder %s27, 3
      %p210 = por %p208, %p209
      %p211 = scmp.ne.s32.totalorder %s200, %s201
      %p212 = scmp.eq.s32.totalorder %s27, 0
      %p213 = por %p211, %p212
      %p214 = scmp.ne.s32.totalorder %s200, %s201
      %p215 = scmp.eq.s32.totalorder %s28, 3
      %p216 = por %p214, %p215
      %p218 = scmp.ne.s32.totalorder %s201, %s217
      %p219 = scmp.eq.s32.totalorder %s28, 0
      %p220 = por %p218, %p219
      %p221 = scmp.le.s32.totalorder 1, %s22
      %p222 = scmp.lt.s32.totalorder %s22, 5
      %p223 = pnand %p221, %p222
      %p224 = pneg %p223
      // Predicated region
      $region9: #{tpu_custom_call.1} parent=5 // pred_check
        _
      $region10: #{tpu_custom_call.1} parent=5 // pred_check_branch
        %226 = sbr.rel (%p223) target = $region12
      $region11: #{tpu_custom_call.1} parent=5 // pred_region
        %s227 = ssub.s32 %s22, 1
        // Predicated region
        $region13: #{tpu_custom_call.1} parent=11 // pred_check
          %p228 = pneg %p55
        $region14: #{tpu_custom_call.1} parent=11 // pred_check_branch
          %230 = sbr.rel (%p228) target = $region16
        $region15: #{tpu_custom_call.1} parent=11 // pred_region
          %s232 = ssub.s32 64, 64
          %233 = vsyncadd [#allocation4], %s232
          %s235 = sshll.u32 [#allocation3], 4
          %s236 = int_to_ptr.vmem [resolvable:$true] %s235
          %238 = dma.hbm_to_vmem [thread:$0]  %s0, 64, %s236, [#allocation4]
        $region16: #{tpu_custom_call.1} parent=11 // pred_fallthru
          _
      $region12: #{tpu_custom_call.1} parent=5 // pred_fallthru
        _
      %p239 = scmp.lt.s32.totalorder %s22, 4
      // Predicated region
      $region17: #{tpu_custom_call.1} parent=5 // pred_check
        %p240 = pneg %p239
      $region18: #{tpu_custom_call.1} parent=5 // pred_check_branch
        %242 = sbr.rel (%p240) target = $region20
      $region19: #{tpu_custom_call.1} parent=5 // pred_region
        // Predicated region
        $region21: #{tpu_custom_call.1} parent=19 // pred_check
          %p243 = pneg %p75
        $region22: #{tpu_custom_call.1} parent=19 // pred_check_branch
          %245 = sbr.rel (%p243) target = $region24
        $region23: #{tpu_custom_call.1} parent=19 // pred_region
          %s246 = sand.u32 %s22, 1
          %s247 = scalar_lea.sflag [#allocation7], %s246
          %s248 = sand.u32 %s65, 1
          %s249 = smul.addr %s248, 256
          %s250 = scalar_lea.vmem [#allocation6], %s249
          %s251 = smul.u32 16, %s30
          %s253 = ssub.s32 4096, 4096
          %254 = vsyncadd %s247, %s253
          %s255 = smul.addr %s251, 64
          %s256 = scalar_lea.hbm %s1, %s255
          %s257 = sshll.u32 %s250, 4
          %s258 = int_to_ptr.vmem [resolvable:$true] %s257
          %263 = dma.hbm_to_vmem [thread:$0]  %s256, 4096, %s258, %s247, 2048, 1024, 64
        $region24: #{tpu_custom_call.1} parent=19 // pred_fallthru
          _
        // Predicated region
        $region25: #{tpu_custom_call.1} parent=19 // pred_check
          %p264 = pneg %p101
        $region26: #{tpu_custom_call.1} parent=19 // pred_check_branch
          %266 = sbr.rel (%p264) target = $region28
        $region27: #{tpu_custom_call.1} parent=19 // pred_region
          %s267 = sand.u32 %s22, 1
          %s268 = scalar_lea.sflag [#allocation7], %s267
          %s269 = sand.u32 %s91, 1
          %s270 = smul.addr %s269, 16
          %s271 = scalar_lea.vmem [#allocation8], %s270
          %s272 = smul.u32 16, %s30
          %s274 = ssub.s32 256, 256
          %275 = vsyncadd %s268, %s274
          %s276 = smul.addr %s272, 16
          %s277 = scalar_lea.hbm %s2, %s276
          %s279 = sshll.u32 %s271, 4
          %s280 = int_to_ptr.vmem [resolvable:$true] %s279
          %282 = dma.hbm_to_vmem [thread:$0]  %s277, 256, %s280, %s268
        $region28: #{tpu_custom_call.1} parent=19 // pred_fallthru
          _
        // Predicated region
        $region29: #{tpu_custom_call.1} parent=19 // pred_check
          %p283 = pneg %p129
        $region30: #{tpu_custom_call.1} parent=19 // pred_check_branch
          %285 = sbr.rel (%p283) target = $region32
        $region31: #{tpu_custom_call.1} parent=19 // pred_region
          %s286 = sand.u32 %s22, 1
          %s287 = scalar_lea.sflag [#allocation10], %s286
          %s288 = sand.u32 %s119, 1
          %s289 = smul.addr %s288, 4096
          %s290 = scalar_lea.vmem [#allocation9], %s289
          %s291 = smul.u32 256, %s30
          %s292 = smul.u32 4, %s29
          %s294 = ssub.s32 65536, 65536
          %295 = vsyncadd %s287, %s294
          %s296 = smul.addr %s291, 8
          %s297 = sadd.s32 %s292, %s296
          %s298 = smul.addr %s297, 64
          %s299 = scalar_lea.hbm %s3, %s298
          %s300 = sshll.u32 %s290, 4
          %s301 = int_to_ptr.vmem [resolvable:$true] %s300
          %306 = dma.hbm_to_vmem [thread:$0]  %s299, 65536, %s301, %s287, 512, 256, 16
        $region32: #{tpu_custom_call.1} parent=19 // pred_fallthru
          _
        // Predicated region
        $region33: #{tpu_custom_call.1} parent=19 // pred_check
          %p307 = pneg %p155
        $region34: #{tpu_custom_call.1} parent=19 // pred_check_branch
          %309 = sbr.rel (%p307) target = $region36
        $region35: #{tpu_custom_call.1} parent=19 // pred_region
          %s310 = sand.u32 %s22, 1
          %s311 = scalar_lea.sflag [#allocation10], %s310
          %s312 = sand.u32 %s145, 1
          %s313 = smul.addr %s312, 4
          %s314 = scalar_lea.vmem [#allocation11], %s313
          %s315 = smul.u32 4, %s29
          %s317 = ssub.s32 64, 64
          %318 = vsyncadd %s311, %s317
          %s319 = smul.addr %s315, 16
          %s320 = scalar_lea.hbm %s4, %s319
          %s322 = sshll.u32 %s314, 4
          %s323 = int_to_ptr.vmem [resolvable:$true] %s322
          %325 = dma.hbm_to_vmem [thread:$0]  %s320, 64, %s323, %s311
        $region36: #{tpu_custom_call.1} parent=19 // pred_fallthru
          _
        // Predicated region
        $region37: #{tpu_custom_call.1} parent=19 // pred_check
          %p326 = pneg %p181
        $region38: #{tpu_custom_call.1} parent=19 // pred_check_branch
          %328 = sbr.rel (%p326) target = $region40
        $region39: #{tpu_custom_call.1} parent=19 // pred_region
          %s329 = smul.u32 64, %s29
          %p330 = scmp.lt.s32.totalorder %s329, 127
          %s331 = scalar_select %p330, %s329, 127
          %s332 = smul.addr %s331, 4
          %s333 = scalar_lea.vmem %s5, %s332
          %s334 = smul.u32 64, %s29
        $region40: #{tpu_custom_call.1} parent=19 // pred_fallthru
          _
      $region20: #{tpu_custom_call.1} parent=5 // pred_fallthru
        _
      %p335 = scmp.le.s32.totalorder 1, %s22
      %p336 = scmp.lt.s32.totalorder %s22, 5
      %p337 = pnand %p335, %p336
      %p338 = pneg %p337
      // Predicated region
      $region41: #{tpu_custom_call.1} parent=5 // pred_check
        _
      $region42: #{tpu_custom_call.1} parent=5 // pred_check_branch
        %340 = sbr.rel (%p337) target = $region44
      $region43: #{tpu_custom_call.1} parent=5 // pred_region
        %s341 = ssub.s32 %s22, 1
        // Predicated region
        $region45: #{tpu_custom_call.1} parent=43 // pred_check
          %p342 = pneg %p55
        $region46: #{tpu_custom_call.1} parent=43 // pred_check_branch
          %344 = sbr.rel (%p342) target = $region48
        $region47: #{tpu_custom_call.1} parent=43 // pred_region
          %345 = dma.done [#allocation4], 64
        $region48: #{tpu_custom_call.1} parent=43 // pred_fallthru
          _
        %s346 = sand.u32 %s27, 1
        %s347 = scalar_lea.sflag [#allocation7], %s346
        %s348 = sand.u32 %s68, 1
        %s349 = smul.addr %s348, 256
        %s350 = scalar_lea.vmem [#allocation6], %s349
        // Predicated region
        $region49: #{tpu_custom_call.1} parent=43 // pred_check
          %p351 = pneg %p81
        $region50: #{tpu_custom_call.1} parent=43 // pred_check_branch
          %353 = sbr.rel (%p351) target = $region52
        $region51: #{tpu_custom_call.1} parent=43 // pred_region
          %354 = dma.done %s347, 4096
        $region52: #{tpu_custom_call.1} parent=43 // pred_fallthru
          _
        %s355 = sand.u32 %s27, 1
        %s356 = scalar_lea.sflag [#allocation7], %s355
        %s357 = sand.u32 %s94, 1
        %s358 = smul.addr %s357, 16
        %s359 = scalar_lea.vmem [#allocation8], %s358
        // Predicated region
        $region53: #{tpu_custom_call.1} parent=43 // pred_check
          %p360 = pneg %p107
        $region54: #{tpu_custom_call.1} parent=43 // pred_check_branch
          %362 = sbr.rel (%p360) target = $region56
        $region55: #{tpu_custom_call.1} parent=43 // pred_region
          %363 = dma.done %s356, 256
        $region56: #{tpu_custom_call.1} parent=43 // pred_fallthru
          _
        %s364 = sand.u32 %s27, 1
        %s365 = scalar_lea.sflag [#allocation10], %s364
        %s366 = sand.u32 %s122, 1
        %s367 = smul.addr %s366, 4096
        %s368 = scalar_lea.vmem [#allocation9], %s367
        // Predicated region
        $region57: #{tpu_custom_call.1} parent=43 // pred_check
          %p369 = pneg %p135
        $region58: #{tpu_custom_call.1} parent=43 // pred_check_branch
          %371 = sbr.rel (%p369) target = $region60
        $region59: #{tpu_custom_call.1} parent=43 // pred_region
          %372 = dma.done %s365, 65536
        $region60: #{tpu_custom_call.1} parent=43 // pred_fallthru
          _
        %s373 = sand.u32 %s27, 1
        %s374 = scalar_lea.sflag [#allocation10], %s373
        %s375 = sand.u32 %s148, 1
        %s376 = smul.addr %s375, 4
        %s377 = scalar_lea.vmem [#allocation11], %s376
        // Predicated region
        $region61: #{tpu_custom_call.1} parent=43 // pred_check
          %p378 = pneg %p161
        $region62: #{tpu_custom_call.1} parent=43 // pred_check_branch
          %380 = sbr.rel (%p378) target = $region64
        $region63: #{tpu_custom_call.1} parent=43 // pred_region
          %381 = dma.done %s374, 64
        $region64: #{tpu_custom_call.1} parent=43 // pred_fallthru
          _
        %p382 = pneg %p55
        %p383 = pneg %p52
        %s384 = sand.u32 %s27, 1
        %s385 = scalar_lea.sflag [#allocation7], %s384
        %s386 = sand.u32 %s68, 1
        %s387 = smul.addr %s386, 256
        %s388 = scalar_lea.vmem [#allocation6], %s387
        %p389 = pneg %p81
        %p390 = pneg %p78
        %s391 = sand.u32 %s27, 1
        %s392 = scalar_lea.sflag [#allocation7], %s391
        %s393 = sand.u32 %s94, 1
        %s394 = smul.addr %s393, 16
        %s395 = scalar_lea.vmem [#allocation8], %s394
        %p396 = pneg %p107
        %p397 = pneg %p104
        %s398 = sand.u32 %s27, 1
        %s399 = scalar_lea.sflag [#allocation10], %s398
        %s400 = sand.u32 %s122, 1
        %s401 = smul.addr %s400, 4096
        %s402 = scalar_lea.vmem [#allocation9], %s401
        %p403 = pneg %p135
        %p404 = pneg %p132
        %s405 = sand.u32 %s27, 1
        %s406 = scalar_lea.sflag [#allocation10], %s405
        %s407 = sand.u32 %s148, 1
        %s408 = smul.addr %s407, 4
        %s409 = scalar_lea.vmem [#allocation11], %s408
        %p410 = pneg %p161
        %p411 = pneg %p158
        %s412 = smul.u32 64, %s31
        %p413 = scmp.lt.s32.totalorder %s412, 127
        %s414 = scalar_select %p413, %s412, 127
        %s415 = smul.addr %s414, 4
        %s416 = scalar_lea.vmem %s5, %s415
        %p417 = pneg %p187
        %p418 = pneg %p184
        %p419 = pneg %p213
        %p420 = pneg %p210
        %s421 = sand.u32 %s200, 1
        %s422 = scalar_lea.sflag [#allocation5], %s421
        %s423 = sand.u32 %s200, 1
        %s424 = smul.addr %s423, 8
        %s425 = scalar_lea.vmem [#allocation12], %s424
        %s426 = smul.u32 16, %s32
        %s427 = smul.u32 16, %s32
        %s428 = smul.u32 256, %s32
        %s429 = smul.u32 4, %s31
        %s430 = smul.u32 4, %s31
        %s431 = smul.u32 64, %s31
        %p432 = scmp.lt.s32.totalorder %s431, 127
        %s433 = scalar_select %p432, %s431, 127
        %s434 = smul.addr %s433, 4
        %s435 = scalar_lea.vmem %s5, %s434
        %s436 = smul.u32 64, %s31
        %p438 = scmp.eq.s32.totalorder %s32, 0
        // Predicated region
        $region65: #{tpu_custom_call.1} parent=43 // pred_check
          %p439 = pneg %p438
        $region66: #{tpu_custom_call.1} parent=43 // pred_check_branch
          %441 = sbr.rel (%p439) target = $region68
        $region67: #{tpu_custom_call.1} parent=43 // pred_region
          %442 = vst [vmem:[#allocation2] sm:$0xff] 0.0
          %443 = vst [vmem:[#allocation2 + $0x8] sm:$0xff] 0.0
          %444 = vst [vmem:[#allocation2 + $0x10] sm:$0xff] 0.0
          %445 = vst [vmem:[#allocation2 + $0x18] sm:$0xff] 0.0
        $region68: #{tpu_custom_call.1} parent=43 // pred_fallthru
          _
        %v446 = vld [vmem:[#allocation3] sm:$0xf]
        %v447 = vld [vmem:[%s350] sm:$0xff]
        %v448 = vld [vmem:[%s350 + $0x8] sm:$0xff]
        %v449 = vld [vmem:[%s350 + $0x10] sm:$0xff]
        %v450 = vld [vmem:[%s350 + $0x18] sm:$0xff]
        %v451 = vld [vmem:[%s350 + $0x20] sm:$0xff]
        %v452 = vld [vmem:[%s350 + $0x28] sm:$0xff]
        %v453 = vld [vmem:[%s350 + $0x30] sm:$0xff]
        %v454 = vld [vmem:[%s350 + $0x38] sm:$0xff]
        %v455 = vld [vmem:[%s350 + $0x40] sm:$0xff]
        %v456 = vld [vmem:[%s350 + $0x48] sm:$0xff]
        %v457 = vld [vmem:[%s350 + $0x50] sm:$0xff]
        %v458 = vld [vmem:[%s350 + $0x58] sm:$0xff]
        %v459 = vld [vmem:[%s350 + $0x60] sm:$0xff]
        %v460 = vld [vmem:[%s350 + $0x68] sm:$0xff]
        %v461 = vld [vmem:[%s350 + $0x70] sm:$0xff]
        %v462 = vld [vmem:[%s350 + $0x78] sm:$0xff]
        %v463 = vld [vmem:[%s350 + $0x80] sm:$0xff]
        %v464 = vld [vmem:[%s350 + $0x88] sm:$0xff]
        %v465 = vld [vmem:[%s350 + $0x90] sm:$0xff]
        %v466 = vld [vmem:[%s350 + $0x98] sm:$0xff]
        %v467 = vld [vmem:[%s350 + $0xa0] sm:$0xff]
        %v468 = vld [vmem:[%s350 + $0xa8] sm:$0xff]
        %v469 = vld [vmem:[%s350 + $0xb0] sm:$0xff]
        %v470 = vld [vmem:[%s350 + $0xb8] sm:$0xff]
        %v471 = vld [vmem:[%s350 + $0xc0] sm:$0xff]
        %v472 = vld [vmem:[%s350 + $0xc8] sm:$0xff]
        %v473 = vld [vmem:[%s350 + $0xd0] sm:$0xff]
        %v474 = vld [vmem:[%s350 + $0xd8] sm:$0xff]
        %v475 = vld [vmem:[%s350 + $0xe0] sm:$0xff]
        %v476 = vld [vmem:[%s350 + $0xe8] sm:$0xff]
        %v477 = vld [vmem:[%s350 + $0xf0] sm:$0xff]
        %v478 = vld [vmem:[%s350 + $0xf8] sm:$0xff]
        %v479 = vld [vmem:[%s359] sm:$0xff]
        %v480 = vld [vmem:[%s359 + $0x8] sm:$0xff]
        %v483 = vlaneseq
        %v484 = vshrl.u32 %v483, 7
        %v485 = vsub.s32 0, %v484
        %v486 = vrot.slane %v479, %v485
        %v487 = vlaneseq
        %v488 = vshrl.u32 %v487, 7
        %v489 = vsub.s32 1, %v488
        %v490 = vrot.slane %v479, %v489
        %v491 = vlaneseq
        %v492 = vshrl.u32 %v491, 7
        %v493 = vsub.s32 2, %v492
        %v494 = vrot.slane %v479, %v493
        %v495 = vlaneseq
        %v496 = vshrl.u32 %v495, 7
        %v497 = vsub.s32 3, %v496
        %v498 = vrot.slane %v479, %v497
        %v499 = vlaneseq
        %v500 = vshrl.u32 %v499, 7
        %v501 = vsub.s32 4, %v500
        %v502 = vrot.slane %v479, %v501
        %v503 = vlaneseq
        %v504 = vshrl.u32 %v503, 7
        %v505 = vsub.s32 5, %v504
        %v506 = vrot.slane %v479, %v505
        %v507 = vlaneseq
        %v508 = vshrl.u32 %v507, 7
        %v509 = vsub.s32 6, %v508
        %v510 = vrot.slane %v479, %v509
        %v511 = vlaneseq
        %v512 = vshrl.u32 %v511, 7
        %v513 = vsub.s32 7, %v512
        %v514 = vrot.slane %v479, %v513
        %v515 = vlaneseq
        %v516 = vshrl.u32 %v515, 7
        %v517 = vsub.s32 0, %v516
        %v518 = vrot.slane %v480, %v517
        %v519 = vlaneseq
        %v520 = vshrl.u32 %v519, 7
        %v521 = vsub.s32 1, %v520
        %v522 = vrot.slane %v480, %v521
        %v523 = vlaneseq
        %v524 = vshrl.u32 %v523, 7
        %v525 = vsub.s32 2, %v524
        %v526 = vrot.slane %v480, %v525
        %v527 = vlaneseq
        %v528 = vshrl.u32 %v527, 7
        %v529 = vsub.s32 3, %v528
        %v530 = vrot.slane %v480, %v529
        %v531 = vlaneseq
        %v532 = vshrl.u32 %v531, 7
        %v533 = vsub.s32 4, %v532
        %v534 = vrot.slane %v480, %v533
        %v535 = vlaneseq
        %v536 = vshrl.u32 %v535, 7
        %v537 = vsub.s32 5, %v536
        %v538 = vrot.slane %v480, %v537
        %v539 = vlaneseq
        %v540 = vshrl.u32 %v539, 7
        %v541 = vsub.s32 6, %v540
        %v542 = vrot.slane %v480, %v541
        %v543 = vlaneseq
        %v544 = vshrl.u32 %v543, 7
        %v545 = vsub.s32 7, %v544
        %v546 = vrot.slane %v480, %v545
        %v595 = vunpack.c.l.b16 %v447
        %v596 = vunpack.c.h.b16 %v447
        %v597 = vunpack.c.l.b16 %v448
        %v598 = vunpack.c.h.b16 %v448
        %v599 = vunpack.c.l.b16 %v449
        %v600 = vunpack.c.h.b16 %v449
        %v601 = vunpack.c.l.b16 %v450
        %v602 = vunpack.c.h.b16 %v450
        %v603 = vunpack.c.l.b16 %v451
        %v604 = vunpack.c.h.b16 %v451
        %v605 = vunpack.c.l.b16 %v452
        %v606 = vunpack.c.h.b16 %v452
        %v607 = vunpack.c.l.b16 %v453
        %v608 = vunpack.c.h.b16 %v453
        %v609 = vunpack.c.l.b16 %v454
        %v610 = vunpack.c.h.b16 %v454
        %v611 = vunpack.c.l.b16 %v455
        %v612 = vunpack.c.h.b16 %v455
        %v613 = vunpack.c.l.b16 %v456
        %v614 = vunpack.c.h.b16 %v456
        %v615 = vunpack.c.l.b16 %v457
        %v616 = vunpack.c.h.b16 %v457
        %v617 = vunpack.c.l.b16 %v458
        %v618 = vunpack.c.h.b16 %v458
        %v619 = vunpack.c.l.b16 %v459
        %v620 = vunpack.c.h.b16 %v459
        %v621 = vunpack.c.l.b16 %v460
        %v622 = vunpack.c.h.b16 %v460
        %v623 = vunpack.c.l.b16 %v461
        %v624 = vunpack.c.h.b16 %v461
        %v625 = vunpack.c.l.b16 %v462
        %v626 = vunpack.c.h.b16 %v462
        %v627 = vunpack.c.l.b16 %v463
        %v628 = vunpack.c.h.b16 %v463
        %v629 = vunpack.c.l.b16 %v464
        %v630 = vunpack.c.h.b16 %v464
        %v631 = vunpack.c.l.b16 %v465
        %v632 = vunpack.c.h.b16 %v465
        %v633 = vunpack.c.l.b16 %v466
        %v634 = vunpack.c.h.b16 %v466
        %v635 = vunpack.c.l.b16 %v467
        %v636 = vunpack.c.h.b16 %v467
        %v637 = vunpack.c.l.b16 %v468
        %v638 = vunpack.c.h.b16 %v468
        %v639 = vunpack.c.l.b16 %v469
        %v640 = vunpack.c.h.b16 %v469
        %v641 = vunpack.c.l.b16 %v470
        %v642 = vunpack.c.h.b16 %v470
        %v643 = vunpack.c.l.b16 %v471
        %v644 = vunpack.c.h.b16 %v471
        %v645 = vunpack.c.l.b16 %v472
        %v646 = vunpack.c.h.b16 %v472
        %v647 = vunpack.c.l.b16 %v473
        %v648 = vunpack.c.h.b16 %v473
        %v649 = vunpack.c.l.b16 %v474
        %v650 = vunpack.c.h.b16 %v474
        %v651 = vunpack.c.l.b16 %v475
        %v652 = vunpack.c.h.b16 %v475
        %v653 = vunpack.c.l.b16 %v476
        %v654 = vunpack.c.h.b16 %v476
        %v655 = vunpack.c.l.b16 %v477
        %v656 = vunpack.c.h.b16 %v477
        %v657 = vunpack.c.l.b16 %v478
        %v658 = vunpack.c.h.b16 %v478
        %v659 = vpack.c.b16 %v611, %v595
        %v660 = vpack.c.b16 %v612, %v596
        %v661 = vpack.c.b16 %v613, %v597
        %v662 = vpack.c.b16 %v614, %v598
        %v663 = vpack.c.b16 %v615, %v599
        %v664 = vpack.c.b16 %v616, %v600
        %v665 = vpack.c.b16 %v617, %v601
        %v666 = vpack.c.b16 %v618, %v602
        %v667 = vpack.c.b16 %v619, %v603
        %v668 = vpack.c.b16 %v620, %v604
        %v669 = vpack.c.b16 %v621, %v605
        %v670 = vpack.c.b16 %v622, %v606
        %v671 = vpack.c.b16 %v623, %v607
        %v672 = vpack.c.b16 %v624, %v608
        %v673 = vpack.c.b16 %v625, %v609
        %v674 = vpack.c.b16 %v626, %v610
        %v675 = vpack.c.b16 %v643, %v627
        %v676 = vpack.c.b16 %v644, %v628
        %v677 = vpack.c.b16 %v645, %v629
        %v678 = vpack.c.b16 %v646, %v630
        %v679 = vpack.c.b16 %v647, %v631
        %v680 = vpack.c.b16 %v648, %v632
        %v681 = vpack.c.b16 %v649, %v633
        %v682 = vpack.c.b16 %v650, %v634
        %v683 = vpack.c.b16 %v651, %v635
        %v684 = vpack.c.b16 %v652, %v636
        %v685 = vpack.c.b16 %v653, %v637
        %v686 = vpack.c.b16 %v654, %v638
        %v687 = vpack.c.b16 %v655, %v639
        %v688 = vpack.c.b16 %v656, %v640
        %v689 = vpack.c.b16 %v657, %v641
        %v690 = vpack.c.b16 %v658, %v642
        %vm723 = vcmask 261120
        %v725 = vsel %vm723, %v446, 0
        %727 = vmatprep.subr.bf16.mxu0 %v660
        %728 = vmatpush1.bf16.msra.mxu0 %v659
        %729 = vmatprep.subr.bf16.mxu0 %v676
        %730 = vmatpush1.bf16.msra.mxu0 %v675
        %731 = vmatprep.subr.bf16.mxu0 0
        %732 = vmatpush1.bf16.msra.mxu0 0
        %733 = vmatprep.subr.bf16.mxu0 0
        %734 = vmatpush1.bf16.msra.mxu0 0
        %735 = vmatprep.subr.bf16.mxu0 0
        %736 = vmatpush1.bf16.msra.mxu0 0
        %737 = vmatprep.subr.bf16.mxu0 0
        %738 = vmatpush1.bf16.msra.mxu0 0
        %739 = vmatprep.subr.bf16.mxu0 0
        %740 = vmatpush1.bf16.msra.mxu0 0
        %741 = vmatprep.subr.bf16.mxu0 0
        %742 = vmatpush1.bf16.msra.mxu0 0
        %743 = vmatprep.subr.bf16.mxu0 0
        %744 = vmatpush1.bf16.msra.mxu0 0
        %745 = vmatprep.subr.bf16.mxu0 0
        %746 = vmatpush1.bf16.msra.mxu0 0
        %747 = vmatprep.subr.bf16.mxu0 0
        %748 = vmatpush1.bf16.msra.mxu0 0
        %749 = vmatprep.subr.bf16.mxu0 0
        %750 = vmatpush1.bf16.msra.mxu0 0
        %751 = vmatprep.subr.bf16.mxu0 0
        %752 = vmatpush1.bf16.msra.mxu0 0
        %753 = vmatprep.subr.bf16.mxu0 0
        %754 = vmatpush1.bf16.msra.mxu0 0
        %755 = vmatprep.subr.bf16.mxu0 0
        %756 = vmatpush1.bf16.msra.mxu0 0
        %757 = vmatprep.subr.bf16.mxu0 0
        %758 = vmatpush1.bf16.msra.mxu0 0
        %759 = vmatprep.mubr.bf16.mxu0 0
        %760 = vmatmul.mubr.bf16.gmra.mrb[0].mxu0 %v725
        %v761 = vpop.f32.mrb[0].mxu0
        %v762 = vadd.f32 %v486, %v761
        %v763 = vpop.f32.mrb[0].mxu0
        %v764 = vadd.f32 %v490, %v763
        %v765 = vpop.f32.mrb[0].mxu0
        %v766 = vpop.f32.mrb[0].mxu0
        %767 = vdwg.mxu0
        %768 = vmatprep.subr.bf16.mxu0 %v662
        %769 = vmatpush1.bf16.msra.mxu0 %v661
        %770 = vmatprep.subr.bf16.mxu0 %v678
        %771 = vmatpush1.bf16.msra.mxu0 %v677
        %772 = vmatprep.subr.bf16.mxu0 0
        %773 = vmatpush1.bf16.msra.mxu0 0
        %774 = vmatprep.subr.bf16.mxu0 0
        %775 = vmatpush1.bf16.msra.mxu0 0
        %776 = vmatprep.subr.bf16.mxu0 0
        %777 = vmatpush1.bf16.msra.mxu0 0
        %778 = vmatprep.subr.bf16.mxu0 0
        %779 = vmatpush1.bf16.msra.mxu0 0
        %780 = vmatprep.subr.bf16.mxu0 0
        %781 = vmatpush1.bf16.msra.mxu0 0
        %782 = vmatprep.subr.bf16.mxu0 0
        %783 = vmatpush1.bf16.msra.mxu0 0
        %784 = vmatprep.subr.bf16.mxu0 0
        %785 = vmatpush1.bf16.msra.mxu0 0
        %786 = vmatprep.subr.bf16.mxu0 0
        %787 = vmatpush1.bf16.msra.mxu0 0
        %788 = vmatprep.subr.bf16.mxu0 0
        %789 = vmatpush1.bf16.msra.mxu0 0
        %790 = vmatprep.subr.bf16.mxu0 0
        %791 = vmatpush1.bf16.msra.mxu0 0
        %792 = vmatprep.subr.bf16.mxu0 0
        %793 = vmatpush1.bf16.msra.mxu0 0
        %794 = vmatprep.subr.bf16.mxu0 0
        %795 = vmatpush1.bf16.msra.mxu0 0
        %796 = vmatprep.subr.bf16.mxu0 0
        %797 = vmatpush1.bf16.msra.mxu0 0
        %798 = vmatprep.subr.bf16.mxu0 0
        %799 = vmatpush1.bf16.msra.mxu0 0
        %800 = vmatprep.mubr.bf16.mxu0 0
        %801 = vmatmul.mubr.bf16.gmra.mrb[0].mxu0 %v725
        %v802 = vpop.f32.mrb[0].mxu0
        %v803 = vadd.f32 %v494, %v802
        %v804 = vpop.f32.mrb[0].mxu0
        %v805 = vadd.f32 %v498, %v804
        %v806 = vpop.f32.mrb[0].mxu0
        %v807 = vpop.f32.mrb[0].mxu0
        %808 = vdwg.mxu0
        %809 = vmatprep.subr.bf16.mxu0 %v664
        %810 = vmatpush1.bf16.msra.mxu0 %v663
        %811 = vmatprep.subr.bf16.mxu0 %v680
        %812 = vmatpush1.bf16.msra.mxu0 %v679
        %813 = vmatprep.subr.bf16.mxu0 0
        %814 = vmatpush1.bf16.msra.mxu0 0
        %815 = vmatprep.subr.bf16.mxu0 0
        %816 = vmatpush1.bf16.msra.mxu0 0
        %817 = vmatprep.subr.bf16.mxu0 0
        %818 = vmatpush1.bf16.msra.mxu0 0
        %819 = vmatprep.subr.bf16.mxu0 0
        %820 = vmatpush1.bf16.msra.mxu0 0
        %821 = vmatprep.subr.bf16.mxu0 0
        %822 = vmatpush1.bf16.msra.mxu0 0
        %823 = vmatprep.subr.bf16.mxu0 0
        %824 = vmatpush1.bf16.msra.mxu0 0
        %825 = vmatprep.subr.bf16.mxu0 0
        %826 = vmatpush1.bf16.msra.mxu0 0
        %827 = vmatprep.subr.bf16.mxu0 0
        %828 = vmatpush1.bf16.msra.mxu0 0
        %829 = vmatprep.subr.bf16.mxu0 0
        %830 = vmatpush1.bf16.msra.mxu0 0
        %831 = vmatprep.subr.bf16.mxu0 0
        %832 = vmatpush1.bf16.msra.mxu0 0
        %833 = vmatprep.subr.bf16.mxu0 0
        %834 = vmatpush1.bf16.msra.mxu0 0
        %835 = vmatprep.subr.bf16.mxu0 0
        %836 = vmatpush1.bf16.msra.mxu0 0
        %837 = vmatprep.subr.bf16.mxu0 0
        %838 = vmatpush1.bf16.msra.mxu0 0
        %839 = vmatprep.subr.bf16.mxu0 0
        %840 = vmatpush1.bf16.msra.mxu0 0
        %841 = vmatprep.mubr.bf16.mxu0 0
        %842 = vmatmul.mubr.bf16.gmra.mrb[0].mxu0 %v725
        %v843 = vpop.f32.mrb[0].mxu0
        %v844 = vadd.f32 %v502, %v843
        %v845 = vpop.f32.mrb[0].mxu0
        %v846 = vadd.f32 %v506, %v845
        %v847 = vpop.f32.mrb[0].mxu0
        %v848 = vpop.f32.mrb[0].mxu0
        %849 = vdwg.mxu0
        %850 = vmatprep.subr.bf16.mxu0 %v666
        %851 = vmatpush1.bf16.msra.mxu0 %v665
        %852 = vmatprep.subr.bf16.mxu0 %v682
        %853 = vmatpush1.bf16.msra.mxu0 %v681
        %854 = vmatprep.subr.bf16.mxu0 0
        %855 = vmatpush1.bf16.msra.mxu0 0
        %856 = vmatprep.subr.bf16.mxu0 0
        %857 = vmatpush1.bf16.msra.mxu0 0
        %858 = vmatprep.subr.bf16.mxu0 0
        %859 = vmatpush1.bf16.msra.mxu0 0
        %860 = vmatprep.subr.bf16.mxu0 0
        %861 = vmatpush1.bf16.msra.mxu0 0
        %862 = vmatprep.subr.bf16.mxu0 0
        %863 = vmatpush1.bf16.msra.mxu0 0
        %864 = vmatprep.subr.bf16.mxu0 0
        %865 = vmatpush1.bf16.msra.mxu0 0
        %866 = vmatprep.subr.bf16.mxu0 0
        %867 = vmatpush1.bf16.msra.mxu0 0
        %868 = vmatprep.subr.bf16.mxu0 0
        %869 = vmatpush1.bf16.msra.mxu0 0
        %870 = vmatprep.subr.bf16.mxu0 0
        %871 = vmatpush1.bf16.msra.mxu0 0
        %872 = vmatprep.subr.bf16.mxu0 0
        %873 = vmatpush1.bf16.msra.mxu0 0
        %874 = vmatprep.subr.bf16.mxu0 0
        %875 = vmatpush1.bf16.msra.mxu0 0
        %876 = vmatprep.subr.bf16.mxu0 0
        %877 = vmatpush1.bf16.msra.mxu0 0
        %878 = vmatprep.subr.bf16.mxu0 0
        %879 = vmatpush1.bf16.msra.mxu0 0
        %880 = vmatprep.subr.bf16.mxu0 0
        %881 = vmatpush1.bf16.msra.mxu0 0
        %882 = vmatprep.mubr.bf16.mxu0 0
        %883 = vmatmul.mubr.bf16.gmra.mrb[0].mxu0 %v725
        %v884 = vpop.f32.mrb[0].mxu0
        %v885 = vadd.f32 %v510, %v884
        %v886 = vpop.f32.mrb[0].mxu0
        %v887 = vadd.f32 %v514, %v886
        %v888 = vpop.f32.mrb[0].mxu0
        %v889 = vpop.f32.mrb[0].mxu0
        %890 = vdwg.mxu0
        %891 = vmatprep.subr.bf16.mxu0 %v668
        %892 = vmatpush1.bf16.msra.mxu0 %v667
        %893 = vmatprep.subr.bf16.mxu0 %v684
        %894 = vmatpush1.bf16.msra.mxu0 %v683
        %895 = vmatprep.subr.bf16.mxu0 0
        %896 = vmatpush1.bf16.msra.mxu0 0
        %897 = vmatprep.subr.bf16.mxu0 0
        %898 = vmatpush1.bf16.msra.mxu0 0
        %899 = vmatprep.subr.bf16.mxu0 0
        %900 = vmatpush1.bf16.msra.mxu0 0
        %901 = vmatprep.subr.bf16.mxu0 0
        %902 = vmatpush1.bf16.msra.mxu0 0
        %903 = vmatprep.subr.bf16.mxu0 0
        %904 = vmatpush1.bf16.msra.mxu0 0
        %905 = vmatprep.subr.bf16.mxu0 0
        %906 = vmatpush1.bf16.msra.mxu0 0
        %907 = vmatprep.subr.bf16.mxu0 0
        %908 = vmatpush1.bf16.msra.mxu0 0
        %909 = vmatprep.subr.bf16.mxu0 0
        %910 = vmatpush1.bf16.msra.mxu0 0
        %911 = vmatprep.subr.bf16.mxu0 0
        %912 = vmatpush1.bf16.msra.mxu0 0
        %913 = vmatprep.subr.bf16.mxu0 0
        %914 = vmatpush1.bf16.msra.mxu0 0
        %915 = vmatprep.subr.bf16.mxu0 0
        %916 = vmatpush1.bf16.msra.mxu0 0
        %917 = vmatprep.subr.bf16.mxu0 0
        %918 = vmatpush1.bf16.msra.mxu0 0
        %919 = vmatprep.subr.bf16.mxu0 0
        %920 = vmatpush1.bf16.msra.mxu0 0
        %921 = vmatprep.subr.bf16.mxu0 0
        %922 = vmatpush1.bf16.msra.mxu0 0
        %923 = vmatprep.mubr.bf16.mxu0 0
        %924 = vmatmul.mubr.bf16.gmra.mrb[0].mxu0 %v725
        %v925 = vpop.f32.mrb[0].mxu0
        %v926 = vadd.f32 %v518, %v925
        %v927 = vpop.f32.mrb[0].mxu0
        %v928 = vadd.f32 %v522, %v927
        %v929 = vpop.f32.mrb[0].mxu0
        %v930 = vpop.f32.mrb[0].mxu0
        %931 = vdwg.mxu0
        %932 = vmatprep.subr.bf16.mxu0 %v670
        %933 = vmatpush1.bf16.msra.mxu0 %v669
        %934 = vmatprep.subr.bf16.mxu0 %v686
        %935 = vmatpush1.bf16.msra.mxu0 %v685
        %936 = vmatprep.subr.bf16.mxu0 0
        %937 = vmatpush1.bf16.msra.mxu0 0
        %938 = vmatprep.subr.bf16.mxu0 0
        %939 = vmatpush1.bf16.msra.mxu0 0
        %940 = vmatprep.subr.bf16.mxu0 0
        %941 = vmatpush1.bf16.msra.mxu0 0
        %942 = vmatprep.subr.bf16.mxu0 0
        %943 = vmatpush1.bf16.msra.mxu0 0
        %944 = vmatprep.subr.bf16.mxu0 0
        %945 = vmatpush1.bf16.msra.mxu0 0
        %946 = vmatprep.subr.bf16.mxu0 0
        %947 = vmatpush1.bf16.msra.mxu0 0
        %948 = vmatprep.subr.bf16.mxu0 0
        %949 = vmatpush1.bf16.msra.mxu0 0
        %950 = vmatprep.subr.bf16.mxu0 0
        %951 = vmatpush1.bf16.msra.mxu0 0
        %952 = vmatprep.subr.bf16.mxu0 0
        %953 = vmatpush1.bf16.msra.mxu0 0
        %954 = vmatprep.subr.bf16.mxu0 0
        %955 = vmatpush1.bf16.msra.mxu0 0
        %956 = vmatprep.subr.bf16.mxu0 0
        %957 = vmatpush1.bf16.msra.mxu0 0
        %958 = vmatprep.subr.bf16.mxu0 0
        %959 = vmatpush1.bf16.msra.mxu0 0
        %960 = vmatprep.subr.bf16.mxu0 0
        %961 = vmatpush1.bf16.msra.mxu0 0
        %962 = vmatprep.subr.bf16.mxu0 0
        %963 = vmatpush1.bf16.msra.mxu0 0
        %964 = vmatprep.mubr.bf16.mxu0 0
        %965 = vmatmul.mubr.bf16.gmra.mrb[0].mxu0 %v725
        %v966 = vpop.f32.mrb[0].mxu0
        %v967 = vadd.f32 %v526, %v966
        %v968 = vpop.f32.mrb[0].mxu0
        %v969 = vadd.f32 %v530, %v968
        %v970 = vpop.f32.mrb[0].mxu0
        %v971 = vpop.f32.mrb[0].mxu0
        %972 = vdwg.mxu0
        %973 = vmatprep.subr.bf16.mxu0 %v672
        %974 = vmatpush1.bf16.msra.mxu0 %v671
        %975 = vmatprep.subr.bf16.mxu0 %v688
        %976 = vmatpush1.bf16.msra.mxu0 %v687
        %977 = vmatprep.subr.bf16.mxu0 0
        %978 = vmatpush1.bf16.msra.mxu0 0
        %979 = vmatprep.subr.bf16.mxu0 0
        %980 = vmatpush1.bf16.msra.mxu0 0
        %981 = vmatprep.subr.bf16.mxu0 0
        %982 = vmatpush1.bf16.msra.mxu0 0
        %983 = vmatprep.subr.bf16.mxu0 0
        %984 = vmatpush1.bf16.msra.mxu0 0
        %985 = vmatprep.subr.bf16.mxu0 0
        %986 = vmatpush1.bf16.msra.mxu0 0
        %987 = vmatprep.subr.bf16.mxu0 0
        %988 = vmatpush1.bf16.msra.mxu0 0
        %989 = vmatprep.subr.bf16.mxu0 0
        %990 = vmatpush1.bf16.msra.mxu0 0
        %991 = vmatprep.subr.bf16.mxu0 0
        %992 = vmatpush1.bf16.msra.mxu0 0
        %993 = vmatprep.subr.bf16.mxu0 0
        %994 = vmatpush1.bf16.msra.mxu0 0
        %995 = vmatprep.subr.bf16.mxu0 0
        %996 = vmatpush1.bf16.msra.mxu0 0
        %997 = vmatprep.subr.bf16.mxu0 0
        %998 = vmatpush1.bf16.msra.mxu0 0
        %999 = vmatprep.subr.bf16.mxu0 0
        %1000 = vmatpush1.bf16.msra.mxu0 0
        %1001 = vmatprep.subr.bf16.mxu0 0
        %1002 = vmatpush1.bf16.msra.mxu0 0
        %1003 = vmatprep.subr.bf16.mxu0 0
        %1004 = vmatpush1.bf16.msra.mxu0 0
        %1005 = vmatprep.mubr.bf16.mxu0 0
        %1006 = vmatmul.mubr.bf16.gmra.mrb[0].mxu0 %v725
        %v1007 = vpop.f32.mrb[0].mxu0
        %v1008 = vadd.f32 %v534, %v1007
        %v1009 = vpop.f32.mrb[0].mxu0
        %v1010 = vadd.f32 %v538, %v1009
        %v1011 = vpop.f32.mrb[0].mxu0
        %v1012 = vpop.f32.mrb[0].mxu0
        %1013 = vdwg.mxu0
        %1014 = vmatprep.subr.bf16.mxu0 %v674
        %1015 = vmatpush1.bf16.msra.mxu0 %v673
        %1016 = vmatprep.subr.bf16.mxu0 %v690
        %1017 = vmatpush1.bf16.msra.mxu0 %v689
        %1018 = vmatprep.subr.bf16.mxu0 0
        %1019 = vmatpush1.bf16.msra.mxu0 0
        %1020 = vmatprep.subr.bf16.mxu0 0
        %1021 = vmatpush1.bf16.msra.mxu0 0
        %1022 = vmatprep.subr.bf16.mxu0 0
        %1023 = vmatpush1.bf16.msra.mxu0 0
        %1024 = vmatprep.subr.bf16.mxu0 0
        %1025 = vmatpush1.bf16.msra.mxu0 0
        %1026 = vmatprep.subr.bf16.mxu0 0
        %1027 = vmatpush1.bf16.msra.mxu0 0
        %1028 = vmatprep.subr.bf16.mxu0 0
        %1029 = vmatpush1.bf16.msra.mxu0 0
        %1030 = vmatprep.subr.bf16.mxu0 0
        %1031 = vmatpush1.bf16.msra.mxu0 0
        %1032 = vmatprep.subr.bf16.mxu0 0
        %1033 = vmatpush1.bf16.msra.mxu0 0
        %1034 = vmatprep.subr.bf16.mxu0 0
        %1035 = vmatpush1.bf16.msra.mxu0 0
        %1036 = vmatprep.subr.bf16.mxu0 0
        %1037 = vmatpush1.bf16.msra.mxu0 0
        %1038 = vmatprep.subr.bf16.mxu0 0
        %1039 = vmatpush1.bf16.msra.mxu0 0
        %1040 = vmatprep.subr.bf16.mxu0 0
        %1041 = vmatpush1.bf16.msra.mxu0 0
        %1042 = vmatprep.subr.bf16.mxu0 0
        %1043 = vmatpush1.bf16.msra.mxu0 0
        %1044 = vmatprep.subr.bf16.mxu0 0
        %1045 = vmatpush1.bf16.msra.mxu0 0
        %1046 = vmatprep.mubr.bf16.mxu0 0
        %1047 = vmatmul.mubr.bf16.gmra.mrb[0].mxu0 %v725
        %v1048 = vpop.f32.mrb[0].mxu0
        %v1049 = vadd.f32 %v542, %v1048
        %v1050 = vpop.f32.mrb[0].mxu0
        %v1051 = vadd.f32 %v546, %v1050
        %v1052 = vpop.f32.mrb[0].mxu0
        %v1053 = vpop.f32.mrb[0].mxu0
        %1054 = vdwg.mxu0
        %v1055 = vmax.f32 %v762, 0.0
        %v1056 = vmax.f32 %v764, 0.0
        %v1057 = vmax.f32 %v803, 0.0
        %v1058 = vmax.f32 %v805, 0.0
        %v1059 = vmax.f32 %v844, 0.0
        %v1060 = vmax.f32 %v846, 0.0
        %v1061 = vmax.f32 %v885, 0.0
        %v1062 = vmax.f32 %v887, 0.0
        %v1063 = vmax.f32 %v926, 0.0
        %v1064 = vmax.f32 %v928, 0.0
        %v1065 = vmax.f32 %v967, 0.0
        %v1066 = vmax.f32 %v969, 0.0
        %v1067 = vmax.f32 %v1008, 0.0
        %v1068 = vmax.f32 %v1010, 0.0
        %v1069 = vmax.f32 %v1049, 0.0
        %v1070 = vmax.f32 %v1051, 0.0
        %v1071 = vld [vmem:[#allocation2] sm:$0xff]
        %v1072 = vld [vmem:[#allocation2 + $0x8] sm:$0xff]
        %v1073 = vld [vmem:[#allocation2 + $0x10] sm:$0xff]
        %v1074 = vld [vmem:[#allocation2 + $0x18] sm:$0xff]
        %v1075 = vpack.c.bf16 %v1055, %v1055
        %v1076 = vpack.c.bf16 %v1056, %v1056
        %v1077 = vpack.c.bf16 %v1057, %v1057
        %v1078 = vpack.c.bf16 %v1058, %v1058
        %v1079 = vpack.c.bf16 %v1059, %v1059
        %v1080 = vpack.c.bf16 %v1060, %v1060
        %v1081 = vpack.c.bf16 %v1061, %v1061
        %v1082 = vpack.c.bf16 %v1062, %v1062
        %v1083 = vpack.c.bf16 %v1063, %v1063
        %v1084 = vpack.c.bf16 %v1064, %v1064
        %v1085 = vpack.c.bf16 %v1065, %v1065
        %v1086 = vpack.c.bf16 %v1066, %v1066
        %v1087 = vpack.c.bf16 %v1067, %v1067
        %v1088 = vpack.c.bf16 %v1068, %v1068
        %v1089 = vpack.c.bf16 %v1069, %v1069
        %v1090 = vpack.c.bf16 %v1070, %v1070
        %v1091 = vld [vmem:[%s368] sm:$0xff]
        %v1092 = vld [vmem:[%s368 + $0x8] sm:$0xff]
        %v1093 = vld [vmem:[%s368 + $0x10] sm:$0xff]
        %v1094 = vld [vmem:[%s368 + $0x18] sm:$0xff]
        %v1095 = vld [vmem:[%s368 + $0x20] sm:$0xff]
        %v1096 = vld [vmem:[%s368 + $0x28] sm:$0xff]
        %v1097 = vld [vmem:[%s368 + $0x30] sm:$0xff]
        %v1098 = vld [vmem:[%s368 + $0x38] sm:$0xff]
        %v1099 = vld [vmem:[%s368 + $0x40] sm:$0xff]
        %v1100 = vld [vmem:[%s368 + $0x48] sm:$0xff]
        %v1101 = vld [vmem:[%s368 + $0x50] sm:$0xff]
        %v1102 = vld [vmem:[%s368 + $0x58] sm:$0xff]
        %v1103 = vld [vmem:[%s368 + $0x60] sm:$0xff]
        %v1104 = vld [vmem:[%s368 + $0x68] sm:$0xff]
        %v1105 = vld [vmem:[%s368 + $0x70] sm:$0xff]
        %v1106 = vld [vmem:[%s368 + $0x78] sm:$0xff]
        %v1107 = vld [vmem:[%s368 + $0x80] sm:$0xff]
        %v1108 = vld [vmem:[%s368 + $0x88] sm:$0xff]
        %v1109 = vld [vmem:[%s368 + $0x90] sm:$0xff]
        %v1110 = vld [vmem:[%s368 + $0x98] sm:$0xff]
        %v1111 = vld [vmem:[%s368 + $0xa0] sm:$0xff]
        %v1112 = vld [vmem:[%s368 + $0xa8] sm:$0xff]
        %v1113 = vld [vmem:[%s368 + $0xb0] sm:$0xff]
        %v1114 = vld [vmem:[%s368 + $0xb8] sm:$0xff]
        %v1115 = vld [vmem:[%s368 + $0xc0] sm:$0xff]
        %v1116 = vld [vmem:[%s368 + $0xc8] sm:$0xff]
        %v1117 = vld [vmem:[%s368 + $0xd0] sm:$0xff]
        %v1118 = vld [vmem:[%s368 + $0xd8] sm:$0xff]
        %v1119 = vld [vmem:[%s368 + $0xe0] sm:$0xff]
        %v1120 = vld [vmem:[%s368 + $0xe8] sm:$0xff]
        %v1121 = vld [vmem:[%s368 + $0xf0] sm:$0xff]
        %v1122 = vld [vmem:[%s368 + $0xf8] sm:$0xff]
        %v1123 = vld [vmem:[%s368 + $0x100] sm:$0xff]
        %v1124 = vld [vmem:[%s368 + $0x108] sm:$0xff]
        %v1125 = vld [vmem:[%s368 + $0x110] sm:$0xff]
        %v1126 = vld [vmem:[%s368 + $0x118] sm:$0xff]
        %v1127 = vld [vmem:[%s368 + $0x120] sm:$0xff]
        %v1128 = vld [vmem:[%s368 + $0x128] sm:$0xff]
        %v1129 = vld [vmem:[%s368 + $0x130] sm:$0xff]
        %v1130 = vld [vmem:[%s368 + $0x138] sm:$0xff]
        %v1131 = vld [vmem:[%s368 + $0x140] sm:$0xff]
        %v1132 = vld [vmem:[%s368 + $0x148] sm:$0xff]
        %v1133 = vld [vmem:[%s368 + $0x150] sm:$0xff]
        %v1134 = vld [vmem:[%s368 + $0x158] sm:$0xff]
        %v1135 = vld [vmem:[%s368 + $0x160] sm:$0xff]
        %v1136 = vld [vmem:[%s368 + $0x168] sm:$0xff]
        %v1137 = vld [vmem:[%s368 + $0x170] sm:$0xff]
        %v1138 = vld [vmem:[%s368 + $0x178] sm:$0xff]
        %v1139 = vld [vmem:[%s368 + $0x180] sm:$0xff]
        %v1140 = vld [vmem:[%s368 + $0x188] sm:$0xff]
        %v1141 = vld [vmem:[%s368 + $0x190] sm:$0xff]
        %v1142 = vld [vmem:[%s368 + $0x198] sm:$0xff]
        %v1143 = vld [vmem:[%s368 + $0x1a0] sm:$0xff]
        %v1144 = vld [vmem:[%s368 + $0x1a8] sm:$0xff]
        %v1145 = vld [vmem:[%s368 + $0x1b0] sm:$0xff]
        %v1146 = vld [vmem:[%s368 + $0x1b8] sm:$0xff]
        %v1147 = vld [vmem:[%s368 + $0x1c0] sm:$0xff]
        %v1148 = vld [vmem:[%s368 + $0x1c8] sm:$0xff]
        %v1149 = vld [vmem:[%s368 + $0x1d0] sm:$0xff]
        %v1150 = vld [vmem:[%s368 + $0x1d8] sm:$0xff]
        %v1151 = vld [vmem:[%s368 + $0x1e0] sm:$0xff]
        %v1152 = vld [vmem:[%s368 + $0x1e8] sm:$0xff]
        %v1153 = vld [vmem:[%s368 + $0x1f0] sm:$0xff]
        %v1154 = vld [vmem:[%s368 + $0x1f8] sm:$0xff]
        %v1155 = vld [vmem:[%s368 + $0x200] sm:$0xff]
        %v1156 = vld [vmem:[%s368 + $0x208] sm:$0xff]
        %v1157 = vld [vmem:[%s368 + $0x210] sm:$0xff]
        %v1158 = vld [vmem:[%s368 + $0x218] sm:$0xff]
        %v1159 = vld [vmem:[%s368 + $0x220] sm:$0xff]
        %v1160 = vld [vmem:[%s368 + $0x228] sm:$0xff]
        %v1161 = vld [vmem:[%s368 + $0x230] sm:$0xff]
        %v1162 = vld [vmem:[%s368 + $0x238] sm:$0xff]
        %v1163 = vld [vmem:[%s368 + $0x240] sm:$0xff]
        %v1164 = vld [vmem:[%s368 + $0x248] sm:$0xff]
        %v1165 = vld [vmem:[%s368 + $0x250] sm:$0xff]
        %v1166 = vld [vmem:[%s368 + $0x258] sm:$0xff]
        %v1167 = vld [vmem:[%s368 + $0x260] sm:$0xff]
        %v1168 = vld [vmem:[%s368 + $0x268] sm:$0xff]
        %v1169 = vld [vmem:[%s368 + $0x270] sm:$0xff]
        %v1170 = vld [vmem:[%s368 + $0x278] sm:$0xff]
        %v1171 = vld [vmem:[%s368 + $0x280] sm:$0xff]
        %v1172 = vld [vmem:[%s368 + $0x288] sm:$0xff]
        %v1173 = vld [vmem:[%s368 + $0x290] sm:$0xff]
        %v1174 = vld [vmem:[%s368 + $0x298] sm:$0xff]
        %v1175 = vld [vmem:[%s368 + $0x2a0] sm:$0xff]
        %v1176 = vld [vmem:[%s368 + $0x2a8] sm:$0xff]
        %v1177 = vld [vmem:[%s368 + $0x2b0] sm:$0xff]
        %v1178 = vld [vmem:[%s368 + $0x2b8] sm:$0xff]
        %v1179 = vld [vmem:[%s368 + $0x2c0] sm:$0xff]
        %v1180 = vld [vmem:[%s368 + $0x2c8] sm:$0xff]
        %v1181 = vld [vmem:[%s368 + $0x2d0] sm:$0xff]
        %v1182 = vld [vmem:[%s368 + $0x2d8] sm:$0xff]
        %v1183 = vld [vmem:[%s368 + $0x2e0] sm:$0xff]
        %v1184 = vld [vmem:[%s368 + $0x2e8] sm:$0xff]
        %v1185 = vld [vmem:[%s368 + $0x2f0] sm:$0xff]
        %v1186 = vld [vmem:[%s368 + $0x2f8] sm:$0xff]
        %v1187 = vld [vmem:[%s368 + $0x300] sm:$0xff]
        %v1188 = vld [vmem:[%s368 + $0x308] sm:$0xff]
        %v1189 = vld [vmem:[%s368 + $0x310] sm:$0xff]
        %v1190 = vld [vmem:[%s368 + $0x318] sm:$0xff]
        %v1191 = vld [vmem:[%s368 + $0x320] sm:$0xff]
        %v1192 = vld [vmem:[%s368 + $0x328] sm:$0xff]
        %v1193 = vld [vmem:[%s368 + $0x330] sm:$0xff]
        %v1194 = vld [vmem:[%s368 + $0x338] sm:$0xff]
        %v1195 = vld [vmem:[%s368 + $0x340] sm:$0xff]
        %v1196 = vld [vmem:[%s368 + $0x348] sm:$0xff]
        %v1197 = vld [vmem:[%s368 + $0x350] sm:$0xff]
        %v1198 = vld [vmem:[%s368 + $0x358] sm:$0xff]
        %v1199 = vld [vmem:[%s368 + $0x360] sm:$0xff]
        %v1200 = vld [vmem:[%s368 + $0x368] sm:$0xff]
        %v1201 = vld [vmem:[%s368 + $0x370] sm:$0xff]
        %v1202 = vld [vmem:[%s368 + $0x378] sm:$0xff]
        %v1203 = vld [vmem:[%s368 + $0x380] sm:$0xff]
        %v1204 = vld [vmem:[%s368 + $0x388] sm:$0xff]
        %v1205 = vld [vmem:[%s368 + $0x390] sm:$0xff]
        %v1206 = vld [vmem:[%s368 + $0x398] sm:$0xff]
        %v1207 = vld [vmem:[%s368 + $0x3a0] sm:$0xff]
        %v1208 = vld [vmem:[%s368 + $0x3a8] sm:$0xff]
        %v1209 = vld [vmem:[%s368 + $0x3b0] sm:$0xff]
        %v1210 = vld [vmem:[%s368 + $0x3b8] sm:$0xff]
        %v1211 = vld [vmem:[%s368 + $0x3c0] sm:$0xff]
        %v1212 = vld [vmem:[%s368 + $0x3c8] sm:$0xff]
        %v1213 = vld [vmem:[%s368 + $0x3d0] sm:$0xff]
        %v1214 = vld [vmem:[%s368 + $0x3d8] sm:$0xff]
        %v1215 = vld [vmem:[%s368 + $0x3e0] sm:$0xff]
        %v1216 = vld [vmem:[%s368 + $0x3e8] sm:$0xff]
        %v1217 = vld [vmem:[%s368 + $0x3f0] sm:$0xff]
        %v1218 = vld [vmem:[%s368 + $0x3f8] sm:$0xff]
        %v1219 = vld [vmem:[%s368 + $0x400] sm:$0xff]
        %v1220 = vld [vmem:[%s368 + $0x408] sm:$0xff]
        %v1221 = vld [vmem:[%s368 + $0x410] sm:$0xff]
        %v1222 = vld [vmem:[%s368 + $0x418] sm:$0xff]
        %v1223 = vld [vmem:[%s368 + $0x420] sm:$0xff]
        %v1224 = vld [vmem:[%s368 + $0x428] sm:$0xff]
        %v1225 = vld [vmem:[%s368 + $0x430] sm:$0xff]
        %v1226 = vld [vmem:[%s368 + $0x438] sm:$0xff]
        %v1227 = vld [vmem:[%s368 + $0x440] sm:$0xff]
        %v1228 = vld [vmem:[%s368 + $0x448] sm:$0xff]
        %v1229 = vld [vmem:[%s368 + $0x450] sm:$0xff]
        %v1230 = vld [vmem:[%s368 + $0x458] sm:$0xff]
        %v1231 = vld [vmem:[%s368 + $0x460] sm:$0xff]
        %v1232 = vld [vmem:[%s368 + $0x468] sm:$0xff]
        %v1233 = vld [vmem:[%s368 + $0x470] sm:$0xff]
        %v1234 = vld [vmem:[%s368 + $0x478] sm:$0xff]
        %v1235 = vld [vmem:[%s368 + $0x480] sm:$0xff]
        %v1236 = vld [vmem:[%s368 + $0x488] sm:$0xff]
        %v1237 = vld [vmem:[%s368 + $0x490] sm:$0xff]
        %v1238 = vld [vmem:[%s368 + $0x498] sm:$0xff]
        %v1239 = vld [vmem:[%s368 + $0x4a0] sm:$0xff]
        %v1240 = vld [vmem:[%s368 + $0x4a8] sm:$0xff]
        %v1241 = vld [vmem:[%s368 + $0x4b0] sm:$0xff]
        %v1242 = vld [vmem:[%s368 + $0x4b8] sm:$0xff]
        %v1243 = vld [vmem:[%s368 + $0x4c0] sm:$0xff]
        %v1244 = vld [vmem:[%s368 + $0x4c8] sm:$0xff]
        %v1245 = vld [vmem:[%s368 + $0x4d0] sm:$0xff]
        %v1246 = vld [vmem:[%s368 + $0x4d8] sm:$0xff]
        %v1247 = vld [vmem:[%s368 + $0x4e0] sm:$0xff]
        %v1248 = vld [vmem:[%s368 + $0x4e8] sm:$0xff]
        %v1249 = vld [vmem:[%s368 + $0x4f0] sm:$0xff]
        %v1250 = vld [vmem:[%s368 + $0x4f8] sm:$0xff]
        %v1251 = vld [vmem:[%s368 + $0x500] sm:$0xff]
        %v1252 = vld [vmem:[%s368 + $0x508] sm:$0xff]
        %v1253 = vld [vmem:[%s368 + $0x510] sm:$0xff]
        %v1254 = vld [vmem:[%s368 + $0x518] sm:$0xff]
        %v1255 = vld [vmem:[%s368 + $0x520] sm:$0xff]
        %v1256 = vld [vmem:[%s368 + $0x528] sm:$0xff]
        %v1257 = vld [vmem:[%s368 + $0x530] sm:$0xff]
        %v1258 = vld [vmem:[%s368 + $0x538] sm:$0xff]
        %v1259 = vld [vmem:[%s368 + $0x540] sm:$0xff]
        %v1260 = vld [vmem:[%s368 + $0x548] sm:$0xff]
        %v1261 = vld [vmem:[%s368 + $0x550] sm:$0xff]
        %v1262 = vld [vmem:[%s368 + $0x558] sm:$0xff]
        %v1263 = vld [vmem:[%s368 + $0x560] sm:$0xff]
        %v1264 = vld [vmem:[%s368 + $0x568] sm:$0xff]
        %v1265 = vld [vmem:[%s368 + $0x570] sm:$0xff]
        %v1266 = vld [vmem:[%s368 + $0x578] sm:$0xff]
        %v1267 = vld [vmem:[%s368 + $0x580] sm:$0xff]
        %v1268 = vld [vmem:[%s368 + $0x588] sm:$0xff]
        %v1269 = vld [vmem:[%s368 + $0x590] sm:$0xff]
        %v1270 = vld [vmem:[%s368 + $0x598] sm:$0xff]
        %v1271 = vld [vmem:[%s368 + $0x5a0] sm:$0xff]
        %v1272 = vld [vmem:[%s368 + $0x5a8] sm:$0xff]
        %v1273 = vld [vmem:[%s368 + $0x5b0] sm:$0xff]
        %v1274 = vld [vmem:[%s368 + $0x5b8] sm:$0xff]
        %v1275 = vld [vmem:[%s368 + $0x5c0] sm:$0xff]
        %v1276 = vld [vmem:[%s368 + $0x5c8] sm:$0xff]
        %v1277 = vld [vmem:[%s368 + $0x5d0] sm:$0xff]
        %v1278 = vld [vmem:[%s368 + $0x5d8] sm:$0xff]
        %v1279 = vld [vmem:[%s368 + $0x5e0] sm:$0xff]
        %v1280 = vld [vmem:[%s368 + $0x5e8] sm:$0xff]
        %v1281 = vld [vmem:[%s368 + $0x5f0] sm:$0xff]
        %v1282 = vld [vmem:[%s368 + $0x5f8] sm:$0xff]
        %v1283 = vld [vmem:[%s368 + $0x600] sm:$0xff]
        %v1284 = vld [vmem:[%s368 + $0x608] sm:$0xff]
        %v1285 = vld [vmem:[%s368 + $0x610] sm:$0xff]
        %v1286 = vld [vmem:[%s368 + $0x618] sm:$0xff]
        %v1287 = vld [vmem:[%s368 + $0x620] sm:$0xff]
        %v1288 = vld [vmem:[%s368 + $0x628] sm:$0xff]
        %v1289 = vld [vmem:[%s368 + $0x630] sm:$0xff]
        %v1290 = vld [vmem:[%s368 + $0x638] sm:$0xff]
        %v1291 = vld [vmem:[%s368 + $0x640] sm:$0xff]
        %v1292 = vld [vmem:[%s368 + $0x648] sm:$0xff]
        %v1293 = vld [vmem:[%s368 + $0x650] sm:$0xff]
        %v1294 = vld [vmem:[%s368 + $0x658] sm:$0xff]
        %v1295 = vld [vmem:[%s368 + $0x660] sm:$0xff]
        %v1296 = vld [vmem:[%s368 + $0x668] sm:$0xff]
        %v1297 = vld [vmem:[%s368 + $0x670] sm:$0xff]
        %v1298 = vld [vmem:[%s368 + $0x678] sm:$0xff]
        %v1299 = vld [vmem:[%s368 + $0x680] sm:$0xff]
        %v1300 = vld [vmem:[%s368 + $0x688] sm:$0xff]
        %v1301 = vld [vmem:[%s368 + $0x690] sm:$0xff]
        %v1302 = vld [vmem:[%s368 + $0x698] sm:$0xff]
        %v1303 = vld [vmem:[%s368 + $0x6a0] sm:$0xff]
        %v1304 = vld [vmem:[%s368 + $0x6a8] sm:$0xff]
        %v1305 = vld [vmem:[%s368 + $0x6b0] sm:$0xff]
        %v1306 = vld [vmem:[%s368 + $0x6b8] sm:$0xff]
        %v1307 = vld [vmem:[%s368 + $0x6c0] sm:$0xff]
        %v1308 = vld [vmem:[%s368 + $0x6c8] sm:$0xff]
        %v1309 = vld [vmem:[%s368 + $0x6d0] sm:$0xff]
        %v1310 = vld [vmem:[%s368 + $0x6d8] sm:$0xff]
        %v1311 = vld [vmem:[%s368 + $0x6e0] sm:$0xff]
        %v1312 = vld [vmem:[%s368 + $0x6e8] sm:$0xff]
        %v1313 = vld [vmem:[%s368 + $0x6f0] sm:$0xff]
        %v1314 = vld [vmem:[%s368 + $0x6f8] sm:$0xff]
        %v1315 = vld [vmem:[%s368 + $0x700] sm:$0xff]
        %v1316 = vld [vmem:[%s368 + $0x708] sm:$0xff]
        %v1317 = vld [vmem:[%s368 + $0x710] sm:$0xff]
        %v1318 = vld [vmem:[%s368 + $0x718] sm:$0xff]
        %v1319 = vld [vmem:[%s368 + $0x720] sm:$0xff]
        %v1320 = vld [vmem:[%s368 + $0x728] sm:$0xff]
        %v1321 = vld [vmem:[%s368 + $0x730] sm:$0xff]
        %v1322 = vld [vmem:[%s368 + $0x738] sm:$0xff]
        %v1323 = vld [vmem:[%s368 + $0x740] sm:$0xff]
        %v1324 = vld [vmem:[%s368 + $0x748] sm:$0xff]
        %v1325 = vld [vmem:[%s368 + $0x750] sm:$0xff]
        %v1326 = vld [vmem:[%s368 + $0x758] sm:$0xff]
        %v1327 = vld [vmem:[%s368 + $0x760] sm:$0xff]
        %v1328 = vld [vmem:[%s368 + $0x768] sm:$0xff]
        %v1329 = vld [vmem:[%s368 + $0x770] sm:$0xff]
        %v1330 = vld [vmem:[%s368 + $0x778] sm:$0xff]
        %v1331 = vld [vmem:[%s368 + $0x780] sm:$0xff]
        %v1332 = vld [vmem:[%s368 + $0x788] sm:$0xff]
        %v1333 = vld [vmem:[%s368 + $0x790] sm:$0xff]
        %v1334 = vld [vmem:[%s368 + $0x798] sm:$0xff]
        %v1335 = vld [vmem:[%s368 + $0x7a0] sm:$0xff]
        %v1336 = vld [vmem:[%s368 + $0x7a8] sm:$0xff]
        %v1337 = vld [vmem:[%s368 + $0x7b0] sm:$0xff]
        %v1338 = vld [vmem:[%s368 + $0x7b8] sm:$0xff]
        %v1339 = vld [vmem:[%s368 + $0x7c0] sm:$0xff]
        %v1340 = vld [vmem:[%s368 + $0x7c8] sm:$0xff]
        %v1341 = vld [vmem:[%s368 + $0x7d0] sm:$0xff]
        %v1342 = vld [vmem:[%s368 + $0x7d8] sm:$0xff]
        %v1343 = vld [vmem:[%s368 + $0x7e0] sm:$0xff]
        %v1344 = vld [vmem:[%s368 + $0x7e8] sm:$0xff]
        %v1345 = vld [vmem:[%s368 + $0x7f0] sm:$0xff]
        %v1346 = vld [vmem:[%s368 + $0x7f8] sm:$0xff]
        %v1347 = vld [vmem:[%s368 + $0x800] sm:$0xff]
        %v1348 = vld [vmem:[%s368 + $0x808] sm:$0xff]
        %v1349 = vld [vmem:[%s368 + $0x810] sm:$0xff]
        %v1350 = vld [vmem:[%s368 + $0x818] sm:$0xff]
        %v1351 = vld [vmem:[%s368 + $0x820] sm:$0xff]
        %v1352 = vld [vmem:[%s368 + $0x828] sm:$0xff]
        %v1353 = vld [vmem:[%s368 + $0x830] sm:$0xff]
        %v1354 = vld [vmem:[%s368 + $0x838] sm:$0xff]
        %v1355 = vld [vmem:[%s368 + $0x840] sm:$0xff]
        %v1356 = vld [vmem:[%s368 + $0x848] sm:$0xff]
        %v1357 = vld [vmem:[%s368 + $0x850] sm:$0xff]
        %v1358 = vld [vmem:[%s368 + $0x858] sm:$0xff]
        %v1359 = vld [vmem:[%s368 + $0x860] sm:$0xff]
        %v1360 = vld [vmem:[%s368 + $0x868] sm:$0xff]
        %v1361 = vld [vmem:[%s368 + $0x870] sm:$0xff]
        %v1362 = vld [vmem:[%s368 + $0x878] sm:$0xff]
        %v1363 = vld [vmem:[%s368 + $0x880] sm:$0xff]
        %v1364 = vld [vmem:[%s368 + $0x888] sm:$0xff]
        %v1365 = vld [vmem:[%s368 + $0x890] sm:$0xff]
        %v1366 = vld [vmem:[%s368 + $0x898] sm:$0xff]
        %v1367 = vld [vmem:[%s368 + $0x8a0] sm:$0xff]
        %v1368 = vld [vmem:[%s368 + $0x8a8] sm:$0xff]
        %v1369 = vld [vmem:[%s368 + $0x8b0] sm:$0xff]
        %v1370 = vld [vmem:[%s368 + $0x8b8] sm:$0xff]
        %v1371 = vld [vmem:[%s368 + $0x8c0] sm:$0xff]
        %v1372 = vld [vmem:[%s368 + $0x8c8] sm:$0xff]
        %v1373 = vld [vmem:[%s368 + $0x8d0] sm:$0xff]
        %v1374 = vld [vmem:[%s368 + $0x8d8] sm:$0xff]
        %v1375 = vld [vmem:[%s368 + $0x8e0] sm:$0xff]
        %v1376 = vld [vmem:[%s368 + $0x8e8] sm:$0xff]
        %v1377 = vld [vmem:[%s368 + $0x8f0] sm:$0xff]
        %v1378 = vld [vmem:[%s368 + $0x8f8] sm:$0xff]
        %v1379 = vld [vmem:[%s368 + $0x900] sm:$0xff]
        %v1380 = vld [vmem:[%s368 + $0x908] sm:$0xff]
        %v1381 = vld [vmem:[%s368 + $0x910] sm:$0xff]
        %v1382 = vld [vmem:[%s368 + $0x918] sm:$0xff]
        %v1383 = vld [vmem:[%s368 + $0x920] sm:$0xff]
        %v1384 = vld [vmem:[%s368 + $0x928] sm:$0xff]
        %v1385 = vld [vmem:[%s368 + $0x930] sm:$0xff]
        %v1386 = vld [vmem:[%s368 + $0x938] sm:$0xff]
        %v1387 = vld [vmem:[%s368 + $0x940] sm:$0xff]
        %v1388 = vld [vmem:[%s368 + $0x948] sm:$0xff]
        %v1389 = vld [vmem:[%s368 + $0x950] sm:$0xff]
        %v1390 = vld [vmem:[%s368 + $0x958] sm:$0xff]
        %v1391 = vld [vmem:[%s368 + $0x960] sm:$0xff]
        %v1392 = vld [vmem:[%s368 + $0x968] sm:$0xff]
        %v1393 = vld [vmem:[%s368 + $0x970] sm:$0xff]
        %v1394 = vld [vmem:[%s368 + $0x978] sm:$0xff]
        %v1395 = vld [vmem:[%s368 + $0x980] sm:$0xff]
        %v1396 = vld [vmem:[%s368 + $0x988] sm:$0xff]
        %v1397 = vld [vmem:[%s368 + $0x990] sm:$0xff]
        %v1398 = vld [vmem:[%s368 + $0x998] sm:$0xff]
        %v1399 = vld [vmem:[%s368 + $0x9a0] sm:$0xff]
        %v1400 = vld [vmem:[%s368 + $0x9a8] sm:$0xff]
        %v1401 = vld [vmem:[%s368 + $0x9b0] sm:$0xff]
        %v1402 = vld [vmem:[%s368 + $0x9b8] sm:$0xff]
        %v1403 = vld [vmem:[%s368 + $0x9c0] sm:$0xff]
        %v1404 = vld [vmem:[%s368 + $0x9c8] sm:$0xff]
        %v1405 = vld [vmem:[%s368 + $0x9d0] sm:$0xff]
        %v1406 = vld [vmem:[%s368 + $0x9d8] sm:$0xff]
        %v1407 = vld [vmem:[%s368 + $0x9e0] sm:$0xff]
        %v1408 = vld [vmem:[%s368 + $0x9e8] sm:$0xff]
        %v1409 = vld [vmem:[%s368 + $0x9f0] sm:$0xff]
        %v1410 = vld [vmem:[%s368 + $0x9f8] sm:$0xff]
        %v1411 = vld [vmem:[%s368 + $0xa00] sm:$0xff]
        %v1412 = vld [vmem:[%s368 + $0xa08] sm:$0xff]
        %v1413 = vld [vmem:[%s368 + $0xa10] sm:$0xff]
        %v1414 = vld [vmem:[%s368 + $0xa18] sm:$0xff]
        %v1415 = vld [vmem:[%s368 + $0xa20] sm:$0xff]
        %v1416 = vld [vmem:[%s368 + $0xa28] sm:$0xff]
        %v1417 = vld [vmem:[%s368 + $0xa30] sm:$0xff]
        %v1418 = vld [vmem:[%s368 + $0xa38] sm:$0xff]
        %v1419 = vld [vmem:[%s368 + $0xa40] sm:$0xff]
        %v1420 = vld [vmem:[%s368 + $0xa48] sm:$0xff]
        %v1421 = vld [vmem:[%s368 + $0xa50] sm:$0xff]
        %v1422 = vld [vmem:[%s368 + $0xa58] sm:$0xff]
        %v1423 = vld [vmem:[%s368 + $0xa60] sm:$0xff]
        %v1424 = vld [vmem:[%s368 + $0xa68] sm:$0xff]
        %v1425 = vld [vmem:[%s368 + $0xa70] sm:$0xff]
        %v1426 = vld [vmem:[%s368 + $0xa78] sm:$0xff]
        %v1427 = vld [vmem:[%s368 + $0xa80] sm:$0xff]
        %v1428 = vld [vmem:[%s368 + $0xa88] sm:$0xff]
        %v1429 = vld [vmem:[%s368 + $0xa90] sm:$0xff]
        %v1430 = vld [vmem:[%s368 + $0xa98] sm:$0xff]
        %v1431 = vld [vmem:[%s368 + $0xaa0] sm:$0xff]
        %v1432 = vld [vmem:[%s368 + $0xaa8] sm:$0xff]
        %v1433 = vld [vmem:[%s368 + $0xab0] sm:$0xff]
        %v1434 = vld [vmem:[%s368 + $0xab8] sm:$0xff]
        %v1435 = vld [vmem:[%s368 + $0xac0] sm:$0xff]
        %v1436 = vld [vmem:[%s368 + $0xac8] sm:$0xff]
        %v1437 = vld [vmem:[%s368 + $0xad0] sm:$0xff]
        %v1438 = vld [vmem:[%s368 + $0xad8] sm:$0xff]
        %v1439 = vld [vmem:[%s368 + $0xae0] sm:$0xff]
        %v1440 = vld [vmem:[%s368 + $0xae8] sm:$0xff]
        %v1441 = vld [vmem:[%s368 + $0xaf0] sm:$0xff]
        %v1442 = vld [vmem:[%s368 + $0xaf8] sm:$0xff]
        %v1443 = vld [vmem:[%s368 + $0xb00] sm:$0xff]
        %v1444 = vld [vmem:[%s368 + $0xb08] sm:$0xff]
        %v1445 = vld [vmem:[%s368 + $0xb10] sm:$0xff]
        %v1446 = vld [vmem:[%s368 + $0xb18] sm:$0xff]
        %v1447 = vld [vmem:[%s368 + $0xb20] sm:$0xff]
        %v1448 = vld [vmem:[%s368 + $0xb28] sm:$0xff]
        %v1449 = vld [vmem:[%s368 + $0xb30] sm:$0xff]
        %v1450 = vld [vmem:[%s368 + $0xb38] sm:$0xff]
        %v1451 = vld [vmem:[%s368 + $0xb40] sm:$0xff]
        %v1452 = vld [vmem:[%s368 + $0xb48] sm:$0xff]
        %v1453 = vld [vmem:[%s368 + $0xb50] sm:$0xff]
        %v1454 = vld [vmem:[%s368 + $0xb58] sm:$0xff]
        %v1455 = vld [vmem:[%s368 + $0xb60] sm:$0xff]
        %v1456 = vld [vmem:[%s368 + $0xb68] sm:$0xff]
        %v1457 = vld [vmem:[%s368 + $0xb70] sm:$0xff]
        %v1458 = vld [vmem:[%s368 + $0xb78] sm:$0xff]
        %v1459 = vld [vmem:[%s368 + $0xb80] sm:$0xff]
        %v1460 = vld [vmem:[%s368 + $0xb88] sm:$0xff]
        %v1461 = vld [vmem:[%s368 + $0xb90] sm:$0xff]
        %v1462 = vld [vmem:[%s368 + $0xb98] sm:$0xff]
        %v1463 = vld [vmem:[%s368 + $0xba0] sm:$0xff]
        %v1464 = vld [vmem:[%s368 + $0xba8] sm:$0xff]
        %v1465 = vld [vmem:[%s368 + $0xbb0] sm:$0xff]
        %v1466 = vld [vmem:[%s368 + $0xbb8] sm:$0xff]
        %v1467 = vld [vmem:[%s368 + $0xbc0] sm:$0xff]
        %v1468 = vld [vmem:[%s368 + $0xbc8] sm:$0xff]
        %v1469 = vld [vmem:[%s368 + $0xbd0] sm:$0xff]
        %v1470 = vld [vmem:[%s368 + $0xbd8] sm:$0xff]
        %v1471 = vld [vmem:[%s368 + $0xbe0] sm:$0xff]
        %v1472 = vld [vmem:[%s368 + $0xbe8] sm:$0xff]
        %v1473 = vld [vmem:[%s368 + $0xbf0] sm:$0xff]
        %v1474 = vld [vmem:[%s368 + $0xbf8] sm:$0xff]
        %v1475 = vld [vmem:[%s368 + $0xc00] sm:$0xff]
        %v1476 = vld [vmem:[%s368 + $0xc08] sm:$0xff]
        %v1477 = vld [vmem:[%s368 + $0xc10] sm:$0xff]
        %v1478 = vld [vmem:[%s368 + $0xc18] sm:$0xff]
        %v1479 = vld [vmem:[%s368 + $0xc20] sm:$0xff]
        %v1480 = vld [vmem:[%s368 + $0xc28] sm:$0xff]
        %v1481 = vld [vmem:[%s368 + $0xc30] sm:$0xff]
        %v1482 = vld [vmem:[%s368 + $0xc38] sm:$0xff]
        %v1483 = vld [vmem:[%s368 + $0xc40] sm:$0xff]
        %v1484 = vld [vmem:[%s368 + $0xc48] sm:$0xff]
        %v1485 = vld [vmem:[%s368 + $0xc50] sm:$0xff]
        %v1486 = vld [vmem:[%s368 + $0xc58] sm:$0xff]
        %v1487 = vld [vmem:[%s368 + $0xc60] sm:$0xff]
        %v1488 = vld [vmem:[%s368 + $0xc68] sm:$0xff]
        %v1489 = vld [vmem:[%s368 + $0xc70] sm:$0xff]
        %v1490 = vld [vmem:[%s368 + $0xc78] sm:$0xff]
        %v1491 = vld [vmem:[%s368 + $0xc80] sm:$0xff]
        %v1492 = vld [vmem:[%s368 + $0xc88] sm:$0xff]
        %v1493 = vld [vmem:[%s368 + $0xc90] sm:$0xff]
        %v1494 = vld [vmem:[%s368 + $0xc98] sm:$0xff]
        %v1495 = vld [vmem:[%s368 + $0xca0] sm:$0xff]
        %v1496 = vld [vmem:[%s368 + $0xca8] sm:$0xff]
        %v1497 = vld [vmem:[%s368 + $0xcb0] sm:$0xff]
        %v1498 = vld [vmem:[%s368 + $0xcb8] sm:$0xff]
        %v1499 = vld [vmem:[%s368 + $0xcc0] sm:$0xff]
        %v1500 = vld [vmem:[%s368 + $0xcc8] sm:$0xff]
        %v1501 = vld [vmem:[%s368 + $0xcd0] sm:$0xff]
        %v1502 = vld [vmem:[%s368 + $0xcd8] sm:$0xff]
        %v1503 = vld [vmem:[%s368 + $0xce0] sm:$0xff]
        %v1504 = vld [vmem:[%s368 + $0xce8] sm:$0xff]
        %v1505 = vld [vmem:[%s368 + $0xcf0] sm:$0xff]
        %v1506 = vld [vmem:[%s368 + $0xcf8] sm:$0xff]
        %v1507 = vld [vmem:[%s368 + $0xd00] sm:$0xff]
        %v1508 = vld [vmem:[%s368 + $0xd08] sm:$0xff]
        %v1509 = vld [vmem:[%s368 + $0xd10] sm:$0xff]
        %v1510 = vld [vmem:[%s368 + $0xd18] sm:$0xff]
        %v1511 = vld [vmem:[%s368 + $0xd20] sm:$0xff]
        %v1512 = vld [vmem:[%s368 + $0xd28] sm:$0xff]
        %v1513 = vld [vmem:[%s368 + $0xd30] sm:$0xff]
        %v1514 = vld [vmem:[%s368 + $0xd38] sm:$0xff]
        %v1515 = vld [vmem:[%s368 + $0xd40] sm:$0xff]
        %v1516 = vld [vmem:[%s368 + $0xd48] sm:$0xff]
        %v1517 = vld [vmem:[%s368 + $0xd50] sm:$0xff]
        %v1518 = vld [vmem:[%s368 + $0xd58] sm:$0xff]
        %v1519 = vld [vmem:[%s368 + $0xd60] sm:$0xff]
        %v1520 = vld [vmem:[%s368 + $0xd68] sm:$0xff]
        %v1521 = vld [vmem:[%s368 + $0xd70] sm:$0xff]
        %v1522 = vld [vmem:[%s368 + $0xd78] sm:$0xff]
        %v1523 = vld [vmem:[%s368 + $0xd80] sm:$0xff]
        %v1524 = vld [vmem:[%s368 + $0xd88] sm:$0xff]
        %v1525 = vld [vmem:[%s368 + $0xd90] sm:$0xff]
        %v1526 = vld [vmem:[%s368 + $0xd98] sm:$0xff]
        %v1527 = vld [vmem:[%s368 + $0xda0] sm:$0xff]
        %v1528 = vld [vmem:[%s368 + $0xda8] sm:$0xff]
        %v1529 = vld [vmem:[%s368 + $0xdb0] sm:$0xff]
        %v1530 = vld [vmem:[%s368 + $0xdb8] sm:$0xff]
        %v1531 = vld [vmem:[%s368 + $0xdc0] sm:$0xff]
        %v1532 = vld [vmem:[%s368 + $0xdc8] sm:$0xff]
        %v1533 = vld [vmem:[%s368 + $0xdd0] sm:$0xff]
        %v1534 = vld [vmem:[%s368 + $0xdd8] sm:$0xff]
        %v1535 = vld [vmem:[%s368 + $0xde0] sm:$0xff]
        %v1536 = vld [vmem:[%s368 + $0xde8] sm:$0xff]
        %v1537 = vld [vmem:[%s368 + $0xdf0] sm:$0xff]
        %v1538 = vld [vmem:[%s368 + $0xdf8] sm:$0xff]
        %v1539 = vld [vmem:[%s368 + $0xe00] sm:$0xff]
        %v1540 = vld [vmem:[%s368 + $0xe08] sm:$0xff]
        %v1541 = vld [vmem:[%s368 + $0xe10] sm:$0xff]
        %v1542 = vld [vmem:[%s368 + $0xe18] sm:$0xff]
        %v1543 = vld [vmem:[%s368 + $0xe20] sm:$0xff]
        %v1544 = vld [vmem:[%s368 + $0xe28] sm:$0xff]
        %v1545 = vld [vmem:[%s368 + $0xe30] sm:$0xff]
        %v1546 = vld [vmem:[%s368 + $0xe38] sm:$0xff]
        %v1547 = vld [vmem:[%s368 + $0xe40] sm:$0xff]
        %v1548 = vld [vmem:[%s368 + $0xe48] sm:$0xff]
        %v1549 = vld [vmem:[%s368 + $0xe50] sm:$0xff]
        %v1550 = vld [vmem:[%s368 + $0xe58] sm:$0xff]
        %v1551 = vld [vmem:[%s368 + $0xe60] sm:$0xff]
        %v1552 = vld [vmem:[%s368 + $0xe68] sm:$0xff]
        %v1553 = vld [vmem:[%s368 + $0xe70] sm:$0xff]
        %v1554 = vld [vmem:[%s368 + $0xe78] sm:$0xff]
        %v1555 = vld [vmem:[%s368 + $0xe80] sm:$0xff]
        %v1556 = vld [vmem:[%s368 + $0xe88] sm:$0xff]
        %v1557 = vld [vmem:[%s368 + $0xe90] sm:$0xff]
        %v1558 = vld [vmem:[%s368 + $0xe98] sm:$0xff]
        %v1559 = vld [vmem:[%s368 + $0xea0] sm:$0xff]
        %v1560 = vld [vmem:[%s368 + $0xea8] sm:$0xff]
        %v1561 = vld [vmem:[%s368 + $0xeb0] sm:$0xff]
        %v1562 = vld [vmem:[%s368 + $0xeb8] sm:$0xff]
        %v1563 = vld [vmem:[%s368 + $0xec0] sm:$0xff]
        %v1564 = vld [vmem:[%s368 + $0xec8] sm:$0xff]
        %v1565 = vld [vmem:[%s368 + $0xed0] sm:$0xff]
        %v1566 = vld [vmem:[%s368 + $0xed8] sm:$0xff]
        %v1567 = vld [vmem:[%s368 + $0xee0] sm:$0xff]
        %v1568 = vld [vmem:[%s368 + $0xee8] sm:$0xff]
        %v1569 = vld [vmem:[%s368 + $0xef0] sm:$0xff]
        %v1570 = vld [vmem:[%s368 + $0xef8] sm:$0xff]
        %v1571 = vld [vmem:[%s368 + $0xf00] sm:$0xff]
        %v1572 = vld [vmem:[%s368 + $0xf08] sm:$0xff]
        %v1573 = vld [vmem:[%s368 + $0xf10] sm:$0xff]
        %v1574 = vld [vmem:[%s368 + $0xf18] sm:$0xff]
        %v1575 = vld [vmem:[%s368 + $0xf20] sm:$0xff]
        %v1576 = vld [vmem:[%s368 + $0xf28] sm:$0xff]
        %v1577 = vld [vmem:[%s368 + $0xf30] sm:$0xff]
        %v1578 = vld [vmem:[%s368 + $0xf38] sm:$0xff]
        %v1579 = vld [vmem:[%s368 + $0xf40] sm:$0xff]
        %v1580 = vld [vmem:[%s368 + $0xf48] sm:$0xff]
        %v1581 = vld [vmem:[%s368 + $0xf50] sm:$0xff]
        %v1582 = vld [vmem:[%s368 + $0xf58] sm:$0xff]
        %v1583 = vld [vmem:[%s368 + $0xf60] sm:$0xff]
        %v1584 = vld [vmem:[%s368 + $0xf68] sm:$0xff]
        %v1585 = vld [vmem:[%s368 + $0xf70] sm:$0xff]
        %v1586 = vld [vmem:[%s368 + $0xf78] sm:$0xff]
        %v1587 = vld [vmem:[%s368 + $0xf80] sm:$0xff]
        %v1588 = vld [vmem:[%s368 + $0xf88] sm:$0xff]
        %v1589 = vld [vmem:[%s368 + $0xf90] sm:$0xff]
        %v1590 = vld [vmem:[%s368 + $0xf98] sm:$0xff]
        %v1591 = vld [vmem:[%s368 + $0xfa0] sm:$0xff]
        %v1592 = vld [vmem:[%s368 + $0xfa8] sm:$0xff]
        %v1593 = vld [vmem:[%s368 + $0xfb0] sm:$0xff]
        %v1594 = vld [vmem:[%s368 + $0xfb8] sm:$0xff]
        %v1595 = vld [vmem:[%s368 + $0xfc0] sm:$0xff]
        %v1596 = vld [vmem:[%s368 + $0xfc8] sm:$0xff]
        %v1597 = vld [vmem:[%s368 + $0xfd0] sm:$0xff]
        %v1598 = vld [vmem:[%s368 + $0xfd8] sm:$0xff]
        %v1599 = vld [vmem:[%s368 + $0xfe0] sm:$0xff]
        %v1600 = vld [vmem:[%s368 + $0xfe8] sm:$0xff]
        %v1601 = vld [vmem:[%s368 + $0xff0] sm:$0xff]
        %v1602 = vld [vmem:[%s368 + $0xff8] sm:$0xff]
        %v2115 = vunpack.c.l.b16 %v1091
        %v2116 = vunpack.c.h.b16 %v1091
        %v2117 = vunpack.c.l.b16 %v1092
        %v2118 = vunpack.c.h.b16 %v1092
        %v2119 = vunpack.c.l.b16 %v1093
        %v2120 = vunpack.c.h.b16 %v1093
        %v2121 = vunpack.c.l.b16 %v1094
        %v2122 = vunpack.c.h.b16 %v1094
        %v2123 = vunpack.c.l.b16 %v1095
        %v2124 = vunpack.c.h.b16 %v1095
        %v2125 = vunpack.c.l.b16 %v1096
        %v2126 = vunpack.c.h.b16 %v1096
        %v2127 = vunpack.c.l.b16 %v1097
        %v2128 = vunpack.c.h.b16 %v1097
        %v2129 = vunpack.c.l.b16 %v1098
        %v2130 = vunpack.c.h.b16 %v1098
        %v2131 = vunpack.c.l.b16 %v1099
        %v2132 = vunpack.c.h.b16 %v1099
        %v2133 = vunpack.c.l.b16 %v1100
        %v2134 = vunpack.c.h.b16 %v1100
        %v2135 = vunpack.c.l.b16 %v1101
        %v2136 = vunpack.c.h.b16 %v1101
        %v2137 = vunpack.c.l.b16 %v1102
        %v2138 = vunpack.c.h.b16 %v1102
        %v2139 = vunpack.c.l.b16 %v1103
        %v2140 = vunpack.c.h.b16 %v1103
        %v2141 = vunpack.c.l.b16 %v1104
        %v2142 = vunpack.c.h.b16 %v1104
        %v2143 = vunpack.c.l.b16 %v1105
        %v2144 = vunpack.c.h.b16 %v1105
        %v2145 = vunpack.c.l.b16 %v1106
        %v2146 = vunpack.c.h.b16 %v1106
        %v2147 = vunpack.c.l.b16 %v1107
        %v2148 = vunpack.c.h.b16 %v1107
        %v2149 = vunpack.c.l.b16 %v1108
        %v2150 = vunpack.c.h.b16 %v1108
        %v2151 = vunpack.c.l.b16 %v1109
        %v2152 = vunpack.c.h.b16 %v1109
        %v2153 = vunpack.c.l.b16 %v1110
        %v2154 = vunpack.c.h.b16 %v1110
        %v2155 = vunpack.c.l.b16 %v1111
        %v2156 = vunpack.c.h.b16 %v1111
        %v2157 = vunpack.c.l.b16 %v1112
        %v2158 = vunpack.c.h.b16 %v1112
        %v2159 = vunpack.c.l.b16 %v1113
        %v2160 = vunpack.c.h.b16 %v1113
        %v2161 = vunpack.c.l.b16 %v1114
        %v2162 = vunpack.c.h.b16 %v1114
        %v2163 = vunpack.c.l.b16 %v1115
        %v2164 = vunpack.c.h.b16 %v1115
        %v2165 = vunpack.c.l.b16 %v1116
        %v2166 = vunpack.c.h.b16 %v1116
        %v2167 = vunpack.c.l.b16 %v1117
        %v2168 = vunpack.c.h.b16 %v1117
        %v2169 = vunpack.c.l.b16 %v1118
        %v2170 = vunpack.c.h.b16 %v1118
        %v2171 = vunpack.c.l.b16 %v1119
        %v2172 = vunpack.c.h.b16 %v1119
        %v2173 = vunpack.c.l.b16 %v1120
        %v2174 = vunpack.c.h.b16 %v1120
        %v2175 = vunpack.c.l.b16 %v1121
        %v2176 = vunpack.c.h.b16 %v1121
        %v2177 = vunpack.c.l.b16 %v1122
        %v2178 = vunpack.c.h.b16 %v1122
        %v2179 = vunpack.c.l.b16 %v1123
        %v2180 = vunpack.c.h.b16 %v1123
        %v2181 = vunpack.c.l.b16 %v1124
        %v2182 = vunpack.c.h.b16 %v1124
        %v2183 = vunpack.c.l.b16 %v1125
        %v2184 = vunpack.c.h.b16 %v1125
        %v2185 = vunpack.c.l.b16 %v1126
        %v2186 = vunpack.c.h.b16 %v1126
        %v2187 = vunpack.c.l.b16 %v1127
        %v2188 = vunpack.c.h.b16 %v1127
        %v2189 = vunpack.c.l.b16 %v1128
        %v2190 = vunpack.c.h.b16 %v1128
        %v2191 = vunpack.c.l.b16 %v1129
        %v2192 = vunpack.c.h.b16 %v1129
        %v2193 = vunpack.c.l.b16 %v1130
        %v2194 = vunpack.c.h.b16 %v1130
        %v2195 = vunpack.c.l.b16 %v1131
        %v2196 = vunpack.c.h.b16 %v1131
        %v2197 = vunpack.c.l.b16 %v1132
        %v2198 = vunpack.c.h.b16 %v1132
        %v2199 = vunpack.c.l.b16 %v1133
        %v2200 = vunpack.c.h.b16 %v1133
        %v2201 = vunpack.c.l.b16 %v1134
        %v2202 = vunpack.c.h.b16 %v1134
        %v2203 = vunpack.c.l.b16 %v1135
        %v2204 = vunpack.c.h.b16 %v1135
        %v2205 = vunpack.c.l.b16 %v1136
        %v2206 = vunpack.c.h.b16 %v1136
        %v2207 = vunpack.c.l.b16 %v1137
        %v2208 = vunpack.c.h.b16 %v1137
        %v2209 = vunpack.c.l.b16 %v1138
        %v2210 = vunpack.c.h.b16 %v1138
        %v2211 = vunpack.c.l.b16 %v1139
        %v2212 = vunpack.c.h.b16 %v1139
        %v2213 = vunpack.c.l.b16 %v1140
        %v2214 = vunpack.c.h.b16 %v1140
        %v2215 = vunpack.c.l.b16 %v1141
        %v2216 = vunpack.c.h.b16 %v1141
        %v2217 = vunpack.c.l.b16 %v1142
        %v2218 = vunpack.c.h.b16 %v1142
        %v2219 = vunpack.c.l.b16 %v1143
        %v2220 = vunpack.c.h.b16 %v1143
        %v2221 = vunpack.c.l.b16 %v1144
        %v2222 = vunpack.c.h.b16 %v1144
        %v2223 = vunpack.c.l.b16 %v1145
        %v2224 = vunpack.c.h.b16 %v1145
        %v2225 = vunpack.c.l.b16 %v1146
        %v2226 = vunpack.c.h.b16 %v1146
        %v2227 = vunpack.c.l.b16 %v1147
        %v2228 = vunpack.c.h.b16 %v1147
        %v2229 = vunpack.c.l.b16 %v1148
        %v2230 = vunpack.c.h.b16 %v1148
        %v2231 = vunpack.c.l.b16 %v1149
        %v2232 = vunpack.c.h.b16 %v1149
        %v2233 = vunpack.c.l.b16 %v1150
        %v2234 = vunpack.c.h.b16 %v1150
        %v2235 = vunpack.c.l.b16 %v1151
        %v2236 = vunpack.c.h.b16 %v1151
        %v2237 = vunpack.c.l.b16 %v1152
        %v2238 = vunpack.c.h.b16 %v1152
        %v2239 = vunpack.c.l.b16 %v1153
        %v2240 = vunpack.c.h.b16 %v1153
        %v2241 = vunpack.c.l.b16 %v1154
        %v2242 = vunpack.c.h.b16 %v1154
        %v2243 = vunpack.c.l.b16 %v1155
        %v2244 = vunpack.c.h.b16 %v1155
        %v2245 = vunpack.c.l.b16 %v1156
        %v2246 = vunpack.c.h.b16 %v1156
        %v2247 = vunpack.c.l.b16 %v1157
        %v2248 = vunpack.c.h.b16 %v1157
        %v2249 = vunpack.c.l.b16 %v1158
        %v2250 = vunpack.c.h.b16 %v1158
        %v2251 = vunpack.c.l.b16 %v1159
        %v2252 = vunpack.c.h.b16 %v1159
        %v2253 = vunpack.c.l.b16 %v1160
        %v2254 = vunpack.c.h.b16 %v1160
        %v2255 = vunpack.c.l.b16 %v1161
        %v2256 = vunpack.c.h.b16 %v1161
        %v2257 = vunpack.c.l.b16 %v1162
        %v2258 = vunpack.c.h.b16 %v1162
        %v2259 = vunpack.c.l.b16 %v1163
        %v2260 = vunpack.c.h.b16 %v1163
        %v2261 = vunpack.c.l.b16 %v1164
        %v2262 = vunpack.c.h.b16 %v1164
        %v2263 = vunpack.c.l.b16 %v1165
        %v2264 = vunpack.c.h.b16 %v1165
        %v2265 = vunpack.c.l.b16 %v1166
        %v2266 = vunpack.c.h.b16 %v1166
        %v2267 = vunpack.c.l.b16 %v1167
        %v2268 = vunpack.c.h.b16 %v1167
        %v2269 = vunpack.c.l.b16 %v1168
        %v2270 = vunpack.c.h.b16 %v1168
        %v2271 = vunpack.c.l.b16 %v1169
        %v2272 = vunpack.c.h.b16 %v1169
        %v2273 = vunpack.c.l.b16 %v1170
        %v2274 = vunpack.c.h.b16 %v1170
        %v2275 = vunpack.c.l.b16 %v1171
        %v2276 = vunpack.c.h.b16 %v1171
        %v2277 = vunpack.c.l.b16 %v1172
        %v2278 = vunpack.c.h.b16 %v1172
        %v2279 = vunpack.c.l.b16 %v1173
        %v2280 = vunpack.c.h.b16 %v1173
        %v2281 = vunpack.c.l.b16 %v1174
        %v2282 = vunpack.c.h.b16 %v1174
        %v2283 = vunpack.c.l.b16 %v1175
        %v2284 = vunpack.c.h.b16 %v1175
        %v2285 = vunpack.c.l.b16 %v1176
        %v2286 = vunpack.c.h.b16 %v1176
        %v2287 = vunpack.c.l.b16 %v1177
        %v2288 = vunpack.c.h.b16 %v1177
        %v2289 = vunpack.c.l.b16 %v1178
        %v2290 = vunpack.c.h.b16 %v1178
        %v2291 = vunpack.c.l.b16 %v1179
        %v2292 = vunpack.c.h.b16 %v1179
        %v2293 = vunpack.c.l.b16 %v1180
        %v2294 = vunpack.c.h.b16 %v1180
        %v2295 = vunpack.c.l.b16 %v1181
        %v2296 = vunpack.c.h.b16 %v1181
        %v2297 = vunpack.c.l.b16 %v1182
        %v2298 = vunpack.c.h.b16 %v1182
        %v2299 = vunpack.c.l.b16 %v1183
        %v2300 = vunpack.c.h.b16 %v1183
        %v2301 = vunpack.c.l.b16 %v1184
        %v2302 = vunpack.c.h.b16 %v1184
        %v2303 = vunpack.c.l.b16 %v1185
        %v2304 = vunpack.c.h.b16 %v1185
        %v2305 = vunpack.c.l.b16 %v1186
        %v2306 = vunpack.c.h.b16 %v1186
        %v2307 = vunpack.c.l.b16 %v1187
        %v2308 = vunpack.c.h.b16 %v1187
        %v2309 = vunpack.c.l.b16 %v1188
        %v2310 = vunpack.c.h.b16 %v1188
        %v2311 = vunpack.c.l.b16 %v1189
        %v2312 = vunpack.c.h.b16 %v1189
        %v2313 = vunpack.c.l.b16 %v1190
        %v2314 = vunpack.c.h.b16 %v1190
        %v2315 = vunpack.c.l.b16 %v1191
        %v2316 = vunpack.c.h.b16 %v1191
        %v2317 = vunpack.c.l.b16 %v1192
        %v2318 = vunpack.c.h.b16 %v1192
        %v2319 = vunpack.c.l.b16 %v1193
        %v2320 = vunpack.c.h.b16 %v1193
        %v2321 = vunpack.c.l.b16 %v1194
        %v2322 = vunpack.c.h.b16 %v1194
        %v2323 = vunpack.c.l.b16 %v1195
        %v2324 = vunpack.c.h.b16 %v1195
        %v2325 = vunpack.c.l.b16 %v1196
        %v2326 = vunpack.c.h.b16 %v1196
        %v2327 = vunpack.c.l.b16 %v1197
        %v2328 = vunpack.c.h.b16 %v1197
        %v2329 = vunpack.c.l.b16 %v1198
        %v2330 = vunpack.c.h.b16 %v1198
        %v2331 = vunpack.c.l.b16 %v1199
        %v2332 = vunpack.c.h.b16 %v1199
        %v2333 = vunpack.c.l.b16 %v1200
        %v2334 = vunpack.c.h.b16 %v1200
        %v2335 = vunpack.c.l.b16 %v1201
        %v2336 = vunpack.c.h.b16 %v1201
        %v2337 = vunpack.c.l.b16 %v1202
        %v2338 = vunpack.c.h.b16 %v1202
        %v2339 = vunpack.c.l.b16 %v1203
        %v2340 = vunpack.c.h.b16 %v1203
        %v2341 = vunpack.c.l.b16 %v1204
        %v2342 = vunpack.c.h.b16 %v1204
        %v2343 = vunpack.c.l.b16 %v1205
        %v2344 = vunpack.c.h.b16 %v1205
        %v2345 = vunpack.c.l.b16 %v1206
        %v2346 = vunpack.c.h.b16 %v1206
        %v2347 = vunpack.c.l.b16 %v1207
        %v2348 = vunpack.c.h.b16 %v1207
        %v2349 = vunpack.c.l.b16 %v1208
        %v2350 = vunpack.c.h.b16 %v1208
        %v2351 = vunpack.c.l.b16 %v1209
        %v2352 = vunpack.c.h.b16 %v1209
        %v2353 = vunpack.c.l.b16 %v1210
        %v2354 = vunpack.c.h.b16 %v1210
        %v2355 = vunpack.c.l.b16 %v1211
        %v2356 = vunpack.c.h.b16 %v1211
        %v2357 = vunpack.c.l.b16 %v1212
        %v2358 = vunpack.c.h.b16 %v1212
        %v2359 = vunpack.c.l.b16 %v1213
        %v2360 = vunpack.c.h.b16 %v1213
        %v2361 = vunpack.c.l.b16 %v1214
        %v2362 = vunpack.c.h.b16 %v1214
        %v2363 = vunpack.c.l.b16 %v1215
        %v2364 = vunpack.c.h.b16 %v1215
        %v2365 = vunpack.c.l.b16 %v1216
        %v2366 = vunpack.c.h.b16 %v1216
        %v2367 = vunpack.c.l.b16 %v1217
        %v2368 = vunpack.c.h.b16 %v1217
        %v2369 = vunpack.c.l.b16 %v1218
        %v2370 = vunpack.c.h.b16 %v1218
        %v2371 = vunpack.c.l.b16 %v1219
        %v2372 = vunpack.c.h.b16 %v1219
        %v2373 = vunpack.c.l.b16 %v1220
        %v2374 = vunpack.c.h.b16 %v1220
        %v2375 = vunpack.c.l.b16 %v1221
        %v2376 = vunpack.c.h.b16 %v1221
        %v2377 = vunpack.c.l.b16 %v1222
        %v2378 = vunpack.c.h.b16 %v1222
        %v2379 = vunpack.c.l.b16 %v1223
        %v2380 = vunpack.c.h.b16 %v1223
        %v2381 = vunpack.c.l.b16 %v1224
        %v2382 = vunpack.c.h.b16 %v1224
        %v2383 = vunpack.c.l.b16 %v1225
        %v2384 = vunpack.c.h.b16 %v1225
        %v2385 = vunpack.c.l.b16 %v1226
        %v2386 = vunpack.c.h.b16 %v1226
        %v2387 = vunpack.c.l.b16 %v1227
        %v2388 = vunpack.c.h.b16 %v1227
        %v2389 = vunpack.c.l.b16 %v1228
        %v2390 = vunpack.c.h.b16 %v1228
        %v2391 = vunpack.c.l.b16 %v1229
        %v2392 = vunpack.c.h.b16 %v1229
        %v2393 = vunpack.c.l.b16 %v1230
        %v2394 = vunpack.c.h.b16 %v1230
        %v2395 = vunpack.c.l.b16 %v1231
        %v2396 = vunpack.c.h.b16 %v1231
        %v2397 = vunpack.c.l.b16 %v1232
        %v2398 = vunpack.c.h.b16 %v1232
        %v2399 = vunpack.c.l.b16 %v1233
        %v2400 = vunpack.c.h.b16 %v1233
        %v2401 = vunpack.c.l.b16 %v1234
        %v2402 = vunpack.c.h.b16 %v1234
        %v2403 = vunpack.c.l.b16 %v1235
        %v2404 = vunpack.c.h.b16 %v1235
        %v2405 = vunpack.c.l.b16 %v1236
        %v2406 = vunpack.c.h.b16 %v1236
        %v2407 = vunpack.c.l.b16 %v1237
        %v2408 = vunpack.c.h.b16 %v1237
        %v2409 = vunpack.c.l.b16 %v1238
        %v2410 = vunpack.c.h.b16 %v1238
        %v2411 = vunpack.c.l.b16 %v1239
        %v2412 = vunpack.c.h.b16 %v1239
        %v2413 = vunpack.c.l.b16 %v1240
        %v2414 = vunpack.c.h.b16 %v1240
        %v2415 = vunpack.c.l.b16 %v1241
        %v2416 = vunpack.c.h.b16 %v1241
        %v2417 = vunpack.c.l.b16 %v1242
        %v2418 = vunpack.c.h.b16 %v1242
        %v2419 = vunpack.c.l.b16 %v1243
        %v2420 = vunpack.c.h.b16 %v1243
        %v2421 = vunpack.c.l.b16 %v1244
        %v2422 = vunpack.c.h.b16 %v1244
        %v2423 = vunpack.c.l.b16 %v1245
        %v2424 = vunpack.c.h.b16 %v1245
        %v2425 = vunpack.c.l.b16 %v1246
        %v2426 = vunpack.c.h.b16 %v1246
        %v2427 = vunpack.c.l.b16 %v1247
        %v2428 = vunpack.c.h.b16 %v1247
        %v2429 = vunpack.c.l.b16 %v1248
        %v2430 = vunpack.c.h.b16 %v1248
        %v2431 = vunpack.c.l.b16 %v1249
        %v2432 = vunpack.c.h.b16 %v1249
        %v2433 = vunpack.c.l.b16 %v1250
        %v2434 = vunpack.c.h.b16 %v1250
        %v2435 = vunpack.c.l.b16 %v1251
        %v2436 = vunpack.c.h.b16 %v1251
        %v2437 = vunpack.c.l.b16 %v1252
        %v2438 = vunpack.c.h.b16 %v1252
        %v2439 = vunpack.c.l.b16 %v1253
        %v2440 = vunpack.c.h.b16 %v1253
        %v2441 = vunpack.c.l.b16 %v1254
        %v2442 = vunpack.c.h.b16 %v1254
        %v2443 = vunpack.c.l.b16 %v1255
        %v2444 = vunpack.c.h.b16 %v1255
        %v2445 = vunpack.c.l.b16 %v1256
        %v2446 = vunpack.c.h.b16 %v1256
        %v2447 = vunpack.c.l.b16 %v1257
        %v2448 = vunpack.c.h.b16 %v1257
        %v2449 = vunpack.c.l.b16 %v1258
        %v2450 = vunpack.c.h.b16 %v1258
        %v2451 = vunpack.c.l.b16 %v1259
        %v2452 = vunpack.c.h.b16 %v1259
        %v2453 = vunpack.c.l.b16 %v1260
        %v2454 = vunpack.c.h.b16 %v1260
        %v2455 = vunpack.c.l.b16 %v1261
        %v2456 = vunpack.c.h.b16 %v1261
        %v2457 = vunpack.c.l.b16 %v1262
        %v2458 = vunpack.c.h.b16 %v1262
        %v2459 = vunpack.c.l.b16 %v1263
        %v2460 = vunpack.c.h.b16 %v1263
        %v2461 = vunpack.c.l.b16 %v1264
        %v2462 = vunpack.c.h.b16 %v1264
        %v2463 = vunpack.c.l.b16 %v1265
        %v2464 = vunpack.c.h.b16 %v1265
        %v2465 = vunpack.c.l.b16 %v1266
        %v2466 = vunpack.c.h.b16 %v1266
        %v2467 = vunpack.c.l.b16 %v1267
        %v2468 = vunpack.c.h.b16 %v1267
        %v2469 = vunpack.c.l.b16 %v1268
        %v2470 = vunpack.c.h.b16 %v1268
        %v2471 = vunpack.c.l.b16 %v1269
        %v2472 = vunpack.c.h.b16 %v1269
        %v2473 = vunpack.c.l.b16 %v1270
        %v2474 = vunpack.c.h.b16 %v1270
        %v2475 = vunpack.c.l.b16 %v1271
        %v2476 = vunpack.c.h.b16 %v1271
        %v2477 = vunpack.c.l.b16 %v1272
        %v2478 = vunpack.c.h.b16 %v1272
        %v2479 = vunpack.c.l.b16 %v1273
        %v2480 = vunpack.c.h.b16 %v1273
        %v2481 = vunpack.c.l.b16 %v1274
        %v2482 = vunpack.c.h.b16 %v1274
        %v2483 = vunpack.c.l.b16 %v1275
        %v2484 = vunpack.c.h.b16 %v1275
        %v2485 = vunpack.c.l.b16 %v1276
        %v2486 = vunpack.c.h.b16 %v1276
        %v2487 = vunpack.c.l.b16 %v1277
        %v2488 = vunpack.c.h.b16 %v1277
        %v2489 = vunpack.c.l.b16 %v1278
        %v2490 = vunpack.c.h.b16 %v1278
        %v2491 = vunpack.c.l.b16 %v1279
        %v2492 = vunpack.c.h.b16 %v1279
        %v2493 = vunpack.c.l.b16 %v1280
        %v2494 = vunpack.c.h.b16 %v1280
        %v2495 = vunpack.c.l.b16 %v1281
        %v2496 = vunpack.c.h.b16 %v1281
        %v2497 = vunpack.c.l.b16 %v1282
        %v2498 = vunpack.c.h.b16 %v1282
        %v2499 = vunpack.c.l.b16 %v1283
        %v2500 = vunpack.c.h.b16 %v1283
        %v2501 = vunpack.c.l.b16 %v1284
        %v2502 = vunpack.c.h.b16 %v1284
        %v2503 = vunpack.c.l.b16 %v1285
        %v2504 = vunpack.c.h.b16 %v1285
        %v2505 = vunpack.c.l.b16 %v1286
        %v2506 = vunpack.c.h.b16 %v1286
        %v2507 = vunpack.c.l.b16 %v1287
        %v2508 = vunpack.c.h.b16 %v1287
        %v2509 = vunpack.c.l.b16 %v1288
        %v2510 = vunpack.c.h.b16 %v1288
        %v2511 = vunpack.c.l.b16 %v1289
        %v2512 = vunpack.c.h.b16 %v1289
        %v2513 = vunpack.c.l.b16 %v1290
        %v2514 = vunpack.c.h.b16 %v1290
        %v2515 = vunpack.c.l.b16 %v1291
        %v2516 = vunpack.c.h.b16 %v1291
        %v2517 = vunpack.c.l.b16 %v1292
        %v2518 = vunpack.c.h.b16 %v1292
        %v2519 = vunpack.c.l.b16 %v1293
        %v2520 = vunpack.c.h.b16 %v1293
        %v2521 = vunpack.c.l.b16 %v1294
        %v2522 = vunpack.c.h.b16 %v1294
        %v2523 = vunpack.c.l.b16 %v1295
        %v2524 = vunpack.c.h.b16 %v1295
        %v2525 = vunpack.c.l.b16 %v1296
        %v2526 = vunpack.c.h.b16 %v1296
        %v2527 = vunpack.c.l.b16 %v1297
        %v2528 = vunpack.c.h.b16 %v1297
        %v2529 = vunpack.c.l.b16 %v1298
        %v2530 = vunpack.c.h.b16 %v1298
        %v2531 = vunpack.c.l.b16 %v1299
        %v2532 = vunpack.c.h.b16 %v1299
        %v2533 = vunpack.c.l.b16 %v1300
        %v2534 = vunpack.c.h.b16 %v1300
        %v2535 = vunpack.c.l.b16 %v1301
        %v2536 = vunpack.c.h.b16 %v1301
        %v2537 = vunpack.c.l.b16 %v1302
        %v2538 = vunpack.c.h.b16 %v1302
        %v2539 = vunpack.c.l.b16 %v1303
        %v2540 = vunpack.c.h.b16 %v1303
        %v2541 = vunpack.c.l.b16 %v1304
        %v2542 = vunpack.c.h.b16 %v1304
        %v2543 = vunpack.c.l.b16 %v1305
        %v2544 = vunpack.c.h.b16 %v1305
        %v2545 = vunpack.c.l.b16 %v1306
        %v2546 = vunpack.c.h.b16 %v1306
        %v2547 = vunpack.c.l.b16 %v1307
        %v2548 = vunpack.c.h.b16 %v1307
        %v2549 = vunpack.c.l.b16 %v1308
        %v2550 = vunpack.c.h.b16 %v1308
        %v2551 = vunpack.c.l.b16 %v1309
        %v2552 = vunpack.c.h.b16 %v1309
        %v2553 = vunpack.c.l.b16 %v1310
        %v2554 = vunpack.c.h.b16 %v1310
        %v2555 = vunpack.c.l.b16 %v1311
        %v2556 = vunpack.c.h.b16 %v1311
        %v2557 = vunpack.c.l.b16 %v1312
        %v2558 = vunpack.c.h.b16 %v1312
        %v2559 = vunpack.c.l.b16 %v1313
        %v2560 = vunpack.c.h.b16 %v1313
        %v2561 = vunpack.c.l.b16 %v1314
        %v2562 = vunpack.c.h.b16 %v1314
        %v2563 = vunpack.c.l.b16 %v1315
        %v2564 = vunpack.c.h.b16 %v1315
        %v2565 = vunpack.c.l.b16 %v1316
        %v2566 = vunpack.c.h.b16 %v1316
        %v2567 = vunpack.c.l.b16 %v1317
        %v2568 = vunpack.c.h.b16 %v1317
        %v2569 = vunpack.c.l.b16 %v1318
        %v2570 = vunpack.c.h.b16 %v1318
        %v2571 = vunpack.c.l.b16 %v1319
        %v2572 = vunpack.c.h.b16 %v1319
        %v2573 = vunpack.c.l.b16 %v1320
        %v2574 = vunpack.c.h.b16 %v1320
        %v2575 = vunpack.c.l.b16 %v1321
        %v2576 = vunpack.c.h.b16 %v1321
        %v2577 = vunpack.c.l.b16 %v1322
        %v2578 = vunpack.c.h.b16 %v1322
        %v2579 = vunpack.c.l.b16 %v1323
        %v2580 = vunpack.c.h.b16 %v1323
        %v2581 = vunpack.c.l.b16 %v1324
        %v2582 = vunpack.c.h.b16 %v1324
        %v2583 = vunpack.c.l.b16 %v1325
        %v2584 = vunpack.c.h.b16 %v1325
        %v2585 = vunpack.c.l.b16 %v1326
        %v2586 = vunpack.c.h.b16 %v1326
        %v2587 = vunpack.c.l.b16 %v1327
        %v2588 = vunpack.c.h.b16 %v1327
        %v2589 = vunpack.c.l.b16 %v1328
        %v2590 = vunpack.c.h.b16 %v1328
        %v2591 = vunpack.c.l.b16 %v1329
        %v2592 = vunpack.c.h.b16 %v1329
        %v2593 = vunpack.c.l.b16 %v1330
        %v2594 = vunpack.c.h.b16 %v1330
        %v2595 = vunpack.c.l.b16 %v1331
        %v2596 = vunpack.c.h.b16 %v1331
        %v2597 = vunpack.c.l.b16 %v1332
        %v2598 = vunpack.c.h.b16 %v1332
        %v2599 = vunpack.c.l.b16 %v1333
        %v2600 = vunpack.c.h.b16 %v1333
        %v2601 = vunpack.c.l.b16 %v1334
        %v2602 = vunpack.c.h.b16 %v1334
        %v2603 = vunpack.c.l.b16 %v1335
        %v2604 = vunpack.c.h.b16 %v1335
        %v2605 = vunpack.c.l.b16 %v1336
        %v2606 = vunpack.c.h.b16 %v1336
        %v2607 = vunpack.c.l.b16 %v1337
        %v2608 = vunpack.c.h.b16 %v1337
        %v2609 = vunpack.c.l.b16 %v1338
        %v2610 = vunpack.c.h.b16 %v1338
        %v2611 = vunpack.c.l.b16 %v1339
        %v2612 = vunpack.c.h.b16 %v1339
        %v2613 = vunpack.c.l.b16 %v1340
        %v2614 = vunpack.c.h.b16 %v1340
        %v2615 = vunpack.c.l.b16 %v1341
        %v2616 = vunpack.c.h.b16 %v1341
        %v2617 = vunpack.c.l.b16 %v1342
        %v2618 = vunpack.c.h.b16 %v1342
        %v2619 = vunpack.c.l.b16 %v1343
        %v2620 = vunpack.c.h.b16 %v1343
        %v2621 = vunpack.c.l.b16 %v1344
        %v2622 = vunpack.c.h.b16 %v1344
        %v2623 = vunpack.c.l.b16 %v1345
        %v2624 = vunpack.c.h.b16 %v1345
        %v2625 = vunpack.c.l.b16 %v1346
        %v2626 = vunpack.c.h.b16 %v1346
        %v2627 = vunpack.c.l.b16 %v1347
        %v2628 = vunpack.c.h.b16 %v1347
        %v2629 = vunpack.c.l.b16 %v1348
        %v2630 = vunpack.c.h.b16 %v1348
        %v2631 = vunpack.c.l.b16 %v1349
        %v2632 = vunpack.c.h.b16 %v1349
        %v2633 = vunpack.c.l.b16 %v1350
        %v2634 = vunpack.c.h.b16 %v1350
        %v2635 = vunpack.c.l.b16 %v1351
        %v2636 = vunpack.c.h.b16 %v1351
        %v2637 = vunpack.c.l.b16 %v1352
        %v2638 = vunpack.c.h.b16 %v1352
        %v2639 = vunpack.c.l.b16 %v1353
        %v2640 = vunpack.c.h.b16 %v1353
        %v2641 = vunpack.c.l.b16 %v1354
        %v2642 = vunpack.c.h.b16 %v1354
        %v2643 = vunpack.c.l.b16 %v1355
        %v2644 = vunpack.c.h.b16 %v1355
        %v2645 = vunpack.c.l.b16 %v1356
        %v2646 = vunpack.c.h.b16 %v1356
        %v2647 = vunpack.c.l.b16 %v1357
        %v2648 = vunpack.c.h.b16 %v1357
        %v2649 = vunpack.c.l.b16 %v1358
        %v2650 = vunpack.c.h.b16 %v1358
        %v2651 = vunpack.c.l.b16 %v1359
        %v2652 = vunpack.c.h.b16 %v1359
        %v2653 = vunpack.c.l.b16 %v1360
        %v2654 = vunpack.c.h.b16 %v1360
        %v2655 = vunpack.c.l.b16 %v1361
        %v2656 = vunpack.c.h.b16 %v1361
        %v2657 = vunpack.c.l.b16 %v1362
        %v2658 = vunpack.c.h.b16 %v1362
        %v2659 = vunpack.c.l.b16 %v1363
        %v2660 = vunpack.c.h.b16 %v1363
        %v2661 = vunpack.c.l.b16 %v1364
        %v2662 = vunpack.c.h.b16 %v1364
        %v2663 = vunpack.c.l.b16 %v1365
        %v2664 = vunpack.c.h.b16 %v1365
        %v2665 = vunpack.c.l.b16 %v1366
        %v2666 = vunpack.c.h.b16 %v1366
        %v2667 = vunpack.c.l.b16 %v1367
        %v2668 = vunpack.c.h.b16 %v1367
        %v2669 = vunpack.c.l.b16 %v1368
        %v2670 = vunpack.c.h.b16 %v1368
        %v2671 = vunpack.c.l.b16 %v1369
        %v2672 = vunpack.c.h.b16 %v1369
        %v2673 = vunpack.c.l.b16 %v1370
        %v2674 = vunpack.c.h.b16 %v1370
        %v2675 = vunpack.c.l.b16 %v1371
        %v2676 = vunpack.c.h.b16 %v1371
        %v2677 = vunpack.c.l.b16 %v1372
        %v2678 = vunpack.c.h.b16 %v1372
        %v2679 = vunpack.c.l.b16 %v1373
        %v2680 = vunpack.c.h.b16 %v1373
        %v2681 = vunpack.c.l.b16 %v1374
        %v2682 = vunpack.c.h.b16 %v1374
        %v2683 = vunpack.c.l.b16 %v1375
        %v2684 = vunpack.c.h.b16 %v1375
        %v2685 = vunpack.c.l.b16 %v1376
        %v2686 = vunpack.c.h.b16 %v1376
        %v2687 = vunpack.c.l.b16 %v1377
        %v2688 = vunpack.c.h.b16 %v1377
        %v2689 = vunpack.c.l.b16 %v1378
        %v2690 = vunpack.c.h.b16 %v1378
        %v2691 = vunpack.c.l.b16 %v1379
        %v2692 = vunpack.c.h.b16 %v1379
        %v2693 = vunpack.c.l.b16 %v1380
        %v2694 = vunpack.c.h.b16 %v1380
        %v2695 = vunpack.c.l.b16 %v1381
        %v2696 = vunpack.c.h.b16 %v1381
        %v2697 = vunpack.c.l.b16 %v1382
        %v2698 = vunpack.c.h.b16 %v1382
        %v2699 = vunpack.c.l.b16 %v1383
        %v2700 = vunpack.c.h.b16 %v1383
        %v2701 = vunpack.c.l.b16 %v1384
        %v2702 = vunpack.c.h.b16 %v1384
        %v2703 = vunpack.c.l.b16 %v1385
        %v2704 = vunpack.c.h.b16 %v1385
        %v2705 = vunpack.c.l.b16 %v1386
        %v2706 = vunpack.c.h.b16 %v1386
        %v2707 = vunpack.c.l.b16 %v1387
        %v2708 = vunpack.c.h.b16 %v1387
        %v2709 = vunpack.c.l.b16 %v1388
        %v2710 = vunpack.c.h.b16 %v1388
        %v2711 = vunpack.c.l.b16 %v1389
        %v2712 = vunpack.c.h.b16 %v1389
        %v2713 = vunpack.c.l.b16 %v1390
        %v2714 = vunpack.c.h.b16 %v1390
        %v2715 = vunpack.c.l.b16 %v1391
        %v2716 = vunpack.c.h.b16 %v1391
        %v2717 = vunpack.c.l.b16 %v1392
        %v2718 = vunpack.c.h.b16 %v1392
        %v2719 = vunpack.c.l.b16 %v1393
        %v2720 = vunpack.c.h.b16 %v1393
        %v2721 = vunpack.c.l.b16 %v1394
        %v2722 = vunpack.c.h.b16 %v1394
        %v2723 = vunpack.c.l.b16 %v1395
        %v2724 = vunpack.c.h.b16 %v1395
        %v2725 = vunpack.c.l.b16 %v1396
        %v2726 = vunpack.c.h.b16 %v1396
        %v2727 = vunpack.c.l.b16 %v1397
        %v2728 = vunpack.c.h.b16 %v1397
        %v2729 = vunpack.c.l.b16 %v1398
        %v2730 = vunpack.c.h.b16 %v1398
        %v2731 = vunpack.c.l.b16 %v1399
        %v2732 = vunpack.c.h.b16 %v1399
        %v2733 = vunpack.c.l.b16 %v1400
        %v2734 = vunpack.c.h.b16 %v1400
        %v2735 = vunpack.c.l.b16 %v1401
        %v2736 = vunpack.c.h.b16 %v1401
        %v2737 = vunpack.c.l.b16 %v1402
        %v2738 = vunpack.c.h.b16 %v1402
        %v2739 = vunpack.c.l.b16 %v1403
        %v2740 = vunpack.c.h.b16 %v1403
        %v2741 = vunpack.c.l.b16 %v1404
        %v2742 = vunpack.c.h.b16 %v1404
        %v2743 = vunpack.c.l.b16 %v1405
        %v2744 = vunpack.c.h.b16 %v1405
        %v2745 = vunpack.c.l.b16 %v1406
        %v2746 = vunpack.c.h.b16 %v1406
        %v2747 = vunpack.c.l.b16 %v1407
        %v2748 = vunpack.c.h.b16 %v1407
        %v2749 = vunpack.c.l.b16 %v1408
        %v2750 = vunpack.c.h.b16 %v1408
        %v2751 = vunpack.c.l.b16 %v1409
        %v2752 = vunpack.c.h.b16 %v1409
        %v2753 = vunpack.c.l.b16 %v1410
        %v2754 = vunpack.c.h.b16 %v1410
        %v2755 = vunpack.c.l.b16 %v1411
        %v2756 = vunpack.c.h.b16 %v1411
        %v2757 = vunpack.c.l.b16 %v1412
        %v2758 = vunpack.c.h.b16 %v1412
        %v2759 = vunpack.c.l.b16 %v1413
        %v2760 = vunpack.c.h.b16 %v1413
        %v2761 = vunpack.c.l.b16 %v1414
        %v2762 = vunpack.c.h.b16 %v1414
        %v2763 = vunpack.c.l.b16 %v1415
        %v2764 = vunpack.c.h.b16 %v1415
        %v2765 = vunpack.c.l.b16 %v1416
        %v2766 = vunpack.c.h.b16 %v1416
        %v2767 = vunpack.c.l.b16 %v1417
        %v2768 = vunpack.c.h.b16 %v1417
        %v2769 = vunpack.c.l.b16 %v1418
        %v2770 = vunpack.c.h.b16 %v1418
        %v2771 = vunpack.c.l.b16 %v1419
        %v2772 = vunpack.c.h.b16 %v1419
        %v2773 = vunpack.c.l.b16 %v1420
        %v2774 = vunpack.c.h.b16 %v1420
        %v2775 = vunpack.c.l.b16 %v1421
        %v2776 = vunpack.c.h.b16 %v1421
        %v2777 = vunpack.c.l.b16 %v1422
        %v2778 = vunpack.c.h.b16 %v1422
        %v2779 = vunpack.c.l.b16 %v1423
        %v2780 = vunpack.c.h.b16 %v1423
        %v2781 = vunpack.c.l.b16 %v1424
        %v2782 = vunpack.c.h.b16 %v1424
        %v2783 = vunpack.c.l.b16 %v1425
        %v2784 = vunpack.c.h.b16 %v1425
        %v2785 = vunpack.c.l.b16 %v1426
        %v2786 = vunpack.c.h.b16 %v1426
        %v2787 = vunpack.c.l.b16 %v1427
        %v2788 = vunpack.c.h.b16 %v1427
        %v2789 = vunpack.c.l.b16 %v1428
        %v2790 = vunpack.c.h.b16 %v1428
        %v2791 = vunpack.c.l.b16 %v1429
        %v2792 = vunpack.c.h.b16 %v1429
        %v2793 = vunpack.c.l.b16 %v1430
        %v2794 = vunpack.c.h.b16 %v1430
        %v2795 = vunpack.c.l.b16 %v1431
        %v2796 = vunpack.c.h.b16 %v1431
        %v2797 = vunpack.c.l.b16 %v1432
        %v2798 = vunpack.c.h.b16 %v1432
        %v2799 = vunpack.c.l.b16 %v1433
        %v2800 = vunpack.c.h.b16 %v1433
        %v2801 = vunpack.c.l.b16 %v1434
        %v2802 = vunpack.c.h.b16 %v1434
        %v2803 = vunpack.c.l.b16 %v1435
        %v2804 = vunpack.c.h.b16 %v1435
        %v2805 = vunpack.c.l.b16 %v1436
        %v2806 = vunpack.c.h.b16 %v1436
        %v2807 = vunpack.c.l.b16 %v1437
        %v2808 = vunpack.c.h.b16 %v1437
        %v2809 = vunpack.c.l.b16 %v1438
        %v2810 = vunpack.c.h.b16 %v1438
        %v2811 = vunpack.c.l.b16 %v1439
        %v2812 = vunpack.c.h.b16 %v1439
        %v2813 = vunpack.c.l.b16 %v1440
        %v2814 = vunpack.c.h.b16 %v1440
        %v2815 = vunpack.c.l.b16 %v1441
        %v2816 = vunpack.c.h.b16 %v1441
        %v2817 = vunpack.c.l.b16 %v1442
        %v2818 = vunpack.c.h.b16 %v1442
        %v2819 = vunpack.c.l.b16 %v1443
        %v2820 = vunpack.c.h.b16 %v1443
        %v2821 = vunpack.c.l.b16 %v1444
        %v2822 = vunpack.c.h.b16 %v1444
        %v2823 = vunpack.c.l.b16 %v1445
        %v2824 = vunpack.c.h.b16 %v1445
        %v2825 = vunpack.c.l.b16 %v1446
        %v2826 = vunpack.c.h.b16 %v1446
        %v2827 = vunpack.c.l.b16 %v1447
        %v2828 = vunpack.c.h.b16 %v1447
        %v2829 = vunpack.c.l.b16 %v1448
        %v2830 = vunpack.c.h.b16 %v1448
        %v2831 = vunpack.c.l.b16 %v1449
        %v2832 = vunpack.c.h.b16 %v1449
        %v2833 = vunpack.c.l.b16 %v1450
        %v2834 = vunpack.c.h.b16 %v1450
        %v2835 = vunpack.c.l.b16 %v1451
        %v2836 = vunpack.c.h.b16 %v1451
        %v2837 = vunpack.c.l.b16 %v1452
        %v2838 = vunpack.c.h.b16 %v1452
        %v2839 = vunpack.c.l.b16 %v1453
        %v2840 = vunpack.c.h.b16 %v1453
        %v2841 = vunpack.c.l.b16 %v1454
        %v2842 = vunpack.c.h.b16 %v1454
        %v2843 = vunpack.c.l.b16 %v1455
        %v2844 = vunpack.c.h.b16 %v1455
        %v2845 = vunpack.c.l.b16 %v1456
        %v2846 = vunpack.c.h.b16 %v1456
        %v2847 = vunpack.c.l.b16 %v1457
        %v2848 = vunpack.c.h.b16 %v1457
        %v2849 = vunpack.c.l.b16 %v1458
        %v2850 = vunpack.c.h.b16 %v1458
        %v2851 = vunpack.c.l.b16 %v1459
        %v2852 = vunpack.c.h.b16 %v1459
        %v2853 = vunpack.c.l.b16 %v1460
        %v2854 = vunpack.c.h.b16 %v1460
        %v2855 = vunpack.c.l.b16 %v1461
        %v2856 = vunpack.c.h.b16 %v1461
        %v2857 = vunpack.c.l.b16 %v1462
        %v2858 = vunpack.c.h.b16 %v1462
        %v2859 = vunpack.c.l.b16 %v1463
        %v2860 = vunpack.c.h.b16 %v1463
        %v2861 = vunpack.c.l.b16 %v1464
        %v2862 = vunpack.c.h.b16 %v1464
        %v2863 = vunpack.c.l.b16 %v1465
        %v2864 = vunpack.c.h.b16 %v1465
        %v2865 = vunpack.c.l.b16 %v1466
        %v2866 = vunpack.c.h.b16 %v1466
        %v2867 = vunpack.c.l.b16 %v1467
        %v2868 = vunpack.c.h.b16 %v1467
        %v2869 = vunpack.c.l.b16 %v1468
        %v2870 = vunpack.c.h.b16 %v1468
        %v2871 = vunpack.c.l.b16 %v1469
        %v2872 = vunpack.c.h.b16 %v1469
        %v2873 = vunpack.c.l.b16 %v1470
        %v2874 = vunpack.c.h.b16 %v1470
        %v2875 = vunpack.c.l.b16 %v1471
        %v2876 = vunpack.c.h.b16 %v1471
        %v2877 = vunpack.c.l.b16 %v1472
        %v2878 = vunpack.c.h.b16 %v1472
        %v2879 = vunpack.c.l.b16 %v1473
        %v2880 = vunpack.c.h.b16 %v1473
        %v2881 = vunpack.c.l.b16 %v1474
        %v2882 = vunpack.c.h.b16 %v1474
        %v2883 = vunpack.c.l.b16 %v1475
        %v2884 = vunpack.c.h.b16 %v1475
        %v2885 = vunpack.c.l.b16 %v1476
        %v2886 = vunpack.c.h.b16 %v1476
        %v2887 = vunpack.c.l.b16 %v1477
        %v2888 = vunpack.c.h.b16 %v1477
        %v2889 = vunpack.c.l.b16 %v1478
        %v2890 = vunpack.c.h.b16 %v1478
        %v2891 = vunpack.c.l.b16 %v1479
        %v2892 = vunpack.c.h.b16 %v1479
        %v2893 = vunpack.c.l.b16 %v1480
        %v2894 = vunpack.c.h.b16 %v1480
        %v2895 = vunpack.c.l.b16 %v1481
        %v2896 = vunpack.c.h.b16 %v1481
        %v2897 = vunpack.c.l.b16 %v1482
        %v2898 = vunpack.c.h.b16 %v1482
        %v2899 = vunpack.c.l.b16 %v1483
        %v2900 = vunpack.c.h.b16 %v1483
        %v2901 = vunpack.c.l.b16 %v1484
        %v2902 = vunpack.c.h.b16 %v1484
        %v2903 = vunpack.c.l.b16 %v1485
        %v2904 = vunpack.c.h.b16 %v1485
        %v2905 = vunpack.c.l.b16 %v1486
        %v2906 = vunpack.c.h.b16 %v1486
        %v2907 = vunpack.c.l.b16 %v1487
        %v2908 = vunpack.c.h.b16 %v1487
        %v2909 = vunpack.c.l.b16 %v1488
        %v2910 = vunpack.c.h.b16 %v1488
        %v2911 = vunpack.c.l.b16 %v1489
        %v2912 = vunpack.c.h.b16 %v1489
        %v2913 = vunpack.c.l.b16 %v1490
        %v2914 = vunpack.c.h.b16 %v1490
        %v2915 = vunpack.c.l.b16 %v1491
        %v2916 = vunpack.c.h.b16 %v1491
        %v2917 = vunpack.c.l.b16 %v1492
        %v2918 = vunpack.c.h.b16 %v1492
        %v2919 = vunpack.c.l.b16 %v1493
        %v2920 = vunpack.c.h.b16 %v1493
        %v2921 = vunpack.c.l.b16 %v1494
        %v2922 = vunpack.c.h.b16 %v1494
        %v2923 = vunpack.c.l.b16 %v1495
        %v2924 = vunpack.c.h.b16 %v1495
        %v2925 = vunpack.c.l.b16 %v1496
        %v2926 = vunpack.c.h.b16 %v1496
        %v2927 = vunpack.c.l.b16 %v1497
        %v2928 = vunpack.c.h.b16 %v1497
        %v2929 = vunpack.c.l.b16 %v1498
        %v2930 = vunpack.c.h.b16 %v1498
        %v2931 = vunpack.c.l.b16 %v1499
        %v2932 = vunpack.c.h.b16 %v1499
        %v2933 = vunpack.c.l.b16 %v1500
        %v2934 = vunpack.c.h.b16 %v1500
        %v2935 = vunpack.c.l.b16 %v1501
        %v2936 = vunpack.c.h.b16 %v1501
        %v2937 = vunpack.c.l.b16 %v1502
        %v2938 = vunpack.c.h.b16 %v1502
        %v2939 = vunpack.c.l.b16 %v1503
        %v2940 = vunpack.c.h.b16 %v1503
        %v2941 = vunpack.c.l.b16 %v1504
        %v2942 = vunpack.c.h.b16 %v1504
        %v2943 = vunpack.c.l.b16 %v1505
        %v2944 = vunpack.c.h.b16 %v1505
        %v2945 = vunpack.c.l.b16 %v1506
        %v2946 = vunpack.c.h.b16 %v1506
        %v2947 = vunpack.c.l.b16 %v1507
        %v2948 = vunpack.c.h.b16 %v1507
        %v2949 = vunpack.c.l.b16 %v1508
        %v2950 = vunpack.c.h.b16 %v1508
        %v2951 = vunpack.c.l.b16 %v1509
        %v2952 = vunpack.c.h.b16 %v1509
        %v2953 = vunpack.c.l.b16 %v1510
        %v2954 = vunpack.c.h.b16 %v1510
        %v2955 = vunpack.c.l.b16 %v1511
        %v2956 = vunpack.c.h.b16 %v1511
        %v2957 = vunpack.c.l.b16 %v1512
        %v2958 = vunpack.c.h.b16 %v1512
        %v2959 = vunpack.c.l.b16 %v1513
        %v2960 = vunpack.c.h.b16 %v1513
        %v2961 = vunpack.c.l.b16 %v1514
        %v2962 = vunpack.c.h.b16 %v1514
        %v2963 = vunpack.c.l.b16 %v1515
        %v2964 = vunpack.c.h.b16 %v1515
        %v2965 = vunpack.c.l.b16 %v1516
        %v2966 = vunpack.c.h.b16 %v1516
        %v2967 = vunpack.c.l.b16 %v1517
        %v2968 = vunpack.c.h.b16 %v1517
        %v2969 = vunpack.c.l.b16 %v1518
        %v2970 = vunpack.c.h.b16 %v1518
        %v2971 = vunpack.c.l.b16 %v1519
        %v2972 = vunpack.c.h.b16 %v1519
        %v2973 = vunpack.c.l.b16 %v1520
        %v2974 = vunpack.c.h.b16 %v1520
        %v2975 = vunpack.c.l.b16 %v1521
        %v2976 = vunpack.c.h.b16 %v1521
        %v2977 = vunpack.c.l.b16 %v1522
        %v2978 = vunpack.c.h.b16 %v1522
        %v2979 = vunpack.c.l.b16 %v1523
        %v2980 = vunpack.c.h.b16 %v1523
        %v2981 = vunpack.c.l.b16 %v1524
        %v2982 = vunpack.c.h.b16 %v1524
        %v2983 = vunpack.c.l.b16 %v1525
        %v2984 = vunpack.c.h.b16 %v1525
        %v2985 = vunpack.c.l.b16 %v1526
        %v2986 = vunpack.c.h.b16 %v1526
        %v2987 = vunpack.c.l.b16 %v1527
        %v2988 = vunpack.c.h.b16 %v1527
        %v2989 = vunpack.c.l.b16 %v1528
        %v2990 = vunpack.c.h.b16 %v1528
        %v2991 = vunpack.c.l.b16 %v1529
        %v2992 = vunpack.c.h.b16 %v1529
        %v2993 = vunpack.c.l.b16 %v1530
        %v2994 = vunpack.c.h.b16 %v1530
        %v2995 = vunpack.c.l.b16 %v1531
        %v2996 = vunpack.c.h.b16 %v1531
        %v2997 = vunpack.c.l.b16 %v1532
        %v2998 = vunpack.c.h.b16 %v1532
        %v2999 = vunpack.c.l.b16 %v1533
        %v3000 = vunpack.c.h.b16 %v1533
        %v3001 = vunpack.c.l.b16 %v1534
        %v3002 = vunpack.c.h.b16 %v1534
        %v3003 = vunpack.c.l.b16 %v1535
        %v3004 = vunpack.c.h.b16 %v1535
        %v3005 = vunpack.c.l.b16 %v1536
        %v3006 = vunpack.c.h.b16 %v1536
        %v3007 = vunpack.c.l.b16 %v1537
        %v3008 = vunpack.c.h.b16 %v1537
        %v3009 = vunpack.c.l.b16 %v1538
        %v3010 = vunpack.c.h.b16 %v1538
        %v3011 = vunpack.c.l.b16 %v1539
        %v3012 = vunpack.c.h.b16 %v1539
        %v3013 = vunpack.c.l.b16 %v1540
        %v3014 = vunpack.c.h.b16 %v1540
        %v3015 = vunpack.c.l.b16 %v1541
        %v3016 = vunpack.c.h.b16 %v1541
        %v3017 = vunpack.c.l.b16 %v1542
        %v3018 = vunpack.c.h.b16 %v1542
        %v3019 = vunpack.c.l.b16 %v1543
        %v3020 = vunpack.c.h.b16 %v1543
        %v3021 = vunpack.c.l.b16 %v1544
        %v3022 = vunpack.c.h.b16 %v1544
        %v3023 = vunpack.c.l.b16 %v1545
        %v3024 = vunpack.c.h.b16 %v1545
        %v3025 = vunpack.c.l.b16 %v1546
        %v3026 = vunpack.c.h.b16 %v1546
        %v3027 = vunpack.c.l.b16 %v1547
        %v3028 = vunpack.c.h.b16 %v1547
        %v3029 = vunpack.c.l.b16 %v1548
        %v3030 = vunpack.c.h.b16 %v1548
        %v3031 = vunpack.c.l.b16 %v1549
        %v3032 = vunpack.c.h.b16 %v1549
        %v3033 = vunpack.c.l.b16 %v1550
        %v3034 = vunpack.c.h.b16 %v1550
        %v3035 = vunpack.c.l.b16 %v1551
        %v3036 = vunpack.c.h.b16 %v1551
        %v3037 = vunpack.c.l.b16 %v1552
        %v3038 = vunpack.c.h.b16 %v1552
        %v3039 = vunpack.c.l.b16 %v1553
        %v3040 = vunpack.c.h.b16 %v1553
        %v3041 = vunpack.c.l.b16 %v1554
        %v3042 = vunpack.c.h.b16 %v1554
        %v3043 = vunpack.c.l.b16 %v1555
        %v3044 = vunpack.c.h.b16 %v1555
        %v3045 = vunpack.c.l.b16 %v1556
        %v3046 = vunpack.c.h.b16 %v1556
        %v3047 = vunpack.c.l.b16 %v1557
        %v3048 = vunpack.c.h.b16 %v1557
        %v3049 = vunpack.c.l.b16 %v1558
        %v3050 = vunpack.c.h.b16 %v1558
        %v3051 = vunpack.c.l.b16 %v1559
        %v3052 = vunpack.c.h.b16 %v1559
        %v3053 = vunpack.c.l.b16 %v1560
        %v3054 = vunpack.c.h.b16 %v1560
        %v3055 = vunpack.c.l.b16 %v1561
        %v3056 = vunpack.c.h.b16 %v1561
        %v3057 = vunpack.c.l.b16 %v1562
        %v3058 = vunpack.c.h.b16 %v1562
        %v3059 = vunpack.c.l.b16 %v1563
        %v3060 = vunpack.c.h.b16 %v1563
        %v3061 = vunpack.c.l.b16 %v1564
        %v3062 = vunpack.c.h.b16 %v1564
        %v3063 = vunpack.c.l.b16 %v1565
        %v3064 = vunpack.c.h.b16 %v1565
        %v3065 = vunpack.c.l.b16 %v1566
        %v3066 = vunpack.c.h.b16 %v1566
        %v3067 = vunpack.c.l.b16 %v1567
        %v3068 = vunpack.c.h.b16 %v1567
        %v3069 = vunpack.c.l.b16 %v1568
        %v3070 = vunpack.c.h.b16 %v1568
        %v3071 = vunpack.c.l.b16 %v1569
        %v3072 = vunpack.c.h.b16 %v1569
        %v3073 = vunpack.c.l.b16 %v1570
        %v3074 = vunpack.c.h.b16 %v1570
        %v3075 = vunpack.c.l.b16 %v1571
        %v3076 = vunpack.c.h.b16 %v1571
        %v3077 = vunpack.c.l.b16 %v1572
        %v3078 = vunpack.c.h.b16 %v1572
        %v3079 = vunpack.c.l.b16 %v1573
        %v3080 = vunpack.c.h.b16 %v1573
        %v3081 = vunpack.c.l.b16 %v1574
        %v3082 = vunpack.c.h.b16 %v1574
        %v3083 = vunpack.c.l.b16 %v1575
        %v3084 = vunpack.c.h.b16 %v1575
        %v3085 = vunpack.c.l.b16 %v1576
        %v3086 = vunpack.c.h.b16 %v1576
        %v3087 = vunpack.c.l.b16 %v1577
        %v3088 = vunpack.c.h.b16 %v1577
        %v3089 = vunpack.c.l.b16 %v1578
        %v3090 = vunpack.c.h.b16 %v1578
        %v3091 = vunpack.c.l.b16 %v1579
        %v3092 = vunpack.c.h.b16 %v1579
        %v3093 = vunpack.c.l.b16 %v1580
        %v3094 = vunpack.c.h.b16 %v1580
        %v3095 = vunpack.c.l.b16 %v1581
        %v3096 = vunpack.c.h.b16 %v1581
        %v3097 = vunpack.c.l.b16 %v1582
        %v3098 = vunpack.c.h.b16 %v1582
        %v3099 = vunpack.c.l.b16 %v1583
        %v3100 = vunpack.c.h.b16 %v1583
        %v3101 = vunpack.c.l.b16 %v1584
        %v3102 = vunpack.c.h.b16 %v1584
        %v3103 = vunpack.c.l.b16 %v1585
        %v3104 = vunpack.c.h.b16 %v1585
        %v3105 = vunpack.c.l.b16 %v1586
        %v3106 = vunpack.c.h.b16 %v1586
        %v3107 = vunpack.c.l.b16 %v1587
        %v3108 = vunpack.c.h.b16 %v1587
        %v3109 = vunpack.c.l.b16 %v1588
        %v3110 = vunpack.c.h.b16 %v1588
        %v3111 = vunpack.c.l.b16 %v1589
        %v3112 = vunpack.c.h.b16 %v1589
        %v3113 = vunpack.c.l.b16 %v1590
        %v3114 = vunpack.c.h.b16 %v1590
        %v3115 = vunpack.c.l.b16 %v1591
        %v3116 = vunpack.c.h.b16 %v1591
        %v3117 = vunpack.c.l.b16 %v1592
        %v3118 = vunpack.c.h.b16 %v1592
        %v3119 = vunpack.c.l.b16 %v1593
        %v3120 = vunpack.c.h.b16 %v1593
        %v3121 = vunpack.c.l.b16 %v1594
        %v3122 = vunpack.c.h.b16 %v1594
        %v3123 = vunpack.c.l.b16 %v1595
        %v3124 = vunpack.c.h.b16 %v1595
        %v3125 = vunpack.c.l.b16 %v1596
        %v3126 = vunpack.c.h.b16 %v1596
        %v3127 = vunpack.c.l.b16 %v1597
        %v3128 = vunpack.c.h.b16 %v1597
        %v3129 = vunpack.c.l.b16 %v1598
        %v3130 = vunpack.c.h.b16 %v1598
        %v3131 = vunpack.c.l.b16 %v1599
        %v3132 = vunpack.c.h.b16 %v1599
        %v3133 = vunpack.c.l.b16 %v1600
        %v3134 = vunpack.c.h.b16 %v1600
        %v3135 = vunpack.c.l.b16 %v1601
        %v3136 = vunpack.c.h.b16 %v1601
        %v3137 = vunpack.c.l.b16 %v1602
        %v3138 = vunpack.c.h.b16 %v1602
        %v3139 = vpack.c.b16 %v2119, %v2115
        %v3140 = vpack.c.b16 %v2120, %v2116
        %v3141 = vpack.c.b16 %v2121, %v2117
        %v3142 = vpack.c.b16 %v2122, %v2118
        %v3143 = vpack.c.b16 %v2127, %v2123
        %v3144 = vpack.c.b16 %v2128, %v2124
        %v3145 = vpack.c.b16 %v2129, %v2125
        %v3146 = vpack.c.b16 %v2130, %v2126
        %v3147 = vpack.c.b16 %v2135, %v2131
        %v3148 = vpack.c.b16 %v2136, %v2132
        %v3149 = vpack.c.b16 %v2137, %v2133
        %v3150 = vpack.c.b16 %v2138, %v2134
        %v3151 = vpack.c.b16 %v2143, %v2139
        %v3152 = vpack.c.b16 %v2144, %v2140
        %v3153 = vpack.c.b16 %v2145, %v2141
        %v3154 = vpack.c.b16 %v2146, %v2142
        %v3155 = vpack.c.b16 %v2151, %v2147
        %v3156 = vpack.c.b16 %v2152, %v2148
        %v3157 = vpack.c.b16 %v2153, %v2149
        %v3158 = vpack.c.b16 %v2154, %v2150
        %v3159 = vpack.c.b16 %v2159, %v2155
        %v3160 = vpack.c.b16 %v2160, %v2156
        %v3161 = vpack.c.b16 %v2161, %v2157
        %v3162 = vpack.c.b16 %v2162, %v2158
        %v3163 = vpack.c.b16 %v2167, %v2163
        %v3164 = vpack.c.b16 %v2168, %v2164
        %v3165 = vpack.c.b16 %v2169, %v2165
        %v3166 = vpack.c.b16 %v2170, %v2166
        %v3167 = vpack.c.b16 %v2175, %v2171
        %v3168 = vpack.c.b16 %v2176, %v2172
        %v3169 = vpack.c.b16 %v2177, %v2173
        %v3170 = vpack.c.b16 %v2178, %v2174
        %v3171 = vpack.c.b16 %v2183, %v2179
        %v3172 = vpack.c.b16 %v2184, %v2180
        %v3173 = vpack.c.b16 %v2185, %v2181
        %v3174 = vpack.c.b16 %v2186, %v2182
        %v3175 = vpack.c.b16 %v2191, %v2187
        %v3176 = vpack.c.b16 %v2192, %v2188
        %v3177 = vpack.c.b16 %v2193, %v2189
        %v3178 = vpack.c.b16 %v2194, %v2190
        %v3179 = vpack.c.b16 %v2199, %v2195
        %v3180 = vpack.c.b16 %v2200, %v2196
        %v3181 = vpack.c.b16 %v2201, %v2197
        %v3182 = vpack.c.b16 %v2202, %v2198
        %v3183 = vpack.c.b16 %v2207, %v2203
        %v3184 = vpack.c.b16 %v2208, %v2204
        %v3185 = vpack.c.b16 %v2209, %v2205
        %v3186 = vpack.c.b16 %v2210, %v2206
        %v3187 = vpack.c.b16 %v2215, %v2211
        %v3188 = vpack.c.b16 %v2216, %v2212
        %v3189 = vpack.c.b16 %v2217, %v2213
        %v3190 = vpack.c.b16 %v2218, %v2214
        %v3191 = vpack.c.b16 %v2223, %v2219
        %v3192 = vpack.c.b16 %v2224, %v2220
        %v3193 = vpack.c.b16 %v2225, %v2221
        %v3194 = vpack.c.b16 %v2226, %v2222
        %v3195 = vpack.c.b16 %v2231, %v2227
        %v3196 = vpack.c.b16 %v2232, %v2228
        %v3197 = vpack.c.b16 %v2233, %v2229
        %v3198 = vpack.c.b16 %v2234, %v2230
        %v3199 = vpack.c.b16 %v2239, %v2235
        %v3200 = vpack.c.b16 %v2240, %v2236
        %v3201 = vpack.c.b16 %v2241, %v2237
        %v3202 = vpack.c.b16 %v2242, %v2238
        %v3203 = vpack.c.b16 %v2247, %v2243
        %v3204 = vpack.c.b16 %v2248, %v2244
        %v3205 = vpack.c.b16 %v2249, %v2245
        %v3206 = vpack.c.b16 %v2250, %v2246
        %v3207 = vpack.c.b16 %v2255, %v2251
        %v3208 = vpack.c.b16 %v2256, %v2252
        %v3209 = vpack.c.b16 %v2257, %v2253
        %v3210 = vpack.c.b16 %v2258, %v2254
        %v3211 = vpack.c.b16 %v2263, %v2259
        %v3212 = vpack.c.b16 %v2264, %v2260
        %v3213 = vpack.c.b16 %v2265, %v2261
        %v3214 = vpack.c.b16 %v2266, %v2262
        %v3215 = vpack.c.b16 %v2271, %v2267
        %v3216 = vpack.c.b16 %v2272, %v2268
        %v3217 = vpack.c.b16 %v2273, %v2269
        %v3218 = vpack.c.b16 %v2274, %v2270
        %v3219 = vpack.c.b16 %v2279, %v2275
        %v3220 = vpack.c.b16 %v2280, %v2276
        %v3221 = vpack.c.b16 %v2281, %v2277
        %v3222 = vpack.c.b16 %v2282, %v2278
        %v3223 = vpack.c.b16 %v2287, %v2283
        %v3224 = vpack.c.b16 %v2288, %v2284
        %v3225 = vpack.c.b16 %v2289, %v2285
        %v3226 = vpack.c.b16 %v2290, %v2286
        %v3227 = vpack.c.b16 %v2295, %v2291
        %v3228 = vpack.c.b16 %v2296, %v2292
        %v3229 = vpack.c.b16 %v2297, %v2293
        %v3230 = vpack.c.b16 %v2298, %v2294
        %v3231 = vpack.c.b16 %v2303, %v2299
        %v3232 = vpack.c.b16 %v2304, %v2300
        %v3233 = vpack.c.b16 %v2305, %v2301
        %v3234 = vpack.c.b16 %v2306, %v2302
        %v3235 = vpack.c.b16 %v2311, %v2307
        %v3236 = vpack.c.b16 %v2312, %v2308
        %v3237 = vpack.c.b16 %v2313, %v2309
        %v3238 = vpack.c.b16 %v2314, %v2310
        %v3239 = vpack.c.b16 %v2319, %v2315
        %v3240 = vpack.c.b16 %v2320, %v2316
        %v3241 = vpack.c.b16 %v2321, %v2317
        %v3242 = vpack.c.b16 %v2322, %v2318
        %v3243 = vpack.c.b16 %v2327, %v2323
        %v3244 = vpack.c.b16 %v2328, %v2324
        %v3245 = vpack.c.b16 %v2329, %v2325
        %v3246 = vpack.c.b16 %v2330, %v2326
        %v3247 = vpack.c.b16 %v2335, %v2331
        %v3248 = vpack.c.b16 %v2336, %v2332
        %v3249 = vpack.c.b16 %v2337, %v2333
        %v3250 = vpack.c.b16 %v2338, %v2334
        %v3251 = vpack.c.b16 %v2343, %v2339
        %v3252 = vpack.c.b16 %v2344, %v2340
        %v3253 = vpack.c.b16 %v2345, %v2341
        %v3254 = vpack.c.b16 %v2346, %v2342
        %v3255 = vpack.c.b16 %v2351, %v2347
        %v3256 = vpack.c.b16 %v2352, %v2348
        %v3257 = vpack.c.b16 %v2353, %v2349
        %v3258 = vpack.c.b16 %v2354, %v2350
        %v3259 = vpack.c.b16 %v2359, %v2355
        %v3260 = vpack.c.b16 %v2360, %v2356
        %v3261 = vpack.c.b16 %v2361, %v2357
        %v3262 = vpack.c.b16 %v2362, %v2358
        %v3263 = vpack.c.b16 %v2367, %v2363
        %v3264 = vpack.c.b16 %v2368, %v2364
        %v3265 = vpack.c.b16 %v2369, %v2365
        %v3266 = vpack.c.b16 %v2370, %v2366
        %v3267 = vpack.c.b16 %v2375, %v2371
        %v3268 = vpack.c.b16 %v2376, %v2372
        %v3269 = vpack.c.b16 %v2377, %v2373
        %v3270 = vpack.c.b16 %v2378, %v2374
        %v3271 = vpack.c.b16 %v2383, %v2379
        %v3272 = vpack.c.b16 %v2384, %v2380
        %v3273 = vpack.c.b16 %v2385, %v2381
        %v3274 = vpack.c.b16 %v2386, %v2382
        %v3275 = vpack.c.b16 %v2391, %v2387
        %v3276 = vpack.c.b16 %v2392, %v2388
        %v3277 = vpack.c.b16 %v2393, %v2389
        %v3278 = vpack.c.b16 %v2394, %v2390
        %v3279 = vpack.c.b16 %v2399, %v2395
        %v3280 = vpack.c.b16 %v2400, %v2396
        %v3281 = vpack.c.b16 %v2401, %v2397
        %v3282 = vpack.c.b16 %v2402, %v2398
        %v3283 = vpack.c.b16 %v2407, %v2403
        %v3284 = vpack.c.b16 %v2408, %v2404
        %v3285 = vpack.c.b16 %v2409, %v2405
        %v3286 = vpack.c.b16 %v2410, %v2406
        %v3287 = vpack.c.b16 %v2415, %v2411
        %v3288 = vpack.c.b16 %v2416, %v2412
        %v3289 = vpack.c.b16 %v2417, %v2413
        %v3290 = vpack.c.b16 %v2418, %v2414
        %v3291 = vpack.c.b16 %v2423, %v2419
        %v3292 = vpack.c.b16 %v2424, %v2420
        %v3293 = vpack.c.b16 %v2425, %v2421
        %v3294 = vpack.c.b16 %v2426, %v2422
        %v3295 = vpack.c.b16 %v2431, %v2427
        %v3296 = vpack.c.b16 %v2432, %v2428
        %v3297 = vpack.c.b16 %v2433, %v2429
        %v3298 = vpack.c.b16 %v2434, %v2430
        %v3299 = vpack.c.b16 %v2439, %v2435
        %v3300 = vpack.c.b16 %v2440, %v2436
        %v3301 = vpack.c.b16 %v2441, %v2437
        %v3302 = vpack.c.b16 %v2442, %v2438
        %v3303 = vpack.c.b16 %v2447, %v2443
        %v3304 = vpack.c.b16 %v2448, %v2444
        %v3305 = vpack.c.b16 %v2449, %v2445
        %v3306 = vpack.c.b16 %v2450, %v2446
        %v3307 = vpack.c.b16 %v2455, %v2451
        %v3308 = vpack.c.b16 %v2456, %v2452
        %v3309 = vpack.c.b16 %v2457, %v2453
        %v3310 = vpack.c.b16 %v2458, %v2454
        %v3311 = vpack.c.b16 %v2463, %v2459
        %v3312 = vpack.c.b16 %v2464, %v2460
        %v3313 = vpack.c.b16 %v2465, %v2461
        %v3314 = vpack.c.b16 %v2466, %v2462
        %v3315 = vpack.c.b16 %v2471, %v2467
        %v3316 = vpack.c.b16 %v2472, %v2468
        %v3317 = vpack.c.b16 %v2473, %v2469
        %v3318 = vpack.c.b16 %v2474, %v2470
        %v3319 = vpack.c.b16 %v2479, %v2475
        %v3320 = vpack.c.b16 %v2480, %v2476
        %v3321 = vpack.c.b16 %v2481, %v2477
        %v3322 = vpack.c.b16 %v2482, %v2478
        %v3323 = vpack.c.b16 %v2487, %v2483
        %v3324 = vpack.c.b16 %v2488, %v2484
        %v3325 = vpack.c.b16 %v2489, %v2485
        %v3326 = vpack.c.b16 %v2490, %v2486
        %v3327 = vpack.c.b16 %v2495, %v2491
        %v3328 = vpack.c.b16 %v2496, %v2492
        %v3329 = vpack.c.b16 %v2497, %v2493
        %v3330 = vpack.c.b16 %v2498, %v2494
        %v3331 = vpack.c.b16 %v2503, %v2499
        %v3332 = vpack.c.b16 %v2504, %v2500
        %v3333 = vpack.c.b16 %v2505, %v2501
        %v3334 = vpack.c.b16 %v2506, %v2502
        %v3335 = vpack.c.b16 %v2511, %v2507
        %v3336 = vpack.c.b16 %v2512, %v2508
        %v3337 = vpack.c.b16 %v2513, %v2509
        %v3338 = vpack.c.b16 %v2514, %v2510
        %v3339 = vpack.c.b16 %v2519, %v2515
        %v3340 = vpack.c.b16 %v2520, %v2516
        %v3341 = vpack.c.b16 %v2521, %v2517
        %v3342 = vpack.c.b16 %v2522, %v2518
        %v3343 = vpack.c.b16 %v2527, %v2523
        %v3344 = vpack.c.b16 %v2528, %v2524
        %v3345 = vpack.c.b16 %v2529, %v2525
        %v3346 = vpack.c.b16 %v2530, %v2526
        %v3347 = vpack.c.b16 %v2535, %v2531
        %v3348 = vpack.c.b16 %v2536, %v2532
        %v3349 = vpack.c.b16 %v2537, %v2533
        %v3350 = vpack.c.b16 %v2538, %v2534
        %v3351 = vpack.c.b16 %v2543, %v2539
        %v3352 = vpack.c.b16 %v2544, %v2540
        %v3353 = vpack.c.b16 %v2545, %v2541
        %v3354 = vpack.c.b16 %v2546, %v2542
        %v3355 = vpack.c.b16 %v2551, %v2547
        %v3356 = vpack.c.b16 %v2552, %v2548
        %v3357 = vpack.c.b16 %v2553, %v2549
        %v3358 = vpack.c.b16 %v2554, %v2550
        %v3359 = vpack.c.b16 %v2559, %v2555
        %v3360 = vpack.c.b16 %v2560, %v2556
        %v3361 = vpack.c.b16 %v2561, %v2557
        %v3362 = vpack.c.b16 %v2562, %v2558
        %v3363 = vpack.c.b16 %v2567, %v2563
        %v3364 = vpack.c.b16 %v2568, %v2564
        %v3365 = vpack.c.b16 %v2569, %v2565
        %v3366 = vpack.c.b16 %v2570, %v2566
        %v3367 = vpack.c.b16 %v2575, %v2571
        %v3368 = vpack.c.b16 %v2576, %v2572
        %v3369 = vpack.c.b16 %v2577, %v2573
        %v3370 = vpack.c.b16 %v2578, %v2574
        %v3371 = vpack.c.b16 %v2583, %v2579
        %v3372 = vpack.c.b16 %v2584, %v2580
        %v3373 = vpack.c.b16 %v2585, %v2581
        %v3374 = vpack.c.b16 %v2586, %v2582
        %v3375 = vpack.c.b16 %v2591, %v2587
        %v3376 = vpack.c.b16 %v2592, %v2588
        %v3377 = vpack.c.b16 %v2593, %v2589
        %v3378 = vpack.c.b16 %v2594, %v2590
        %v3379 = vpack.c.b16 %v2599, %v2595
        %v3380 = vpack.c.b16 %v2600, %v2596
        %v3381 = vpack.c.b16 %v2601, %v2597
        %v3382 = vpack.c.b16 %v2602, %v2598
        %v3383 = vpack.c.b16 %v2607, %v2603
        %v3384 = vpack.c.b16 %v2608, %v2604
        %v3385 = vpack.c.b16 %v2609, %v2605
        %v3386 = vpack.c.b16 %v2610, %v2606
        %v3387 = vpack.c.b16 %v2615, %v2611
        %v3388 = vpack.c.b16 %v2616, %v2612
        %v3389 = vpack.c.b16 %v2617, %v2613
        %v3390 = vpack.c.b16 %v2618, %v2614
        %v3391 = vpack.c.b16 %v2623, %v2619
        %v3392 = vpack.c.b16 %v2624, %v2620
        %v3393 = vpack.c.b16 %v2625, %v2621
        %v3394 = vpack.c.b16 %v2626, %v2622
        %v3395 = vpack.c.b16 %v2631, %v2627
        %v3396 = vpack.c.b16 %v2632, %v2628
        %v3397 = vpack.c.b16 %v2633, %v2629
        %v3398 = vpack.c.b16 %v2634, %v2630
        %v3399 = vpack.c.b16 %v2639, %v2635
        %v3400 = vpack.c.b16 %v2640, %v2636
        %v3401 = vpack.c.b16 %v2641, %v2637
        %v3402 = vpack.c.b16 %v2642, %v2638
        %v3403 = vpack.c.b16 %v2647, %v2643
        %v3404 = vpack.c.b16 %v2648, %v2644
        %v3405 = vpack.c.b16 %v2649, %v2645
        %v3406 = vpack.c.b16 %v2650, %v2646
        %v3407 = vpack.c.b16 %v2655, %v2651
        %v3408 = vpack.c.b16 %v2656, %v2652
        %v3409 = vpack.c.b16 %v2657, %v2653
        %v3410 = vpack.c.b16 %v2658, %v2654
        %v3411 = vpack.c.b16 %v2663, %v2659
        %v3412 = vpack.c.b16 %v2664, %v2660
        %v3413 = vpack.c.b16 %v2665, %v2661
        %v3414 = vpack.c.b16 %v2666, %v2662
        %v3415 = vpack.c.b16 %v2671, %v2667
        %v3416 = vpack.c.b16 %v2672, %v2668
        %v3417 = vpack.c.b16 %v2673, %v2669
        %v3418 = vpack.c.b16 %v2674, %v2670
        %v3419 = vpack.c.b16 %v2679, %v2675
        %v3420 = vpack.c.b16 %v2680, %v2676
        %v3421 = vpack.c.b16 %v2681, %v2677
        %v3422 = vpack.c.b16 %v2682, %v2678
        %v3423 = vpack.c.b16 %v2687, %v2683
        %v3424 = vpack.c.b16 %v2688, %v2684
        %v3425 = vpack.c.b16 %v2689, %v2685
        %v3426 = vpack.c.b16 %v2690, %v2686
        %v3427 = vpack.c.b16 %v2695, %v2691
        %v3428 = vpack.c.b16 %v2696, %v2692
        %v3429 = vpack.c.b16 %v2697, %v2693
        %v3430 = vpack.c.b16 %v2698, %v2694
        %v3431 = vpack.c.b16 %v2703, %v2699
        %v3432 = vpack.c.b16 %v2704, %v2700
        %v3433 = vpack.c.b16 %v2705, %v2701
        %v3434 = vpack.c.b16 %v2706, %v2702
        %v3435 = vpack.c.b16 %v2711, %v2707
        %v3436 = vpack.c.b16 %v2712, %v2708
        %v3437 = vpack.c.b16 %v2713, %v2709
        %v3438 = vpack.c.b16 %v2714, %v2710
        %v3439 = vpack.c.b16 %v2719, %v2715
        %v3440 = vpack.c.b16 %v2720, %v2716
        %v3441 = vpack.c.b16 %v2721, %v2717
        %v3442 = vpack.c.b16 %v2722, %v2718
        %v3443 = vpack.c.b16 %v2727, %v2723
        %v3444 = vpack.c.b16 %v2728, %v2724
        %v3445 = vpack.c.b16 %v2729, %v2725
        %v3446 = vpack.c.b16 %v2730, %v2726
        %v3447 = vpack.c.b16 %v2735, %v2731
        %v3448 = vpack.c.b16 %v2736, %v2732
        %v3449 = vpack.c.b16 %v2737, %v2733
        %v3450 = vpack.c.b16 %v2738, %v2734
        %v3451 = vpack.c.b16 %v2743, %v2739
        %v3452 = vpack.c.b16 %v2744, %v2740
        %v3453 = vpack.c.b16 %v2745, %v2741
        %v3454 = vpack.c.b16 %v2746, %v2742
        %v3455 = vpack.c.b16 %v2751, %v2747
        %v3456 = vpack.c.b16 %v2752, %v2748
        %v3457 = vpack.c.b16 %v2753, %v2749
        %v3458 = vpack.c.b16 %v2754, %v2750
        %v3459 = vpack.c.b16 %v2759, %v2755
        %v3460 = vpack.c.b16 %v2760, %v2756
        %v3461 = vpack.c.b16 %v2761, %v2757
        %v3462 = vpack.c.b16 %v2762, %v2758
        %v3463 = vpack.c.b16 %v2767, %v2763
        %v3464 = vpack.c.b16 %v2768, %v2764
        %v3465 = vpack.c.b16 %v2769, %v2765
        %v3466 = vpack.c.b16 %v2770, %v2766
        %v3467 = vpack.c.b16 %v2775, %v2771
        %v3468 = vpack.c.b16 %v2776, %v2772
        %v3469 = vpack.c.b16 %v2777, %v2773
        %v3470 = vpack.c.b16 %v2778, %v2774
        %v3471 = vpack.c.b16 %v2783, %v2779
        %v3472 = vpack.c.b16 %v2784, %v2780
        %v3473 = vpack.c.b16 %v2785, %v2781
        %v3474 = vpack.c.b16 %v2786, %v2782
        %v3475 = vpack.c.b16 %v2791, %v2787
        %v3476 = vpack.c.b16 %v2792, %v2788
        %v3477 = vpack.c.b16 %v2793, %v2789
        %v3478 = vpack.c.b16 %v2794, %v2790
        %v3479 = vpack.c.b16 %v2799, %v2795
        %v3480 = vpack.c.b16 %v2800, %v2796
        %v3481 = vpack.c.b16 %v2801, %v2797
        %v3482 = vpack.c.b16 %v2802, %v2798
        %v3483 = vpack.c.b16 %v2807, %v2803
        %v3484 = vpack.c.b16 %v2808, %v2804
        %v3485 = vpack.c.b16 %v2809, %v2805
        %v3486 = vpack.c.b16 %v2810, %v2806
        %v3487 = vpack.c.b16 %v2815, %v2811
        %v3488 = vpack.c.b16 %v2816, %v2812
        %v3489 = vpack.c.b16 %v2817, %v2813
        %v3490 = vpack.c.b16 %v2818, %v2814
        %v3491 = vpack.c.b16 %v2823, %v2819
        %v3492 = vpack.c.b16 %v2824, %v2820
        %v3493 = vpack.c.b16 %v2825, %v2821
        %v3494 = vpack.c.b16 %v2826, %v2822
        %v3495 = vpack.c.b16 %v2831, %v2827
        %v3496 = vpack.c.b16 %v2832, %v2828
        %v3497 = vpack.c.b16 %v2833, %v2829
        %v3498 = vpack.c.b16 %v2834, %v2830
        %v3499 = vpack.c.b16 %v2839, %v2835
        %v3500 = vpack.c.b16 %v2840, %v2836
        %v3501 = vpack.c.b16 %v2841, %v2837
        %v3502 = vpack.c.b16 %v2842, %v2838
        %v3503 = vpack.c.b16 %v2847, %v2843
        %v3504 = vpack.c.b16 %v2848, %v2844
        %v3505 = vpack.c.b16 %v2849, %v2845
        %v3506 = vpack.c.b16 %v2850, %v2846
        %v3507 = vpack.c.b16 %v2855, %v2851
        %v3508 = vpack.c.b16 %v2856, %v2852
        %v3509 = vpack.c.b16 %v2857, %v2853
        %v3510 = vpack.c.b16 %v2858, %v2854
        %v3511 = vpack.c.b16 %v2863, %v2859
        %v3512 = vpack.c.b16 %v2864, %v2860
        %v3513 = vpack.c.b16 %v2865, %v2861
        %v3514 = vpack.c.b16 %v2866, %v2862
        %v3515 = vpack.c.b16 %v2871, %v2867
        %v3516 = vpack.c.b16 %v2872, %v2868
        %v3517 = vpack.c.b16 %v2873, %v2869
        %v3518 = vpack.c.b16 %v2874, %v2870
        %v3519 = vpack.c.b16 %v2879, %v2875
        %v3520 = vpack.c.b16 %v2880, %v2876
        %v3521 = vpack.c.b16 %v2881, %v2877
        %v3522 = vpack.c.b16 %v2882, %v2878
        %v3523 = vpack.c.b16 %v2887, %v2883
        %v3524 = vpack.c.b16 %v2888, %v2884
        %v3525 = vpack.c.b16 %v2889, %v2885
        %v3526 = vpack.c.b16 %v2890, %v2886
        %v3527 = vpack.c.b16 %v2895, %v2891
        %v3528 = vpack.c.b16 %v2896, %v2892
        %v3529 = vpack.c.b16 %v2897, %v2893
        %v3530 = vpack.c.b16 %v2898, %v2894
        %v3531 = vpack.c.b16 %v2903, %v2899
        %v3532 = vpack.c.b16 %v2904, %v2900
        %v3533 = vpack.c.b16 %v2905, %v2901
        %v3534 = vpack.c.b16 %v2906, %v2902
        %v3535 = vpack.c.b16 %v2911, %v2907
        %v3536 = vpack.c.b16 %v2912, %v2908
        %v3537 = vpack.c.b16 %v2913, %v2909
        %v3538 = vpack.c.b16 %v2914, %v2910
        %v3539 = vpack.c.b16 %v2919, %v2915
        %v3540 = vpack.c.b16 %v2920, %v2916
        %v3541 = vpack.c.b16 %v2921, %v2917
        %v3542 = vpack.c.b16 %v2922, %v2918
        %v3543 = vpack.c.b16 %v2927, %v2923
        %v3544 = vpack.c.b16 %v2928, %v2924
        %v3545 = vpack.c.b16 %v2929, %v2925
        %v3546 = vpack.c.b16 %v2930, %v2926
        %v3547 = vpack.c.b16 %v2935, %v2931
        %v3548 = vpack.c.b16 %v2936, %v2932
        %v3549 = vpack.c.b16 %v2937, %v2933
        %v3550 = vpack.c.b16 %v2938, %v2934
        %v3551 = vpack.c.b16 %v2943, %v2939
        %v3552 = vpack.c.b16 %v2944, %v2940
        %v3553 = vpack.c.b16 %v2945, %v2941
        %v3554 = vpack.c.b16 %v2946, %v2942
        %v3555 = vpack.c.b16 %v2951, %v2947
        %v3556 = vpack.c.b16 %v2952, %v2948
        %v3557 = vpack.c.b16 %v2953, %v2949
        %v3558 = vpack.c.b16 %v2954, %v2950
        %v3559 = vpack.c.b16 %v2959, %v2955
        %v3560 = vpack.c.b16 %v2960, %v2956
        %v3561 = vpack.c.b16 %v2961, %v2957
        %v3562 = vpack.c.b16 %v2962, %v2958
        %v3563 = vpack.c.b16 %v2967, %v2963
        %v3564 = vpack.c.b16 %v2968, %v2964
        %v3565 = vpack.c.b16 %v2969, %v2965
        %v3566 = vpack.c.b16 %v2970, %v2966
        %v3567 = vpack.c.b16 %v2975, %v2971
        %v3568 = vpack.c.b16 %v2976, %v2972
        %v3569 = vpack.c.b16 %v2977, %v2973
        %v3570 = vpack.c.b16 %v2978, %v2974
        %v3571 = vpack.c.b16 %v2983, %v2979
        %v3572 = vpack.c.b16 %v2984, %v2980
        %v3573 = vpack.c.b16 %v2985, %v2981
        %v3574 = vpack.c.b16 %v2986, %v2982
        %v3575 = vpack.c.b16 %v2991, %v2987
        %v3576 = vpack.c.b16 %v2992, %v2988
        %v3577 = vpack.c.b16 %v2993, %v2989
        %v3578 = vpack.c.b16 %v2994, %v2990
        %v3579 = vpack.c.b16 %v2999, %v2995
        %v3580 = vpack.c.b16 %v3000, %v2996
        %v3581 = vpack.c.b16 %v3001, %v2997
        %v3582 = vpack.c.b16 %v3002, %v2998
        %v3583 = vpack.c.b16 %v3007, %v3003
        %v3584 = vpack.c.b16 %v3008, %v3004
        %v3585 = vpack.c.b16 %v3009, %v3005
        %v3586 = vpack.c.b16 %v3010, %v3006
        %v3587 = vpack.c.b16 %v3015, %v3011
        %v3588 = vpack.c.b16 %v3016, %v3012
        %v3589 = vpack.c.b16 %v3017, %v3013
        %v3590 = vpack.c.b16 %v3018, %v3014
        %v3591 = vpack.c.b16 %v3023, %v3019
        %v3592 = vpack.c.b16 %v3024, %v3020
        %v3593 = vpack.c.b16 %v3025, %v3021
        %v3594 = vpack.c.b16 %v3026, %v3022
        %v3595 = vpack.c.b16 %v3031, %v3027
        %v3596 = vpack.c.b16 %v3032, %v3028
        %v3597 = vpack.c.b16 %v3033, %v3029
        %v3598 = vpack.c.b16 %v3034, %v3030
        %v3599 = vpack.c.b16 %v3039, %v3035
        %v3600 = vpack.c.b16 %v3040, %v3036
        %v3601 = vpack.c.b16 %v3041, %v3037
        %v3602 = vpack.c.b16 %v3042, %v3038
        %v3603 = vpack.c.b16 %v3047, %v3043
        %v3604 = vpack.c.b16 %v3048, %v3044
        %v3605 = vpack.c.b16 %v3049, %v3045
        %v3606 = vpack.c.b16 %v3050, %v3046
        %v3607 = vpack.c.b16 %v3055, %v3051
        %v3608 = vpack.c.b16 %v3056, %v3052
        %v3609 = vpack.c.b16 %v3057, %v3053
        %v3610 = vpack.c.b16 %v3058, %v3054
        %v3611 = vpack.c.b16 %v3063, %v3059
        %v3612 = vpack.c.b16 %v3064, %v3060
        %v3613 = vpack.c.b16 %v3065, %v3061
        %v3614 = vpack.c.b16 %v3066, %v3062
        %v3615 = vpack.c.b16 %v3071, %v3067
        %v3616 = vpack.c.b16 %v3072, %v3068
        %v3617 = vpack.c.b16 %v3073, %v3069
        %v3618 = vpack.c.b16 %v3074, %v3070
        %v3619 = vpack.c.b16 %v3079, %v3075
        %v3620 = vpack.c.b16 %v3080, %v3076
        %v3621 = vpack.c.b16 %v3081, %v3077
        %v3622 = vpack.c.b16 %v3082, %v3078
        %v3623 = vpack.c.b16 %v3087, %v3083
        %v3624 = vpack.c.b16 %v3088, %v3084
        %v3625 = vpack.c.b16 %v3089, %v3085
        %v3626 = vpack.c.b16 %v3090, %v3086
        %v3627 = vpack.c.b16 %v3095, %v3091
        %v3628 = vpack.c.b16 %v3096, %v3092
        %v3629 = vpack.c.b16 %v3097, %v3093
        %v3630 = vpack.c.b16 %v3098, %v3094
        %v3631 = vpack.c.b16 %v3103, %v3099
        %v3632 = vpack.c.b16 %v3104, %v3100
        %v3633 = vpack.c.b16 %v3105, %v3101
        %v3634 = vpack.c.b16 %v3106, %v3102
        %v3635 = vpack.c.b16 %v3111, %v3107
        %v3636 = vpack.c.b16 %v3112, %v3108
        %v3637 = vpack.c.b16 %v3113, %v3109
        %v3638 = vpack.c.b16 %v3114, %v3110
        %v3639 = vpack.c.b16 %v3119, %v3115
        %v3640 = vpack.c.b16 %v3120, %v3116
        %v3641 = vpack.c.b16 %v3121, %v3117
        %v3642 = vpack.c.b16 %v3122, %v3118
        %v3643 = vpack.c.b16 %v3127, %v3123
        %v3644 = vpack.c.b16 %v3128, %v3124
        %v3645 = vpack.c.b16 %v3129, %v3125
        %v3646 = vpack.c.b16 %v3130, %v3126
        %v3647 = vpack.c.b16 %v3135, %v3131
        %v3648 = vpack.c.b16 %v3136, %v3132
        %v3649 = vpack.c.b16 %v3137, %v3133
        %v3650 = vpack.c.b16 %v3138, %v3134
        %4163 = vmatprep.subr.bf16.mxu0 %v3140
        %4164 = vmatpush1.bf16.msra.mxu0 %v3139
        %4165 = vmatprep.subr.bf16.mxu0 %v3144
        %4166 = vmatpush1.bf16.msra.mxu0 %v3143
        %4167 = vmatprep.subr.bf16.mxu0 %v3148
        %4168 = vmatpush1.bf16.msra.mxu0 %v3147
        %4169 = vmatprep.subr.bf16.mxu0 %v3152
        %4170 = vmatpush1.bf16.msra.mxu0 %v3151
        %4171 = vmatprep.subr.bf16.mxu0 %v3156
        %4172 = vmatpush1.bf16.msra.mxu0 %v3155
        %4173 = vmatprep.subr.bf16.mxu0 %v3160
        %4174 = vmatpush1.bf16.msra.mxu0 %v3159
        %4175 = vmatprep.subr.bf16.mxu0 %v3164
        %4176 = vmatpush1.bf16.msra.mxu0 %v3163
        %4177 = vmatprep.subr.bf16.mxu0 %v3168
        %4178 = vmatpush1.bf16.msra.mxu0 %v3167
        %4179 = vmatprep.subr.bf16.mxu0 %v3172
        %4180 = vmatpush1.bf16.msra.mxu0 %v3171
        %4181 = vmatprep.subr.bf16.mxu0 %v3176
        %4182 = vmatpush1.bf16.msra.mxu0 %v3175
        %4183 = vmatprep.subr.bf16.mxu0 %v3180
        %4184 = vmatpush1.bf16.msra.mxu0 %v3179
        %4185 = vmatprep.subr.bf16.mxu0 %v3184
        %4186 = vmatpush1.bf16.msra.mxu0 %v3183
        %4187 = vmatprep.subr.bf16.mxu0 %v3188
        %4188 = vmatpush1.bf16.msra.mxu0 %v3187
        %4189 = vmatprep.subr.bf16.mxu0 %v3192
        %4190 = vmatpush1.bf16.msra.mxu0 %v3191
        %4191 = vmatprep.subr.bf16.mxu0 %v3196
        %4192 = vmatpush1.bf16.msra.mxu0 %v3195
        %4193 = vmatprep.subr.bf16.mxu0 %v3200
        %4194 = vmatpush1.bf16.msra.mxu0 %v3199
        %4195 = vmatprep.mubr.bf16.mxu0 %v1076
        %4196 = vmatmul.mubr.bf16.gmra.mrb[0].mxu0 %v1075
        %v4197 = vpop.f32.mrb[0].mxu0
        %v4198 = vadd.f32 0.0, %v4197
        %v4199 = vpop.f32.mrb[0].mxu0
        %v4200 = vadd.f32 0.0, %v4199
        %v4201 = vpop.f32.mrb[0].mxu0
        %v4202 = vpop.f32.mrb[0].mxu0
        %4203 = vdwg.mxu0
        %4204 = vmatprep.subr.bf16.mxu0 %v3204
        %4205 = vmatpush1.bf16.msra.mxu0 %v3203
        %4206 = vmatprep.subr.bf16.mxu0 %v3208
        %4207 = vmatpush1.bf16.msra.mxu0 %v3207
        %4208 = vmatprep.subr.bf16.mxu0 %v3212
        %4209 = vmatpush1.bf16.msra.mxu0 %v3211
        %4210 = vmatprep.subr.bf16.mxu0 %v3216
        %4211 = vmatpush1.bf16.msra.mxu0 %v3215
        %4212 = vmatprep.subr.bf16.mxu0 %v3220
        %4213 = vmatpush1.bf16.msra.mxu0 %v3219
        %4214 = vmatprep.subr.bf16.mxu0 %v3224
        %4215 = vmatpush1.bf16.msra.mxu0 %v3223
        %4216 = vmatprep.subr.bf16.mxu0 %v3228
        %4217 = vmatpush1.bf16.msra.mxu0 %v3227
        %4218 = vmatprep.subr.bf16.mxu0 %v3232
        %4219 = vmatpush1.bf16.msra.mxu0 %v3231
        %4220 = vmatprep.subr.bf16.mxu0 %v3236
        %4221 = vmatpush1.bf16.msra.mxu0 %v3235
        %4222 = vmatprep.subr.bf16.mxu0 %v3240
        %4223 = vmatpush1.bf16.msra.mxu0 %v3239
        %4224 = vmatprep.subr.bf16.mxu0 %v3244
        %4225 = vmatpush1.bf16.msra.mxu0 %v3243
        %4226 = vmatprep.subr.bf16.mxu0 %v3248
        %4227 = vmatpush1.bf16.msra.mxu0 %v3247
        %4228 = vmatprep.subr.bf16.mxu0 %v3252
        %4229 = vmatpush1.bf16.msra.mxu0 %v3251
        %4230 = vmatprep.subr.bf16.mxu0 %v3256
        %4231 = vmatpush1.bf16.msra.mxu0 %v3255
        %4232 = vmatprep.subr.bf16.mxu0 %v3260
        %4233 = vmatpush1.bf16.msra.mxu0 %v3259
        %4234 = vmatprep.subr.bf16.mxu0 %v3264
        %4235 = vmatpush1.bf16.msra.mxu0 %v3263
        %4236 = vmatprep.mubr.bf16.mxu0 %v1078
        %4237 = vmatmul.mubr.bf16.gmra.mrb[0].mxu0 %v1077
        %v4238 = vpop.f32.mrb[0].mxu0
        %v4239 = vadd.f32 %v4198, %v4238
        %v4240 = vpop.f32.mrb[0].mxu0
        %v4241 = vadd.f32 %v4200, %v4240
        %v4242 = vpop.f32.mrb[0].mxu0
        %v4243 = vpop.f32.mrb[0].mxu0
        %4244 = vdwg.mxu0
        %4245 = vmatprep.subr.bf16.mxu0 %v3268
        %4246 = vmatpush1.bf16.msra.mxu0 %v3267
        %4247 = vmatprep.subr.bf16.mxu0 %v3272
        %4248 = vmatpush1.bf16.msra.mxu0 %v3271
        %4249 = vmatprep.subr.bf16.mxu0 %v3276
        %4250 = vmatpush1.bf16.msra.mxu0 %v3275
        %4251 = vmatprep.subr.bf16.mxu0 %v3280
        %4252 = vmatpush1.bf16.msra.mxu0 %v3279
        %4253 = vmatprep.subr.bf16.mxu0 %v3284
        %4254 = vmatpush1.bf16.msra.mxu0 %v3283
        %4255 = vmatprep.subr.bf16.mxu0 %v3288
        %4256 = vmatpush1.bf16.msra.mxu0 %v3287
        %4257 = vmatprep.subr.bf16.mxu0 %v3292
        %4258 = vmatpush1.bf16.msra.mxu0 %v3291
        %4259 = vmatprep.subr.bf16.mxu0 %v3296
        %4260 = vmatpush1.bf16.msra.mxu0 %v3295
        %4261 = vmatprep.subr.bf16.mxu0 %v3300
        %4262 = vmatpush1.bf16.msra.mxu0 %v3299
        %4263 = vmatprep.subr.bf16.mxu0 %v3304
        %4264 = vmatpush1.bf16.msra.mxu0 %v3303
        %4265 = vmatprep.subr.bf16.mxu0 %v3308
        %4266 = vmatpush1.bf16.msra.mxu0 %v3307
        %4267 = vmatprep.subr.bf16.mxu0 %v3312
        %4268 = vmatpush1.bf16.msra.mxu0 %v3311
        %4269 = vmatprep.subr.bf16.mxu0 %v3316
        %4270 = vmatpush1.bf16.msra.mxu0 %v3315
        %4271 = vmatprep.subr.bf16.mxu0 %v3320
        %4272 = vmatpush1.bf16.msra.mxu0 %v3319
        %4273 = vmatprep.subr.bf16.mxu0 %v3324
        %4274 = vmatpush1.bf16.msra.mxu0 %v3323
        %4275 = vmatprep.subr.bf16.mxu0 %v3328
        %4276 = vmatpush1.bf16.msra.mxu0 %v3327
        %4277 = vmatprep.mubr.bf16.mxu0 %v1080
        %4278 = vmatmul.mubr.bf16.gmra.mrb[0].mxu0 %v1079
        %v4279 = vpop.f32.mrb[0].mxu0
        %v4280 = vadd.f32 %v4239, %v4279
        %v4281 = vpop.f32.mrb[0].mxu0
        %v4282 = vadd.f32 %v4241, %v4281
        %v4283 = vpop.f32.mrb[0].mxu0
        %v4284 = vpop.f32.mrb[0].mxu0
        %4285 = vdwg.mxu0
        %4286 = vmatprep.subr.bf16.mxu0 %v3332
        %4287 = vmatpush1.bf16.msra.mxu0 %v3331
        %4288 = vmatprep.subr.bf16.mxu0 %v3336
        %4289 = vmatpush1.bf16.msra.mxu0 %v3335
        %4290 = vmatprep.subr.bf16.mxu0 %v3340
        %4291 = vmatpush1.bf16.msra.mxu0 %v3339
        %4292 = vmatprep.subr.bf16.mxu0 %v3344
        %4293 = vmatpush1.bf16.msra.mxu0 %v3343
        %4294 = vmatprep.subr.bf16.mxu0 %v3348
        %4295 = vmatpush1.bf16.msra.mxu0 %v3347
        %4296 = vmatprep.subr.bf16.mxu0 %v3352
        %4297 = vmatpush1.bf16.msra.mxu0 %v3351
        %4298 = vmatprep.subr.bf16.mxu0 %v3356
        %4299 = vmatpush1.bf16.msra.mxu0 %v3355
        %4300 = vmatprep.subr.bf16.mxu0 %v3360
        %4301 = vmatpush1.bf16.msra.mxu0 %v3359
        %4302 = vmatprep.subr.bf16.mxu0 %v3364
        %4303 = vmatpush1.bf16.msra.mxu0 %v3363
        %4304 = vmatprep.subr.bf16.mxu0 %v3368
        %4305 = vmatpush1.bf16.msra.mxu0 %v3367
        %4306 = vmatprep.subr.bf16.mxu0 %v3372
        %4307 = vmatpush1.bf16.msra.mxu0 %v3371
        %4308 = vmatprep.subr.bf16.mxu0 %v3376
        %4309 = vmatpush1.bf16.msra.mxu0 %v3375
        %4310 = vmatprep.subr.bf16.mxu0 %v3380
        %4311 = vmatpush1.bf16.msra.mxu0 %v3379
        %4312 = vmatprep.subr.bf16.mxu0 %v3384
        %4313 = vmatpush1.bf16.msra.mxu0 %v3383
        %4314 = vmatprep.subr.bf16.mxu0 %v3388
        %4315 = vmatpush1.bf16.msra.mxu0 %v3387
        %4316 = vmatprep.subr.bf16.mxu0 %v3392
        %4317 = vmatpush1.bf16.msra.mxu0 %v3391
        %4318 = vmatprep.mubr.bf16.mxu0 %v1082
        %4319 = vmatmul.mubr.bf16.gmra.mrb[0].mxu0 %v1081
        %v4320 = vpop.f32.mrb[0].mxu0
        %v4321 = vadd.f32 %v4280, %v4320
        %v4322 = vpop.f32.mrb[0].mxu0
        %v4323 = vadd.f32 %v4282, %v4322
        %v4324 = vpop.f32.mrb[0].mxu0
        %v4325 = vpop.f32.mrb[0].mxu0
        %4326 = vdwg.mxu0
        %4327 = vmatprep.subr.bf16.mxu0 %v3396
        %4328 = vmatpush1.bf16.msra.mxu0 %v3395
        %4329 = vmatprep.subr.bf16.mxu0 %v3400
        %4330 = vmatpush1.bf16.msra.mxu0 %v3399
        %4331 = vmatprep.subr.bf16.mxu0 %v3404
        %4332 = vmatpush1.bf16.msra.mxu0 %v3403
        %4333 = vmatprep.subr.bf16.mxu0 %v3408
        %4334 = vmatpush1.bf16.msra.mxu0 %v3407
        %4335 = vmatprep.subr.bf16.mxu0 %v3412
        %4336 = vmatpush1.bf16.msra.mxu0 %v3411
        %4337 = vmatprep.subr.bf16.mxu0 %v3416
        %4338 = vmatpush1.bf16.msra.mxu0 %v3415
        %4339 = vmatprep.subr.bf16.mxu0 %v3420
        %4340 = vmatpush1.bf16.msra.mxu0 %v3419
        %4341 = vmatprep.subr.bf16.mxu0 %v3424
        %4342 = vmatpush1.bf16.msra.mxu0 %v3423
        %4343 = vmatprep.subr.bf16.mxu0 %v3428
        %4344 = vmatpush1.bf16.msra.mxu0 %v3427
        %4345 = vmatprep.subr.bf16.mxu0 %v3432
        %4346 = vmatpush1.bf16.msra.mxu0 %v3431
        %4347 = vmatprep.subr.bf16.mxu0 %v3436
        %4348 = vmatpush1.bf16.msra.mxu0 %v3435
        %4349 = vmatprep.subr.bf16.mxu0 %v3440
        %4350 = vmatpush1.bf16.msra.mxu0 %v3439
        %4351 = vmatprep.subr.bf16.mxu0 %v3444
        %4352 = vmatpush1.bf16.msra.mxu0 %v3443
        %4353 = vmatprep.subr.bf16.mxu0 %v3448
        %4354 = vmatpush1.bf16.msra.mxu0 %v3447
        %4355 = vmatprep.subr.bf16.mxu0 %v3452
        %4356 = vmatpush1.bf16.msra.mxu0 %v3451
        %4357 = vmatprep.subr.bf16.mxu0 %v3456
        %4358 = vmatpush1.bf16.msra.mxu0 %v3455
        %4359 = vmatprep.mubr.bf16.mxu0 %v1084
        %4360 = vmatmul.mubr.bf16.gmra.mrb[0].mxu0 %v1083
        %v4361 = vpop.f32.mrb[0].mxu0
        %v4362 = vadd.f32 %v4321, %v4361
        %v4363 = vpop.f32.mrb[0].mxu0
        %v4364 = vadd.f32 %v4323, %v4363
        %v4365 = vpop.f32.mrb[0].mxu0
        %v4366 = vpop.f32.mrb[0].mxu0
        %4367 = vdwg.mxu0
        %4368 = vmatprep.subr.bf16.mxu0 %v3460
        %4369 = vmatpush1.bf16.msra.mxu0 %v3459
        %4370 = vmatprep.subr.bf16.mxu0 %v3464
        %4371 = vmatpush1.bf16.msra.mxu0 %v3463
        %4372 = vmatprep.subr.bf16.mxu0 %v3468
        %4373 = vmatpush1.bf16.msra.mxu0 %v3467
        %4374 = vmatprep.subr.bf16.mxu0 %v3472
        %4375 = vmatpush1.bf16.msra.mxu0 %v3471
        %4376 = vmatprep.subr.bf16.mxu0 %v3476
        %4377 = vmatpush1.bf16.msra.mxu0 %v3475
        %4378 = vmatprep.subr.bf16.mxu0 %v3480
        %4379 = vmatpush1.bf16.msra.mxu0 %v3479
        %4380 = vmatprep.subr.bf16.mxu0 %v3484
        %4381 = vmatpush1.bf16.msra.mxu0 %v3483
        %4382 = vmatprep.subr.bf16.mxu0 %v3488
        %4383 = vmatpush1.bf16.msra.mxu0 %v3487
        %4384 = vmatprep.subr.bf16.mxu0 %v3492
        %4385 = vmatpush1.bf16.msra.mxu0 %v3491
        %4386 = vmatprep.subr.bf16.mxu0 %v3496
        %4387 = vmatpush1.bf16.msra.mxu0 %v3495
        %4388 = vmatprep.subr.bf16.mxu0 %v3500
        %4389 = vmatpush1.bf16.msra.mxu0 %v3499
        %4390 = vmatprep.subr.bf16.mxu0 %v3504
        %4391 = vmatpush1.bf16.msra.mxu0 %v3503
        %4392 = vmatprep.subr.bf16.mxu0 %v3508
        %4393 = vmatpush1.bf16.msra.mxu0 %v3507
        %4394 = vmatprep.subr.bf16.mxu0 %v3512
        %4395 = vmatpush1.bf16.msra.mxu0 %v3511
        %4396 = vmatprep.subr.bf16.mxu0 %v3516
        %4397 = vmatpush1.bf16.msra.mxu0 %v3515
        %4398 = vmatprep.subr.bf16.mxu0 %v3520
        %4399 = vmatpush1.bf16.msra.mxu0 %v3519
        %4400 = vmatprep.mubr.bf16.mxu0 %v1086
        %4401 = vmatmul.mubr.bf16.gmra.mrb[0].mxu0 %v1085
        %v4402 = vpop.f32.mrb[0].mxu0
        %v4403 = vadd.f32 %v4362, %v4402
        %v4404 = vpop.f32.mrb[0].mxu0
        %v4405 = vadd.f32 %v4364, %v4404
        %v4406 = vpop.f32.mrb[0].mxu0
        %v4407 = vpop.f32.mrb[0].mxu0
        %4408 = vdwg.mxu0
        %4409 = vmatprep.subr.bf16.mxu0 %v3524
        %4410 = vmatpush1.bf16.msra.mxu0 %v3523
        %4411 = vmatprep.subr.bf16.mxu0 %v3528
        %4412 = vmatpush1.bf16.msra.mxu0 %v3527
        %4413 = vmatprep.subr.bf16.mxu0 %v3532
        %4414 = vmatpush1.bf16.msra.mxu0 %v3531
        %4415 = vmatprep.subr.bf16.mxu0 %v3536
        %4416 = vmatpush1.bf16.msra.mxu0 %v3535
        %4417 = vmatprep.subr.bf16.mxu0 %v3540
        %4418 = vmatpush1.bf16.msra.mxu0 %v3539
        %4419 = vmatprep.subr.bf16.mxu0 %v3544
        %4420 = vmatpush1.bf16.msra.mxu0 %v3543
        %4421 = vmatprep.subr.bf16.mxu0 %v3548
        %4422 = vmatpush1.bf16.msra.mxu0 %v3547
        %4423 = vmatprep.subr.bf16.mxu0 %v3552
        %4424 = vmatpush1.bf16.msra.mxu0 %v3551
        %4425 = vmatprep.subr.bf16.mxu0 %v3556
        %4426 = vmatpush1.bf16.msra.mxu0 %v3555
        %4427 = vmatprep.subr.bf16.mxu0 %v3560
        %4428 = vmatpush1.bf16.msra.mxu0 %v3559
        %4429 = vmatprep.subr.bf16.mxu0 %v3564
        %4430 = vmatpush1.bf16.msra.mxu0 %v3563
        %4431 = vmatprep.subr.bf16.mxu0 %v3568
        %4432 = vmatpush1.bf16.msra.mxu0 %v3567
        %4433 = vmatprep.subr.bf16.mxu0 %v3572
        %4434 = vmatpush1.bf16.msra.mxu0 %v3571
        %4435 = vmatprep.subr.bf16.mxu0 %v3576
        %4436 = vmatpush1.bf16.msra.mxu0 %v3575
        %4437 = vmatprep.subr.bf16.mxu0 %v3580
        %4438 = vmatpush1.bf16.msra.mxu0 %v3579
        %4439 = vmatprep.subr.bf16.mxu0 %v3584
        %4440 = vmatpush1.bf16.msra.mxu0 %v3583
        %4441 = vmatprep.mubr.bf16.mxu0 %v1088
        %4442 = vmatmul.mubr.bf16.gmra.mrb[0].mxu0 %v1087
        %v4443 = vpop.f32.mrb[0].mxu0
        %v4444 = vadd.f32 %v4403, %v4443
        %v4445 = vpop.f32.mrb[0].mxu0
        %v4446 = vadd.f32 %v4405, %v4445
        %v4447 = vpop.f32.mrb[0].mxu0
        %v4448 = vpop.f32.mrb[0].mxu0
        %4449 = vdwg.mxu0
        %4450 = vmatprep.subr.bf16.mxu0 %v3588
        %4451 = vmatpush1.bf16.msra.mxu0 %v3587
        %4452 = vmatprep.subr.bf16.mxu0 %v3592
        %4453 = vmatpush1.bf16.msra.mxu0 %v3591
        %4454 = vmatprep.subr.bf16.mxu0 %v3596
        %4455 = vmatpush1.bf16.msra.mxu0 %v3595
        %4456 = vmatprep.subr.bf16.mxu0 %v3600
        %4457 = vmatpush1.bf16.msra.mxu0 %v3599
        %4458 = vmatprep.subr.bf16.mxu0 %v3604
        %4459 = vmatpush1.bf16.msra.mxu0 %v3603
        %4460 = vmatprep.subr.bf16.mxu0 %v3608
        %4461 = vmatpush1.bf16.msra.mxu0 %v3607
        %4462 = vmatprep.subr.bf16.mxu0 %v3612
        %4463 = vmatpush1.bf16.msra.mxu0 %v3611
        %4464 = vmatprep.subr.bf16.mxu0 %v3616
        %4465 = vmatpush1.bf16.msra.mxu0 %v3615
        %4466 = vmatprep.subr.bf16.mxu0 %v3620
        %4467 = vmatpush1.bf16.msra.mxu0 %v3619
        %4468 = vmatprep.subr.bf16.mxu0 %v3624
        %4469 = vmatpush1.bf16.msra.mxu0 %v3623
        %4470 = vmatprep.subr.bf16.mxu0 %v3628
        %4471 = vmatpush1.bf16.msra.mxu0 %v3627
        %4472 = vmatprep.subr.bf16.mxu0 %v3632
        %4473 = vmatpush1.bf16.msra.mxu0 %v3631
        %4474 = vmatprep.subr.bf16.mxu0 %v3636
        %4475 = vmatpush1.bf16.msra.mxu0 %v3635
        %4476 = vmatprep.subr.bf16.mxu0 %v3640
        %4477 = vmatpush1.bf16.msra.mxu0 %v3639
        %4478 = vmatprep.subr.bf16.mxu0 %v3644
        %4479 = vmatpush1.bf16.msra.mxu0 %v3643
        %4480 = vmatprep.subr.bf16.mxu0 %v3648
        %4481 = vmatpush1.bf16.msra.mxu0 %v3647
        %4482 = vmatprep.mubr.bf16.mxu0 %v1090
        %4483 = vmatmul.mubr.bf16.gmra.mrb[0].mxu0 %v1089
        %v4484 = vpop.f32.mrb[0].mxu0
        %v4485 = vadd.f32 %v4444, %v4484
        %v4486 = vpop.f32.mrb[0].mxu0
        %v4487 = vadd.f32 %v4446, %v4486
        %v4488 = vpop.f32.mrb[0].mxu0
        %v4489 = vpop.f32.mrb[0].mxu0
        %4490 = vdwg.mxu0
        %4491 = vmatprep.subr.bf16.mxu0 %v3142
        %4492 = vmatpush1.bf16.msra.mxu0 %v3141
        %4493 = vmatprep.subr.bf16.mxu0 %v3146
        %4494 = vmatpush1.bf16.msra.mxu0 %v3145
        %4495 = vmatprep.subr.bf16.mxu0 %v3150
        %4496 = vmatpush1.bf16.msra.mxu0 %v3149
        %4497 = vmatprep.subr.bf16.mxu0 %v3154
        %4498 = vmatpush1.bf16.msra.mxu0 %v3153
        %4499 = vmatprep.subr.bf16.mxu0 %v3158
        %4500 = vmatpush1.bf16.msra.mxu0 %v3157
        %4501 = vmatprep.subr.bf16.mxu0 %v3162
        %4502 = vmatpush1.bf16.msra.mxu0 %v3161
        %4503 = vmatprep.subr.bf16.mxu0 %v3166
        %4504 = vmatpush1.bf16.msra.mxu0 %v3165
        %4505 = vmatprep.subr.bf16.mxu0 %v3170
        %4506 = vmatpush1.bf16.msra.mxu0 %v3169
        %4507 = vmatprep.subr.bf16.mxu0 %v3174
        %4508 = vmatpush1.bf16.msra.mxu0 %v3173
        %4509 = vmatprep.subr.bf16.mxu0 %v3178
        %4510 = vmatpush1.bf16.msra.mxu0 %v3177
        %4511 = vmatprep.subr.bf16.mxu0 %v3182
        %4512 = vmatpush1.bf16.msra.mxu0 %v3181
        %4513 = vmatprep.subr.bf16.mxu0 %v3186
        %4514 = vmatpush1.bf16.msra.mxu0 %v3185
        %4515 = vmatprep.subr.bf16.mxu0 %v3190
        %4516 = vmatpush1.bf16.msra.mxu0 %v3189
        %4517 = vmatprep.subr.bf16.mxu0 %v3194
        %4518 = vmatpush1.bf16.msra.mxu0 %v3193
        %4519 = vmatprep.subr.bf16.mxu0 %v3198
        %4520 = vmatpush1.bf16.msra.mxu0 %v3197
        %4521 = vmatprep.subr.bf16.mxu0 %v3202
        %4522 = vmatpush1.bf16.msra.mxu0 %v3201
        %4523 = vmatprep.mubr.bf16.mxu0 %v1076
        %4524 = vmatmul.mubr.bf16.gmra.mrb[0].mxu0 %v1075
        %v4525 = vpop.f32.mrb[0].mxu0
        %v4526 = vadd.f32 0.0, %v4525
        %v4527 = vpop.f32.mrb[0].mxu0
        %v4528 = vadd.f32 0.0, %v4527
        %v4529 = vpop.f32.mrb[0].mxu0
        %v4530 = vpop.f32.mrb[0].mxu0
        %4531 = vdwg.mxu0
        %4532 = vmatprep.subr.bf16.mxu0 %v3206
        %4533 = vmatpush1.bf16.msra.mxu0 %v3205
        %4534 = vmatprep.subr.bf16.mxu0 %v3210
        %4535 = vmatpush1.bf16.msra.mxu0 %v3209
        %4536 = vmatprep.subr.bf16.mxu0 %v3214
        %4537 = vmatpush1.bf16.msra.mxu0 %v3213
        %4538 = vmatprep.subr.bf16.mxu0 %v3218
        %4539 = vmatpush1.bf16.msra.mxu0 %v3217
        %4540 = vmatprep.subr.bf16.mxu0 %v3222
        %4541 = vmatpush1.bf16.msra.mxu0 %v3221
        %4542 = vmatprep.subr.bf16.mxu0 %v3226
        %4543 = vmatpush1.bf16.msra.mxu0 %v3225
        %4544 = vmatprep.subr.bf16.mxu0 %v3230
        %4545 = vmatpush1.bf16.msra.mxu0 %v3229
        %4546 = vmatprep.subr.bf16.mxu0 %v3234
        %4547 = vmatpush1.bf16.msra.mxu0 %v3233
        %4548 = vmatprep.subr.bf16.mxu0 %v3238
        %4549 = vmatpush1.bf16.msra.mxu0 %v3237
        %4550 = vmatprep.subr.bf16.mxu0 %v3242
        %4551 = vmatpush1.bf16.msra.mxu0 %v3241
        %4552 = vmatprep.subr.bf16.mxu0 %v3246
        %4553 = vmatpush1.bf16.msra.mxu0 %v3245
        %4554 = vmatprep.subr.bf16.mxu0 %v3250
        %4555 = vmatpush1.bf16.msra.mxu0 %v3249
        %4556 = vmatprep.subr.bf16.mxu0 %v3254
        %4557 = vmatpush1.bf16.msra.mxu0 %v3253
        %4558 = vmatprep.subr.bf16.mxu0 %v3258
        %4559 = vmatpush1.bf16.msra.mxu0 %v3257
        %4560 = vmatprep.subr.bf16.mxu0 %v3262
        %4561 = vmatpush1.bf16.msra.mxu0 %v3261
        %4562 = vmatprep.subr.bf16.mxu0 %v3266
        %4563 = vmatpush1.bf16.msra.mxu0 %v3265
        %4564 = vmatprep.mubr.bf16.mxu0 %v1078
        %4565 = vmatmul.mubr.bf16.gmra.mrb[0].mxu0 %v1077
        %v4566 = vpop.f32.mrb[0].mxu0
        %v4567 = vadd.f32 %v4526, %v4566
        %v4568 = vpop.f32.mrb[0].mxu0
        %v4569 = vadd.f32 %v4528, %v4568
        %v4570 = vpop.f32.mrb[0].mxu0
        %v4571 = vpop.f32.mrb[0].mxu0
        %4572 = vdwg.mxu0
        %4573 = vmatprep.subr.bf16.mxu0 %v3270
        %4574 = vmatpush1.bf16.msra.mxu0 %v3269
        %4575 = vmatprep.subr.bf16.mxu0 %v3274
        %4576 = vmatpush1.bf16.msra.mxu0 %v3273
        %4577 = vmatprep.subr.bf16.mxu0 %v3278
        %4578 = vmatpush1.bf16.msra.mxu0 %v3277
        %4579 = vmatprep.subr.bf16.mxu0 %v3282
        %4580 = vmatpush1.bf16.msra.mxu0 %v3281
        %4581 = vmatprep.subr.bf16.mxu0 %v3286
        %4582 = vmatpush1.bf16.msra.mxu0 %v3285
        %4583 = vmatprep.subr.bf16.mxu0 %v3290
        %4584 = vmatpush1.bf16.msra.mxu0 %v3289
        %4585 = vmatprep.subr.bf16.mxu0 %v3294
        %4586 = vmatpush1.bf16.msra.mxu0 %v3293
        %4587 = vmatprep.subr.bf16.mxu0 %v3298
        %4588 = vmatpush1.bf16.msra.mxu0 %v3297
        %4589 = vmatprep.subr.bf16.mxu0 %v3302
        %4590 = vmatpush1.bf16.msra.mxu0 %v3301
        %4591 = vmatprep.subr.bf16.mxu0 %v3306
        %4592 = vmatpush1.bf16.msra.mxu0 %v3305
        %4593 = vmatprep.subr.bf16.mxu0 %v3310
        %4594 = vmatpush1.bf16.msra.mxu0 %v3309
        %4595 = vmatprep.subr.bf16.mxu0 %v3314
        %4596 = vmatpush1.bf16.msra.mxu0 %v3313
        %4597 = vmatprep.subr.bf16.mxu0 %v3318
        %4598 = vmatpush1.bf16.msra.mxu0 %v3317
        %4599 = vmatprep.subr.bf16.mxu0 %v3322
        %4600 = vmatpush1.bf16.msra.mxu0 %v3321
        %4601 = vmatprep.subr.bf16.mxu0 %v3326
        %4602 = vmatpush1.bf16.msra.mxu0 %v3325
        %4603 = vmatprep.subr.bf16.mxu0 %v3330
        %4604 = vmatpush1.bf16.msra.mxu0 %v3329
        %4605 = vmatprep.mubr.bf16.mxu0 %v1080
        %4606 = vmatmul.mubr.bf16.gmra.mrb[0].mxu0 %v1079
        %v4607 = vpop.f32.mrb[0].mxu0
        %v4608 = vadd.f32 %v4567, %v4607
        %v4609 = vpop.f32.mrb[0].mxu0
        %v4610 = vadd.f32 %v4569, %v4609
        %v4611 = vpop.f32.mrb[0].mxu0
        %v4612 = vpop.f32.mrb[0].mxu0
        %4613 = vdwg.mxu0
        %4614 = vmatprep.subr.bf16.mxu0 %v3334
        %4615 = vmatpush1.bf16.msra.mxu0 %v3333
        %4616 = vmatprep.subr.bf16.mxu0 %v3338
        %4617 = vmatpush1.bf16.msra.mxu0 %v3337
        %4618 = vmatprep.subr.bf16.mxu0 %v3342
        %4619 = vmatpush1.bf16.msra.mxu0 %v3341
        %4620 = vmatprep.subr.bf16.mxu0 %v3346
        %4621 = vmatpush1.bf16.msra.mxu0 %v3345
        %4622 = vmatprep.subr.bf16.mxu0 %v3350
        %4623 = vmatpush1.bf16.msra.mxu0 %v3349
        %4624 = vmatprep.subr.bf16.mxu0 %v3354
        %4625 = vmatpush1.bf16.msra.mxu0 %v3353
        %4626 = vmatprep.subr.bf16.mxu0 %v3358
        %4627 = vmatpush1.bf16.msra.mxu0 %v3357
        %4628 = vmatprep.subr.bf16.mxu0 %v3362
        %4629 = vmatpush1.bf16.msra.mxu0 %v3361
        %4630 = vmatprep.subr.bf16.mxu0 %v3366
        %4631 = vmatpush1.bf16.msra.mxu0 %v3365
        %4632 = vmatprep.subr.bf16.mxu0 %v3370
        %4633 = vmatpush1.bf16.msra.mxu0 %v3369
        %4634 = vmatprep.subr.bf16.mxu0 %v3374
        %4635 = vmatpush1.bf16.msra.mxu0 %v3373
        %4636 = vmatprep.subr.bf16.mxu0 %v3378
        %4637 = vmatpush1.bf16.msra.mxu0 %v3377
        %4638 = vmatprep.subr.bf16.mxu0 %v3382
        %4639 = vmatpush1.bf16.msra.mxu0 %v3381
        %4640 = vmatprep.subr.bf16.mxu0 %v3386
        %4641 = vmatpush1.bf16.msra.mxu0 %v3385
        %4642 = vmatprep.subr.bf16.mxu0 %v3390
        %4643 = vmatpush1.bf16.msra.mxu0 %v3389
        %4644 = vmatprep.subr.bf16.mxu0 %v3394
        %4645 = vmatpush1.bf16.msra.mxu0 %v3393
        %4646 = vmatprep.mubr.bf16.mxu0 %v1082
        %4647 = vmatmul.mubr.bf16.gmra.mrb[0].mxu0 %v1081
        %v4648 = vpop.f32.mrb[0].mxu0
        %v4649 = vadd.f32 %v4608, %v4648
        %v4650 = vpop.f32.mrb[0].mxu0
        %v4651 = vadd.f32 %v4610, %v4650
        %v4652 = vpop.f32.mrb[0].mxu0
        %v4653 = vpop.f32.mrb[0].mxu0
        %4654 = vdwg.mxu0
        %4655 = vmatprep.subr.bf16.mxu0 %v3398
        %4656 = vmatpush1.bf16.msra.mxu0 %v3397
        %4657 = vmatprep.subr.bf16.mxu0 %v3402
        %4658 = vmatpush1.bf16.msra.mxu0 %v3401
        %4659 = vmatprep.subr.bf16.mxu0 %v3406
        %4660 = vmatpush1.bf16.msra.mxu0 %v3405
        %4661 = vmatprep.subr.bf16.mxu0 %v3410
        %4662 = vmatpush1.bf16.msra.mxu0 %v3409
        %4663 = vmatprep.subr.bf16.mxu0 %v3414
        %4664 = vmatpush1.bf16.msra.mxu0 %v3413
        %4665 = vmatprep.subr.bf16.mxu0 %v3418
        %4666 = vmatpush1.bf16.msra.mxu0 %v3417
        %4667 = vmatprep.subr.bf16.mxu0 %v3422
        %4668 = vmatpush1.bf16.msra.mxu0 %v3421
        %4669 = vmatprep.subr.bf16.mxu0 %v3426
        %4670 = vmatpush1.bf16.msra.mxu0 %v3425
        %4671 = vmatprep.subr.bf16.mxu0 %v3430
        %4672 = vmatpush1.bf16.msra.mxu0 %v3429
        %4673 = vmatprep.subr.bf16.mxu0 %v3434
        %4674 = vmatpush1.bf16.msra.mxu0 %v3433
        %4675 = vmatprep.subr.bf16.mxu0 %v3438
        %4676 = vmatpush1.bf16.msra.mxu0 %v3437
        %4677 = vmatprep.subr.bf16.mxu0 %v3442
        %4678 = vmatpush1.bf16.msra.mxu0 %v3441
        %4679 = vmatprep.subr.bf16.mxu0 %v3446
        %4680 = vmatpush1.bf16.msra.mxu0 %v3445
        %4681 = vmatprep.subr.bf16.mxu0 %v3450
        %4682 = vmatpush1.bf16.msra.mxu0 %v3449
        %4683 = vmatprep.subr.bf16.mxu0 %v3454
        %4684 = vmatpush1.bf16.msra.mxu0 %v3453
        %4685 = vmatprep.subr.bf16.mxu0 %v3458
        %4686 = vmatpush1.bf16.msra.mxu0 %v3457
        %4687 = vmatprep.mubr.bf16.mxu0 %v1084
        %4688 = vmatmul.mubr.bf16.gmra.mrb[0].mxu0 %v1083
        %v4689 = vpop.f32.mrb[0].mxu0
        %v4690 = vadd.f32 %v4649, %v4689
        %v4691 = vpop.f32.mrb[0].mxu0
        %v4692 = vadd.f32 %v4651, %v4691
        %v4693 = vpop.f32.mrb[0].mxu0
        %v4694 = vpop.f32.mrb[0].mxu0
        %4695 = vdwg.mxu0
        %4696 = vmatprep.subr.bf16.mxu0 %v3462
        %4697 = vmatpush1.bf16.msra.mxu0 %v3461
        %4698 = vmatprep.subr.bf16.mxu0 %v3466
        %4699 = vmatpush1.bf16.msra.mxu0 %v3465
        %4700 = vmatprep.subr.bf16.mxu0 %v3470
        %4701 = vmatpush1.bf16.msra.mxu0 %v3469
        %4702 = vmatprep.subr.bf16.mxu0 %v3474
        %4703 = vmatpush1.bf16.msra.mxu0 %v3473
        %4704 = vmatprep.subr.bf16.mxu0 %v3478
        %4705 = vmatpush1.bf16.msra.mxu0 %v3477
        %4706 = vmatprep.subr.bf16.mxu0 %v3482
        %4707 = vmatpush1.bf16.msra.mxu0 %v3481
        %4708 = vmatprep.subr.bf16.mxu0 %v3486
        %4709 = vmatpush1.bf16.msra.mxu0 %v3485
        %4710 = vmatprep.subr.bf16.mxu0 %v3490
        %4711 = vmatpush1.bf16.msra.mxu0 %v3489
        %4712 = vmatprep.subr.bf16.mxu0 %v3494
        %4713 = vmatpush1.bf16.msra.mxu0 %v3493
        %4714 = vmatprep.subr.bf16.mxu0 %v3498
        %4715 = vmatpush1.bf16.msra.mxu0 %v3497
        %4716 = vmatprep.subr.bf16.mxu0 %v3502
        %4717 = vmatpush1.bf16.msra.mxu0 %v3501
        %4718 = vmatprep.subr.bf16.mxu0 %v3506
        %4719 = vmatpush1.bf16.msra.mxu0 %v3505
        %4720 = vmatprep.subr.bf16.mxu0 %v3510
        %4721 = vmatpush1.bf16.msra.mxu0 %v3509
        %4722 = vmatprep.subr.bf16.mxu0 %v3514
        %4723 = vmatpush1.bf16.msra.mxu0 %v3513
        %4724 = vmatprep.subr.bf16.mxu0 %v3518
        %4725 = vmatpush1.bf16.msra.mxu0 %v3517
        %4726 = vmatprep.subr.bf16.mxu0 %v3522
        %4727 = vmatpush1.bf16.msra.mxu0 %v3521
        %4728 = vmatprep.mubr.bf16.mxu0 %v1086
        %4729 = vmatmul.mubr.bf16.gmra.mrb[0].mxu0 %v1085
        %v4730 = vpop.f32.mrb[0].mxu0
        %v4731 = vadd.f32 %v4690, %v4730
        %v4732 = vpop.f32.mrb[0].mxu0
        %v4733 = vadd.f32 %v4692, %v4732
        %v4734 = vpop.f32.mrb[0].mxu0
        %v4735 = vpop.f32.mrb[0].mxu0
        %4736 = vdwg.mxu0
        %4737 = vmatprep.subr.bf16.mxu0 %v3526
        %4738 = vmatpush1.bf16.msra.mxu0 %v3525
        %4739 = vmatprep.subr.bf16.mxu0 %v3530
        %4740 = vmatpush1.bf16.msra.mxu0 %v3529
        %4741 = vmatprep.subr.bf16.mxu0 %v3534
        %4742 = vmatpush1.bf16.msra.mxu0 %v3533
        %4743 = vmatprep.subr.bf16.mxu0 %v3538
        %4744 = vmatpush1.bf16.msra.mxu0 %v3537
        %4745 = vmatprep.subr.bf16.mxu0 %v3542
        %4746 = vmatpush1.bf16.msra.mxu0 %v3541
        %4747 = vmatprep.subr.bf16.mxu0 %v3546
        %4748 = vmatpush1.bf16.msra.mxu0 %v3545
        %4749 = vmatprep.subr.bf16.mxu0 %v3550
        %4750 = vmatpush1.bf16.msra.mxu0 %v3549
        %4751 = vmatprep.subr.bf16.mxu0 %v3554
        %4752 = vmatpush1.bf16.msra.mxu0 %v3553
        %4753 = vmatprep.subr.bf16.mxu0 %v3558
        %4754 = vmatpush1.bf16.msra.mxu0 %v3557
        %4755 = vmatprep.subr.bf16.mxu0 %v3562
        %4756 = vmatpush1.bf16.msra.mxu0 %v3561
        %4757 = vmatprep.subr.bf16.mxu0 %v3566
        %4758 = vmatpush1.bf16.msra.mxu0 %v3565
        %4759 = vmatprep.subr.bf16.mxu0 %v3570
        %4760 = vmatpush1.bf16.msra.mxu0 %v3569
        %4761 = vmatprep.subr.bf16.mxu0 %v3574
        %4762 = vmatpush1.bf16.msra.mxu0 %v3573
        %4763 = vmatprep.subr.bf16.mxu0 %v3578
        %4764 = vmatpush1.bf16.msra.mxu0 %v3577
        %4765 = vmatprep.subr.bf16.mxu0 %v3582
        %4766 = vmatpush1.bf16.msra.mxu0 %v3581
        %4767 = vmatprep.subr.bf16.mxu0 %v3586
        %4768 = vmatpush1.bf16.msra.mxu0 %v3585
        %4769 = vmatprep.mubr.bf16.mxu0 %v1088
        %4770 = vmatmul.mubr.bf16.gmra.mrb[0].mxu0 %v1087
        %v4771 = vpop.f32.mrb[0].mxu0
        %v4772 = vadd.f32 %v4731, %v4771
        %v4773 = vpop.f32.mrb[0].mxu0
        %v4774 = vadd.f32 %v4733, %v4773
        %v4775 = vpop.f32.mrb[0].mxu0
        %v4776 = vpop.f32.mrb[0].mxu0
        %4777 = vdwg.mxu0
        %4778 = vmatprep.subr.bf16.mxu0 %v3590
        %4779 = vmatpush1.bf16.msra.mxu0 %v3589
        %4780 = vmatprep.subr.bf16.mxu0 %v3594
        %4781 = vmatpush1.bf16.msra.mxu0 %v3593
        %4782 = vmatprep.subr.bf16.mxu0 %v3598
        %4783 = vmatpush1.bf16.msra.mxu0 %v3597
        %4784 = vmatprep.subr.bf16.mxu0 %v3602
        %4785 = vmatpush1.bf16.msra.mxu0 %v3601
        %4786 = vmatprep.subr.bf16.mxu0 %v3606
        %4787 = vmatpush1.bf16.msra.mxu0 %v3605
        %4788 = vmatprep.subr.bf16.mxu0 %v3610
        %4789 = vmatpush1.bf16.msra.mxu0 %v3609
        %4790 = vmatprep.subr.bf16.mxu0 %v3614
        %4791 = vmatpush1.bf16.msra.mxu0 %v3613
        %4792 = vmatprep.subr.bf16.mxu0 %v3618
        %4793 = vmatpush1.bf16.msra.mxu0 %v3617
        %4794 = vmatprep.subr.bf16.mxu0 %v3622
        %4795 = vmatpush1.bf16.msra.mxu0 %v3621
        %4796 = vmatprep.subr.bf16.mxu0 %v3626
        %4797 = vmatpush1.bf16.msra.mxu0 %v3625
        %4798 = vmatprep.subr.bf16.mxu0 %v3630
        %4799 = vmatpush1.bf16.msra.mxu0 %v3629
        %4800 = vmatprep.subr.bf16.mxu0 %v3634
        %4801 = vmatpush1.bf16.msra.mxu0 %v3633
        %4802 = vmatprep.subr.bf16.mxu0 %v3638
        %4803 = vmatpush1.bf16.msra.mxu0 %v3637
        %4804 = vmatprep.subr.bf16.mxu0 %v3642
        %4805 = vmatpush1.bf16.msra.mxu0 %v3641
        %4806 = vmatprep.subr.bf16.mxu0 %v3646
        %4807 = vmatpush1.bf16.msra.mxu0 %v3645
        %4808 = vmatprep.subr.bf16.mxu0 %v3650
        %4809 = vmatpush1.bf16.msra.mxu0 %v3649
        %4810 = vmatprep.mubr.bf16.mxu0 %v1090
        %4811 = vmatmul.mubr.bf16.gmra.mrb[0].mxu0 %v1089
        %v4812 = vpop.f32.mrb[0].mxu0
        %v4813 = vadd.f32 %v4772, %v4812
        %v4814 = vpop.f32.mrb[0].mxu0
        %v4815 = vadd.f32 %v4774, %v4814
        %v4816 = vpop.f32.mrb[0].mxu0
        %v4817 = vpop.f32.mrb[0].mxu0
        %4818 = vdwg.mxu0
        %v4819 = vadd.f32 %v1071, %v4485
        %v4820 = vadd.f32 %v1072, %v4487
        %v4821 = vadd.f32 %v1073, %v4813
        %v4822 = vadd.f32 %v1074, %v4815
        %4823 = vst [vmem:[#allocation2] sm:$0xff] %v4819
        %4824 = vst [vmem:[#allocation2 + $0x8] sm:$0xff] %v4820
        %4825 = vst [vmem:[#allocation2 + $0x10] sm:$0xff] %v4821
        %4826 = vst [vmem:[#allocation2 + $0x18] sm:$0xff] %v4822
        %p4827 = scmp.eq.s32.totalorder %s32, 1
        // Predicated region
        $region69: #{tpu_custom_call.1} parent=43 // pred_check
          %p4828 = pneg %p4827
        $region70: #{tpu_custom_call.1} parent=43 // pred_check_branch
          %4830 = sbr.rel (%p4828) target = $region72
        $region71: #{tpu_custom_call.1} parent=43 // pred_region
          %v4831 = vld [vmem:[#allocation2] sm:$0xff]
          %v4832 = vld [vmem:[#allocation2 + $0x8] sm:$0xff]
          %v4833 = vld [vmem:[#allocation2 + $0x10] sm:$0xff]
          %v4834 = vld [vmem:[#allocation2 + $0x18] sm:$0xff]
          %v4835 = vld [vmem:[%s377] sm:$0xf]
          %v4837 = vlaneseq
          %v4838 = vshrl.u32 %v4837, 7
          %v4839 = vsub.s32 0, %v4838
          %v4840 = vrot.slane %v4835, %v4839
          %v4841 = vlaneseq
          %v4842 = vshrl.u32 %v4841, 7
          %v4843 = vsub.s32 1, %v4842
          %v4844 = vrot.slane %v4835, %v4843
          %v4845 = vlaneseq
          %v4846 = vshrl.u32 %v4845, 7
          %v4847 = vsub.s32 2, %v4846
          %v4848 = vrot.slane %v4835, %v4847
          %v4849 = vlaneseq
          %v4850 = vshrl.u32 %v4849, 7
          %v4851 = vsub.s32 3, %v4850
          %v4852 = vrot.slane %v4835, %v4851
          %v4857 = vadd.f32 %v4831, %v4840
          %v4858 = vadd.f32 %v4832, %v4844
          %v4859 = vadd.f32 %v4833, %v4848
          %v4860 = vadd.f32 %v4834, %v4852
          %v4861 = vxor.u32 %v4857, 2147483648
          %v4862 = vxor.u32 %v4858, 2147483648
          %v4863 = vxor.u32 %v4859, 2147483648
          %v4864 = vxor.u32 %v4860, 2147483648
          %v4865 = vmul.f32 %v4861, 1.442695
          %v4866 = vpow.pop %v4865
          %v4867 = vmul.f32 %v4862, 1.442695
          %v4868 = vpow.pop %v4867
          %v4869 = vmul.f32 %v4863, 1.442695
          %v4870 = vpow.pop %v4869
          %v4871 = vmul.f32 %v4864, 1.442695
          %v4872 = vpow.pop %v4871
          %v4873 = vadd.f32 %v4866, 1.0
          %v4874 = vadd.f32 %v4868, 1.0
          %v4875 = vadd.f32 %v4870, 1.0
          %v4876 = vadd.f32 %v4872, 1.0
          %v4877 = vrcp.pop %v4873
          %v4878 = vmul.f32 1.0, %v4877
          %v4879 = vrcp.pop %v4874
          %v4880 = vmul.f32 1.0, %v4879
          %v4881 = vrcp.pop %v4875
          %v4882 = vmul.f32 1.0, %v4881
          %v4883 = vrcp.pop %v4876
          %v4884 = vmul.f32 1.0, %v4883
          %v4885 = vmul.f32 %v4857, %v4878
          %v4886 = vmul.f32 %v4858, %v4880
          %v4887 = vmul.f32 %v4859, %v4882
          %v4888 = vmul.f32 %v4860, %v4884
          %v4889 = vpack.c.bf16 %v4885, %v4885
          %v4890 = vpack.c.bf16 %v4886, %v4886
          %v4891 = vpack.c.bf16 %v4887, %v4887
          %v4892 = vpack.c.bf16 %v4888, %v4888
          %v4893 = vld [vmem:[%s435] sm:$0xf]
          %v4894 = vld [vmem:[%s435 + $0x4] sm:$0xf]
          %v4895 = vld [vmem:[%s435 + $0x8] sm:$0xf]
          %v4896 = vld [vmem:[%s435 + $0xc] sm:$0xf]
          %v4897 = vld [vmem:[%s435 + $0x10] sm:$0xf]
          %v4898 = vld [vmem:[%s435 + $0x14] sm:$0xf]
          %v4899 = vld [vmem:[%s435 + $0x18] sm:$0xf]
          %v4900 = vld [vmem:[%s435 + $0x1c] sm:$0xf]
          %v4901 = vld [vmem:[%s435 + $0x20] sm:$0xf]
          %v4902 = vld [vmem:[%s435 + $0x24] sm:$0xf]
          %v4903 = vld [vmem:[%s435 + $0x28] sm:$0xf]
          %v4904 = vld [vmem:[%s435 + $0x2c] sm:$0xf]
          %v4905 = vld [vmem:[%s435 + $0x30] sm:$0xf]
          %v4906 = vld [vmem:[%s435 + $0x34] sm:$0xf]
          %v4907 = vld [vmem:[%s435 + $0x38] sm:$0xf]
          %v4908 = vld [vmem:[%s435 + $0x3c] sm:$0xf]
          %v4909 = vld [vmem:[%s435 + $0x40] sm:$0xf]
          %v4910 = vld [vmem:[%s435 + $0x44] sm:$0xf]
          %v4911 = vld [vmem:[%s435 + $0x48] sm:$0xf]
          %v4912 = vld [vmem:[%s435 + $0x4c] sm:$0xf]
          %v4913 = vld [vmem:[%s435 + $0x50] sm:$0xf]
          %v4914 = vld [vmem:[%s435 + $0x54] sm:$0xf]
          %v4915 = vld [vmem:[%s435 + $0x58] sm:$0xf]
          %v4916 = vld [vmem:[%s435 + $0x5c] sm:$0xf]
          %v4917 = vld [vmem:[%s435 + $0x60] sm:$0xf]
          %v4918 = vld [vmem:[%s435 + $0x64] sm:$0xf]
          %v4919 = vld [vmem:[%s435 + $0x68] sm:$0xf]
          %v4920 = vld [vmem:[%s435 + $0x6c] sm:$0xf]
          %v4921 = vld [vmem:[%s435 + $0x70] sm:$0xf]
          %v4922 = vld [vmem:[%s435 + $0x74] sm:$0xf]
          %v4923 = vld [vmem:[%s435 + $0x78] sm:$0xf]
          %v4924 = vld [vmem:[%s435 + $0x7c] sm:$0xf]
          %v4925 = vld [vmem:[%s435 + $0x80] sm:$0xf]
          %v4926 = vld [vmem:[%s435 + $0x84] sm:$0xf]
          %v4927 = vld [vmem:[%s435 + $0x88] sm:$0xf]
          %v4928 = vld [vmem:[%s435 + $0x8c] sm:$0xf]
          %v4929 = vld [vmem:[%s435 + $0x90] sm:$0xf]
          %v4930 = vld [vmem:[%s435 + $0x94] sm:$0xf]
          %v4931 = vld [vmem:[%s435 + $0x98] sm:$0xf]
          %v4932 = vld [vmem:[%s435 + $0x9c] sm:$0xf]
          %v4933 = vld [vmem:[%s435 + $0xa0] sm:$0xf]
          %v4934 = vld [vmem:[%s435 + $0xa4] sm:$0xf]
          %v4935 = vld [vmem:[%s435 + $0xa8] sm:$0xf]
          %v4936 = vld [vmem:[%s435 + $0xac] sm:$0xf]
          %v4937 = vld [vmem:[%s435 + $0xb0] sm:$0xf]
          %v4938 = vld [vmem:[%s435 + $0xb4] sm:$0xf]
          %v4939 = vld [vmem:[%s435 + $0xb8] sm:$0xf]
          %v4940 = vld [vmem:[%s435 + $0xbc] sm:$0xf]
          %v4941 = vld [vmem:[%s435 + $0xc0] sm:$0xf]
          %v4942 = vld [vmem:[%s435 + $0xc4] sm:$0xf]
          %v4943 = vld [vmem:[%s435 + $0xc8] sm:$0xf]
          %v4944 = vld [vmem:[%s435 + $0xcc] sm:$0xf]
          %v4945 = vld [vmem:[%s435 + $0xd0] sm:$0xf]
          %v4946 = vld [vmem:[%s435 + $0xd4] sm:$0xf]
          %v4947 = vld [vmem:[%s435 + $0xd8] sm:$0xf]
          %v4948 = vld [vmem:[%s435 + $0xdc] sm:$0xf]
          %v4949 = vld [vmem:[%s435 + $0xe0] sm:$0xf]
          %v4950 = vld [vmem:[%s435 + $0xe4] sm:$0xf]
          %v4951 = vld [vmem:[%s435 + $0xe8] sm:$0xf]
          %v4952 = vld [vmem:[%s435 + $0xec] sm:$0xf]
          %v4953 = vld [vmem:[%s435 + $0xf0] sm:$0xf]
          %v4954 = vld [vmem:[%s435 + $0xf4] sm:$0xf]
          %v4955 = vld [vmem:[%s435 + $0xf8] sm:$0xf]
          %v4956 = vld [vmem:[%s435 + $0xfc] sm:$0xf]
          %v5021 = vunpack.c.l.b16 %v4893
          %v5022 = vunpack.c.l.b16 %v4894
          %v5023 = vunpack.c.l.b16 %v4895
          %v5024 = vunpack.c.l.b16 %v4896
          %v5025 = vunpack.c.l.b16 %v4897
          %v5026 = vunpack.c.l.b16 %v4898
          %v5027 = vunpack.c.l.b16 %v4899
          %v5028 = vunpack.c.l.b16 %v4900
          %v5029 = vunpack.c.l.b16 %v4901
          %v5030 = vunpack.c.l.b16 %v4902
          %v5031 = vunpack.c.l.b16 %v4903
          %v5032 = vunpack.c.l.b16 %v4904
          %v5033 = vunpack.c.l.b16 %v4905
          %v5034 = vunpack.c.l.b16 %v4906
          %v5035 = vunpack.c.l.b16 %v4907
          %v5036 = vunpack.c.l.b16 %v4908
          %v5037 = vunpack.c.l.b16 %v4909
          %v5038 = vunpack.c.l.b16 %v4910
          %v5039 = vunpack.c.l.b16 %v4911
          %v5040 = vunpack.c.l.b16 %v4912
          %v5041 = vunpack.c.l.b16 %v4913
          %v5042 = vunpack.c.l.b16 %v4914
          %v5043 = vunpack.c.l.b16 %v4915
          %v5044 = vunpack.c.l.b16 %v4916
          %v5045 = vunpack.c.l.b16 %v4917
          %v5046 = vunpack.c.l.b16 %v4918
          %v5047 = vunpack.c.l.b16 %v4919
          %v5048 = vunpack.c.l.b16 %v4920
          %v5049 = vunpack.c.l.b16 %v4921
          %v5050 = vunpack.c.l.b16 %v4922
          %v5051 = vunpack.c.l.b16 %v4923
          %v5052 = vunpack.c.l.b16 %v4924
          %v5053 = vunpack.c.l.b16 %v4925
          %v5054 = vunpack.c.l.b16 %v4926
          %v5055 = vunpack.c.l.b16 %v4927
          %v5056 = vunpack.c.l.b16 %v4928
          %v5057 = vunpack.c.l.b16 %v4929
          %v5058 = vunpack.c.l.b16 %v4930
          %v5059 = vunpack.c.l.b16 %v4931
          %v5060 = vunpack.c.l.b16 %v4932
          %v5061 = vunpack.c.l.b16 %v4933
          %v5062 = vunpack.c.l.b16 %v4934
          %v5063 = vunpack.c.l.b16 %v4935
          %v5064 = vunpack.c.l.b16 %v4936
          %v5065 = vunpack.c.l.b16 %v4937
          %v5066 = vunpack.c.l.b16 %v4938
          %v5067 = vunpack.c.l.b16 %v4939
          %v5068 = vunpack.c.l.b16 %v4940
          %v5069 = vunpack.c.l.b16 %v4941
          %v5070 = vunpack.c.l.b16 %v4942
          %v5071 = vunpack.c.l.b16 %v4943
          %v5072 = vunpack.c.l.b16 %v4944
          %v5073 = vunpack.c.l.b16 %v4945
          %v5074 = vunpack.c.l.b16 %v4946
          %v5075 = vunpack.c.l.b16 %v4947
          %v5076 = vunpack.c.l.b16 %v4948
          %v5077 = vunpack.c.l.b16 %v4949
          %v5078 = vunpack.c.l.b16 %v4950
          %v5079 = vunpack.c.l.b16 %v4951
          %v5080 = vunpack.c.l.b16 %v4952
          %v5081 = vunpack.c.l.b16 %v4953
          %v5082 = vunpack.c.l.b16 %v4954
          %v5083 = vunpack.c.l.b16 %v4955
          %v5084 = vunpack.c.l.b16 %v4956
          %v5085 = vpack.c.b16 %v5022, %v5021
          %v5086 = vpack.c.b16 %v5024, %v5023
          %v5087 = vpack.c.b16 %v5026, %v5025
          %v5088 = vpack.c.b16 %v5028, %v5027
          %v5089 = vpack.c.b16 %v5030, %v5029
          %v5090 = vpack.c.b16 %v5032, %v5031
          %v5091 = vpack.c.b16 %v5034, %v5033
          %v5092 = vpack.c.b16 %v5036, %v5035
          %v5093 = vpack.c.b16 %v5038, %v5037
          %v5094 = vpack.c.b16 %v5040, %v5039
          %v5095 = vpack.c.b16 %v5042, %v5041
          %v5096 = vpack.c.b16 %v5044, %v5043
          %v5097 = vpack.c.b16 %v5046, %v5045
          %v5098 = vpack.c.b16 %v5048, %v5047
          %v5099 = vpack.c.b16 %v5050, %v5049
          %v5100 = vpack.c.b16 %v5052, %v5051
          %v5101 = vpack.c.b16 %v5054, %v5053
          %v5102 = vpack.c.b16 %v5056, %v5055
          %v5103 = vpack.c.b16 %v5058, %v5057
          %v5104 = vpack.c.b16 %v5060, %v5059
          %v5105 = vpack.c.b16 %v5062, %v5061
          %v5106 = vpack.c.b16 %v5064, %v5063
          %v5107 = vpack.c.b16 %v5066, %v5065
          %v5108 = vpack.c.b16 %v5068, %v5067
          %v5109 = vpack.c.b16 %v5070, %v5069
          %v5110 = vpack.c.b16 %v5072, %v5071
          %v5111 = vpack.c.b16 %v5074, %v5073
          %v5112 = vpack.c.b16 %v5076, %v5075
          %v5113 = vpack.c.b16 %v5078, %v5077
          %v5114 = vpack.c.b16 %v5080, %v5079
          %v5115 = vpack.c.b16 %v5082, %v5081
          %v5116 = vpack.c.b16 %v5084, %v5083
          %5149 = vmatprep.subr.bf16.mxu0 0
          %5150 = vmatpush1.bf16.msra.mxu0 %v5085
          %5151 = vmatprep.subr.bf16.mxu0 0
          %5152 = vmatpush1.bf16.msra.mxu0 %v5086
          %5153 = vmatprep.subr.bf16.mxu0 0
          %5154 = vmatpush1.bf16.msra.mxu0 %v5087
          %5155 = vmatprep.subr.bf16.mxu0 0
          %5156 = vmatpush1.bf16.msra.mxu0 %v5088
          %5157 = vmatprep.subr.bf16.mxu0 0
          %5158 = vmatpush1.bf16.msra.mxu0 %v5089
          %5159 = vmatprep.subr.bf16.mxu0 0
          %5160 = vmatpush1.bf16.msra.mxu0 %v5090
          %5161 = vmatprep.subr.bf16.mxu0 0
          %5162 = vmatpush1.bf16.msra.mxu0 %v5091
          %5163 = vmatprep.subr.bf16.mxu0 0
          %5164 = vmatpush1.bf16.msra.mxu0 %v5092
          %5165 = vmatprep.subr.bf16.mxu0 0
          %5166 = vmatpush1.bf16.msra.mxu0 %v5093
          %5167 = vmatprep.subr.bf16.mxu0 0
          %5168 = vmatpush1.bf16.msra.mxu0 %v5094
          %5169 = vmatprep.subr.bf16.mxu0 0
          %5170 = vmatpush1.bf16.msra.mxu0 %v5095
          %5171 = vmatprep.subr.bf16.mxu0 0
          %5172 = vmatpush1.bf16.msra.mxu0 %v5096
          %5173 = vmatprep.subr.bf16.mxu0 0
          %5174 = vmatpush1.bf16.msra.mxu0 %v5097
          %5175 = vmatprep.subr.bf16.mxu0 0
          %5176 = vmatpush1.bf16.msra.mxu0 %v5098
          %5177 = vmatprep.subr.bf16.mxu0 0
          %5178 = vmatpush1.bf16.msra.mxu0 %v5099
          %5179 = vmatprep.subr.bf16.mxu0 0
          %5180 = vmatpush1.bf16.msra.mxu0 %v5100
          %5181 = vmatprep.mubr.bf16.mxu0 %v4890
          %5182 = vmatmul.mubr.bf16.gmra.mrb[0].mxu0 %v4889
          %v5183 = vpop.f32.mrb[0].mxu0
          %v5184 = vadd.f32 0.0, %v5183
          %v5185 = vpop.f32.mrb[0].mxu0
          %v5186 = vpop.f32.mrb[0].mxu0
          %v5187 = vpop.f32.mrb[0].mxu0
          %5188 = vdwg.mxu0
          %5189 = vmatprep.subr.bf16.mxu0 0
          %5190 = vmatpush1.bf16.msra.mxu0 %v5101
          %5191 = vmatprep.subr.bf16.mxu0 0
          %5192 = vmatpush1.bf16.msra.mxu0 %v5102
          %5193 = vmatprep.subr.bf16.mxu0 0
          %5194 = vmatpush1.bf16.msra.mxu0 %v5103
          %5195 = vmatprep.subr.bf16.mxu0 0
          %5196 = vmatpush1.bf16.msra.mxu0 %v5104
          %5197 = vmatprep.subr.bf16.mxu0 0
          %5198 = vmatpush1.bf16.msra.mxu0 %v5105
          %5199 = vmatprep.subr.bf16.mxu0 0
          %5200 = vmatpush1.bf16.msra.mxu0 %v5106
          %5201 = vmatprep.subr.bf16.mxu0 0
          %5202 = vmatpush1.bf16.msra.mxu0 %v5107
          %5203 = vmatprep.subr.bf16.mxu0 0
          %5204 = vmatpush1.bf16.msra.mxu0 %v5108
          %5205 = vmatprep.subr.bf16.mxu0 0
          %5206 = vmatpush1.bf16.msra.mxu0 %v5109
          %5207 = vmatprep.subr.bf16.mxu0 0
          %5208 = vmatpush1.bf16.msra.mxu0 %v5110
          %5209 = vmatprep.subr.bf16.mxu0 0
          %5210 = vmatpush1.bf16.msra.mxu0 %v5111
          %5211 = vmatprep.subr.bf16.mxu0 0
          %5212 = vmatpush1.bf16.msra.mxu0 %v5112
          %5213 = vmatprep.subr.bf16.mxu0 0
          %5214 = vmatpush1.bf16.msra.mxu0 %v5113
          %5215 = vmatprep.subr.bf16.mxu0 0
          %5216 = vmatpush1.bf16.msra.mxu0 %v5114
          %5217 = vmatprep.subr.bf16.mxu0 0
          %5218 = vmatpush1.bf16.msra.mxu0 %v5115
          %5219 = vmatprep.subr.bf16.mxu0 0
          %5220 = vmatpush1.bf16.msra.mxu0 %v5116
          %5221 = vmatprep.mubr.bf16.mxu0 %v4892
          %5222 = vmatmul.mubr.bf16.gmra.mrb[0].mxu0 %v4891
          %v5223 = vpop.f32.mrb[0].mxu0
          %v5224 = vadd.f32 %v5184, %v5223
          %v5225 = vpop.f32.mrb[0].mxu0
          %v5226 = vpop.f32.mrb[0].mxu0
          %v5227 = vpop.f32.mrb[0].mxu0
          %5228 = vdwg.mxu0
          %vm5229 = vcmask 130048
          %5230 = vst.msk [vmem:[%s425] sm:$0xff] %vm5229, %v5224
        $region72: #{tpu_custom_call.1} parent=43 // pred_fallthru
          _
        %s5231 = sand.u32 %s200, 1
        %s5232 = scalar_lea.sflag [#allocation5], %s5231
        %s5233 = sand.u32 %s200, 1
        %s5234 = smul.addr %s5233, 8
        %s5235 = scalar_lea.vmem [#allocation12], %s5234
        // Predicated region
        $region73: #{tpu_custom_call.1} parent=43 // pred_check
          %p5236 = pneg %p210
        $region74: #{tpu_custom_call.1} parent=43 // pred_check_branch
          %5238 = sbr.rel (%p5236) target = $region76
        $region75: #{tpu_custom_call.1} parent=43 // pred_region
          %s5240 = ssub.s32 128, 128
          %5241 = vsyncadd %s5232, %s5240
          %s5242 = smul.addr %s31, 128
          %s5243 = scalar_lea.hbm %s6, %s5242
          %s5245 = sshll.u32 %s5235, 4
          %s5246 = int_to_ptr.vmem [resolvable:$true] %s5245
          %5248 = dma.vmem_to_hbm [thread:$0]  %s5246, 128, %s5243, %s5232
        $region76: #{tpu_custom_call.1} parent=43 // pred_fallthru
          _
      $region44: #{tpu_custom_call.1} parent=5 // pred_fallthru
        _
      %p5249 = scmp.le.s32.totalorder 2, %s22
      // Predicated region
      $region77: #{tpu_custom_call.1} parent=5 // pred_check
        %p5250 = pneg %p5249
      $region78: #{tpu_custom_call.1} parent=5 // pred_check_branch
        %5252 = sbr.rel (%p5250) target = $region80
      $region79: #{tpu_custom_call.1} parent=5 // pred_region
        %s5253 = ssub.s32 %s22, 2
        // Predicated region
        $region81: #{tpu_custom_call.1} parent=79 // pred_check
          %p5254 = pneg %p216
        $region82: #{tpu_custom_call.1} parent=79 // pred_check_branch
          %5256 = sbr.rel (%p5254) target = $region84
        $region83: #{tpu_custom_call.1} parent=79 // pred_region
          %s5257 = sand.u32 %s201, 1
          %s5258 = scalar_lea.sflag [#allocation5], %s5257
          %s5259 = sand.u32 %s201, 1
          %s5260 = smul.addr %s5259, 8
          %s5261 = scalar_lea.vmem [#allocation12], %s5260
          %5262 = dma.done %s5258, 128
        $region84: #{tpu_custom_call.1} parent=79 // pred_fallthru
          _
      $region80: #{tpu_custom_call.1} parent=5 // pred_fallthru
        _
    $region6: #{tpu_custom_call.1} parent=1 // loop_footer
      %s26 = sadd.s32 1, %s22
    $region7: #{tpu_custom_call.1} parent=1 // loop_footer_branch
      %21 = sbr.rel target = $region3
    $region8: #{tpu_custom_call.1} parent=1 // loop_exit
      _
    %5263 = vsyncpa [#allocation4], 1
    %s5264 = scalar_lea.sflag [#allocation4], 1
    %5265 = vsyncpa %s5264, 1
    %5266 = vsyncpa [#allocation7], 1
    %s5267 = scalar_lea.sflag [#allocation7], 1
    %5268 = vsyncpa %s5267, 1
    %5269 = vsyncpa [#allocation10], 1
    %s5270 = scalar_lea.sflag [#allocation10], 1
    %5271 = vsyncpa %s5270, 1
    %5272 = vsyncpa [#allocation5], 1
    %s5273 = scalar_lea.sflag [#allocation5], 1
    %5274 = vsyncpa %s5273, 1

</llo_original>
